<compile_context>
chip_gen: v7x
topology: tpu7x:2x2x1
jax: 0.10.0
libtpu: 0.0.40
codegen_flags: <defaults>
</compile_context>

<pallas_src>
import math
import functools

import jax
import jax.numpy as jnp
from jax.experimental import pallas as pl
from jax.experimental.pallas import tpu as pltpu


# ----------------------------------------------------------------------------
# helpers
# ----------------------------------------------------------------------------
def _round_up(v, m):
    return ((v + m - 1) // m) * m


def _bf16(x):
    return x.astype(jnp.bfloat16)


def _layernorm(x, g, b, eps=1e-5):
    mu = jnp.mean(x, axis=-1, keepdims=True)
    var = jnp.mean((x - mu) ** 2, axis=-1, keepdims=True)
    return (x - mu) * jax.lax.rsqrt(var + eps) * g + b


def _erf(x):
    # Abramowitz & Stegun 7.1.26 (|err| ~1.5e-7); the true divide is replaced
    # by the EUP approximate reciprocal (idle slot) -> inference-grade.
    a1, a2, a3, a4, a5 = 0.254829592, -0.284496736, 1.421413741, -1.453152027, 1.061405429
    p = 0.3275911
    ax = jnp.abs(x)
    t = pl.reciprocal(1.0 + p * ax, approx=True)
    poly = ((((a5 * t + a4) * t + a3) * t + a2) * t + a1) * t
    y = 1.0 - poly * jnp.exp(-ax * ax)
    return jnp.where(x >= 0, y, -y)


def _gelu(x):
    # matches torch.nn.GELU() (erf form) up to the approximations noted above
    return 0.5 * x * (1.0 + _erf(x * (1.0 / math.sqrt(2.0))))


# ----------------------------------------------------------------------------
# Fused ViT kernel: patch-embed + n_layers transformer blocks + head.
# One grid step = one batch block (bb batch elements); all weights resident.
# ----------------------------------------------------------------------------
def _vit_fused_kernel(x_patch_ref, patch_w_ref, add_base_ref,
                      ln1_g_ref, ln1_b_ref,
                      w_qkv_ref, b_qkv_ref,
                      w_out_ref, b_out_ref,
                      ln2_g_ref, ln2_b_ref,
                      w_ff1_ref, b_ff1_ref,
                      w_ff2_ref, b_ff2_ref,
                      head_g_ref, head_b_ref, head_w_ref, head_bias_ref,
                      o_ref,
                      *, n_heads, n_layers, n_tok, dh, dh_pad):
    bb, T, Pin = x_patch_ref.shape
    D = patch_w_ref.shape[1]
    M = bb * T                                    # batch folded into matmul rows

    # ---- patch embedding; patch bias / CLS token / pos-emb folded into add_base
    xp = x_patch_ref[...].reshape(M, Pin)         # already bf16
    emb = jnp.dot(xp, patch_w_ref[...], preferred_element_type=jnp.float32)
    x = (emb.reshape(bb, T, D) + add_base_ref[...]).reshape(M, D)   # f32 stream

    # ---- pad-key mask for the padded token axis (stays f32: -1e30 > bf16 max)
    col = jax.lax.broadcasted_iota(jnp.int32, (T, T), 1)
    neg_mask = jnp.where(col >= n_tok, -1e30, 0.0).astype(jnp.float32)
    scale = jnp.float32(1.0 / math.sqrt(dh))      # scale uses the *real* head dim
    hq = n_heads * dh_pad                         # width of each q/k/v group

    for l in range(n_layers):                     # static unroll (small n_layers)
        # -------- attention sub-block:  x = x + OutProj(MHA(LN1(x)))
        ln1 = _layernorm(x, ln1_g_ref[l], ln1_b_ref[l])
        qkv = jnp.dot(_bf16(ln1), w_qkv_ref[l],
                      preferred_element_type=jnp.float32) + b_qkv_ref[l]   # (M, 3*hq)

        attn = None
        for h in range(n_heads):                  # static unroll, 128-aligned slices
            o0 = h * dh_pad
            qh = _bf16(qkv[:, o0:o0 + dh_pad].reshape(bb, T, dh_pad))
            kh = _bf16(qkv[:, hq + o0:hq + o0 + dh_pad].reshape(bb, T, dh_pad))
            vh = _bf16(qkv[:, 2 * hq + o0:2 * hq + o0 + dh_pad].reshape(bb, T, dh_pad))

            s = jnp.einsum('bqd,bkd->bqk', qh, kh,
                           preferred_element_type=jnp.float32) * scale
            s = s + neg_mask                      # mask padded key positions
            m = jnp.max(s, axis=-1, keepdims=True)
            p = jnp.exp(s - m)
            p = p * pl.reciprocal(jnp.sum(p, axis=-1, keepdims=True), approx=True)
            ctx = jnp.einsum('bqk,bkd->bqd', _bf16(p), vh,
                             preferred_element_type=jnp.float32)           # (bb,T,dh_pad)
            # per-head out-projection slice, accumulated in-register (no slab)
            part = jnp.dot(_bf16(ctx.reshape(M, dh_pad)), w_out_ref[l, h],
                           preferred_element_type=jnp.float32)             # (M, D)
            attn = part if attn is None else attn + part
        x = x + attn + b_out_ref[l]               # ResidualAdd

        # -------- feed-forward sub-block:  x = x + FF(LN2(x))
        ln2 = _layernorm(x, ln2_g_ref[l], ln2_b_ref[l])
        h1 = jnp.dot(_bf16(ln2), w_ff1_ref[l],
                     preferred_element_type=jnp.float32) + b_ff1_ref[l]
        h1 = _gelu(h1)
        h2 = jnp.dot(_bf16(h1), w_ff2_ref[l],
                     preferred_element_type=jnp.float32) + b_ff2_ref[l]
        x = x + h2                                # ResidualAdd

    # ---- classification head: only the first 8 rows (minimum sublane tile,
    #      row 0 = CLS) of each batch element go through LN + Linear; the
    #      output is stored as a dense (8, out_pad) slab, wrapper keeps row 0.
    xb = x.reshape(bb, T, D)
    for be in range(bb):
        hx = _layernorm(xb[be, 0:8, :], head_g_ref[...], head_b_ref[...])
        o = jnp.dot(_bf16(hx), head_w_ref[...],
                    preferred_element_type=jnp.float32) + head_bias_ref[...]
        o_ref[be] = o.astype(o_ref.dtype)


# ----------------------------------------------------------------------------
# Parameter construction (deterministic, synthetic) — same structure as the
# PyTorch module: separate q/k/v linears plus MHA in_proj, hidden_dim = emb_dim.
# ----------------------------------------------------------------------------
def init_vit_params(key, *, ch, img_size, patch_size, emb_dim, n_layers, out_dim):
    num_patches = (img_size // patch_size) ** 2
    patch_in = patch_size * patch_size * ch

    def nrm(k, shape, scale=0.02):
        return (scale * jax.random.normal(k, shape)).astype(jnp.float32)

    keys = iter(jax.random.split(key, 16 + n_layers * 16))
    params = {
        "patch_w": nrm(next(keys), (patch_in, emb_dim)),
        "patch_b": jnp.zeros((1, emb_dim), jnp.float32),
        "pos_embedding": nrm(next(keys), (1, num_patches + 1, emb_dim), 1.0),
        "cls_token": jax.random.uniform(next(keys), (1, 1, emb_dim), jnp.float32),
        "head_ln_g": jnp.ones((1, emb_dim), jnp.float32),
        "head_ln_b": jnp.zeros((1, emb_dim), jnp.float32),
        "head_w": nrm(next(keys), (emb_dim, out_dim)),
        "head_b": jnp.zeros((1, out_dim), jnp.float32),
        "layers": [],
    }
    for _ in range(n_layers):
        layer = {
            "ln1_g": jnp.ones((1, emb_dim), jnp.float32),
            "ln1_b": jnp.zeros((1, emb_dim), jnp.float32),
            "wq": nrm(next(keys), (emb_dim, emb_dim)),
            "bq": jnp.zeros((1, emb_dim), jnp.float32),
            "wk": nrm(next(keys), (emb_dim, emb_dim)),
            "bk": jnp.zeros((1, emb_dim), jnp.float32),
            "wv": nrm(next(keys), (emb_dim, emb_dim)),
            "bv": jnp.zeros((1, emb_dim), jnp.float32),
            "wq_in": nrm(next(keys), (emb_dim, emb_dim)),
            "bq_in": jnp.zeros((1, emb_dim), jnp.float32),
            "wk_in": nrm(next(keys), (emb_dim, emb_dim)),
            "bk_in": jnp.zeros((1, emb_dim), jnp.float32),
            "wv_in": nrm(next(keys), (emb_dim, emb_dim)),
            "bv_in": jnp.zeros((1, emb_dim), jnp.float32),
            "w_out": nrm(next(keys), (emb_dim, emb_dim)),
            "b_out": jnp.zeros((1, emb_dim), jnp.float32),
            "ln2_g": jnp.ones((1, emb_dim), jnp.float32),
            "ln2_b": jnp.zeros((1, emb_dim), jnp.float32),
            "w_ff1": nrm(next(keys), (emb_dim, emb_dim)),   # FeedForward(dim, dim)
            "b_ff1": jnp.zeros((1, emb_dim), jnp.float32),
            "w_ff2": nrm(next(keys), (emb_dim, emb_dim)),
            "b_ff2": jnp.zeros((1, emb_dim), jnp.float32),
        }
        params["layers"].append(layer)
    return params


# ----------------------------------------------------------------------------
# One-time weight preparation (hoisted OUT of the per-call path):
#   * fuse q/k/v linear + MHA in_proj into one QKV matmul with per-head
#     columns padded to dh_pad=128 lanes (zero columns; zero bias on pads)
#   * out_proj reshaped into per-head (dh_pad, D) blocks (zero pad rows)
#   * fold patch bias / CLS token / pos-emb into one additive (t_pad, D) base
#   * pad head output to 128 lanes, cast all matmul weights to bf16
# ----------------------------------------------------------------------------
def prepare_fused_params(params, *, n_heads, n_tok, t_pad, out_pad, dh, dh_pad):
    D = params["patch_w"].shape[1]
    out_dim = params["head_w"].shape[1]

    pos = params["pos_embedding"][0, :n_tok]                         # (n_tok, D)
    base = jnp.zeros((t_pad, D), jnp.float32)
    base = base.at[0].set(params["cls_token"][0, 0] + pos[0])        # CLS slot
    base = base.at[1:n_tok].set(params["patch_b"][0] + pos[1:])      # patch rows
    # pad rows stay zero

    def pad_heads_cols(w, b):
        wp = jnp.zeros((D, n_heads * dh_pad), jnp.float32)
        bp = jnp.zeros((1, n_heads * dh_pad), jnp.float32)
        for h in range(n_heads):
            wp = wp.at[:, h * dh_pad:h * dh_pad + dh].set(w[:, h * dh:(h + 1) * dh])
            bp = bp.at[:, h * dh_pad:h * dh_pad + dh].set(b[:, h * dh:(h + 1) * dh])
        return wp, bp                       # pad lanes (incl. bias) stay exactly 0

    def fuse(layer):
        parts_w, parts_b = [], []
        for nm in ("q", "k", "v"):          # pre-compose Linear with MHA in_proj
            w = layer["w" + nm] @ layer["w" + nm + "_in"]
            b = layer["b" + nm] @ layer["w" + nm + "_in"] + layer["b" + nm + "_in"]
            wp, bp = pad_heads_cols(w, b)
            parts_w.append(wp)
            parts_b.append(bp)
        w_qkv = jnp.concatenate(parts_w, axis=1)          # (D, 3*n_heads*dh_pad)
        b_qkv = jnp.concatenate(parts_b, axis=1)          # (1, 3*n_heads*dh_pad)
        wo = jnp.zeros((n_heads, dh_pad, D), jnp.float32)
        for h in range(n_heads):
            wo = wo.at[h, :dh, :].set(layer["w_out"][h * dh:(h + 1) * dh, :])
        return w_qkv, b_qkv, wo

    layers = params["layers"]
    fused = [fuse(l) for l in layers]
    stack = lambda name: jnp.stack([l[name] for l in layers])

    head_w = jnp.zeros((D, out_pad), jnp.float32).at[:, :out_dim].set(params["head_w"])
    head_b = jnp.zeros((1, out_pad), jnp.float32).at[:, :out_dim].set(params["head_b"])

    return {
        "patch_w": _bf16(params["patch_w"]),
        "add_base": base,                                            # (t_pad, D) f32
        "ln1_g": stack("ln1_g"), "ln1_b": stack("ln1_b"),
        "w_qkv": _bf16(jnp.stack([f[0] for f in fused])),
        "b_qkv": jnp.stack([f[1] for f in fused]),
        "w_out": _bf16(jnp.stack([f[2] for f in fused])),            # (L,H,dh_pad,D)
        "b_out": stack("b_out"),
        "ln2_g": stack("ln2_g"), "ln2_b": stack("ln2_b"),
        "w_ff1": _bf16(stack("w_ff1")), "b_ff1": stack("b_ff1"),
        "w_ff2": _bf16(stack("w_ff2")), "b_ff2": stack("b_ff2"),
        "head_ln_g": params["head_ln_g"], "head_ln_b": params["head_ln_b"],
        "head_w": _bf16(head_w), "head_b": head_b,
    }


# ----------------------------------------------------------------------------
# ViT forward (one pallas_call; grid over batch blocks, "parallel" for v7x)
# ----------------------------------------------------------------------------
def vit_forward(img, fused, *, patch_size, n_heads, n_tok, t_pad, dh, dh_pad,
                out_dim, out_pad, batch_splits=2):
    B, C, H, W = img.shape
    p = patch_size
    hN, wN = H // p, W // p
    n_patch = hN * wN
    pin = p * p * C
    n_layers = fused["w_qkv"].shape[0]

    # Rearrange('b c (h p1) (w p2) -> b (h w) (p1 p2 c)')   [JAX layout glue]
    xr = img.reshape(B, C, hN, p, wN, p)
    xr = jnp.transpose(xr, (0, 2, 4, 3, 5, 1))
    patches = xr.reshape(B, n_patch, pin)
    # token slot 0 reserved for CLS (handled by add_base); trailing rows = pad.
    # Shipped as bf16: it is only ever consumed as a bf16 matmul operand.
    x_patch = jnp.zeros((B, t_pad, pin), jnp.bfloat16)
    x_patch = x_patch.at[:, 1:n_tok].set(patches.astype(jnp.bfloat16))

    # batch block: at most `batch_splits` grid steps (enough for v7x's 2 TCs,
    # keeps M as large as possible per step for MXU fill on v5e/v6e).
    bb = B
    for s in range(min(batch_splits, B), 0, -1):
        if B % s == 0:
            bb = B // s
            break
    grid = (B // bb,)

    inputs = (x_patch, fused["patch_w"], fused["add_base"],
              fused["ln1_g"], fused["ln1_b"],
              fused["w_qkv"], fused["b_qkv"],
              fused["w_out"], fused["b_out"],
              fused["ln2_g"], fused["ln2_b"],
              fused["w_ff1"], fused["b_ff1"],
              fused["w_ff2"], fused["b_ff2"],
              fused["head_ln_g"], fused["head_ln_b"],
              fused["head_w"], fused["head_b"])

    def full_spec(a):                       # whole array resident, same every step
        n = a.ndim
        return pl.BlockSpec(a.shape, lambda b: (0,) * n)

    in_specs = ([pl.BlockSpec((bb, t_pad, pin), lambda b: (b, 0, 0))]
                + [full_spec(a) for a in inputs[1:]])
    out_specs = pl.BlockSpec((bb, 8, out_pad), lambda b: (b, 0, 0))
    out_shape = jax.ShapeDtypeStruct((B, 8, out_pad), jnp.float32)

    # scoped-VMEM budget: resident operands (x2 for pipelining buffers) + slack,
    # floored at the 32 MiB default and capped at 48 MiB (fits v7x's 64 MiB).
    op_bytes = sum(int(a.size) * a.dtype.itemsize for a in inputs)
    op_bytes += B * 8 * out_pad * 4
    vmem_limit = int(min(48 << 20, max(32 << 20, 2 * op_bytes + (8 << 20))))

    kernel = functools.partial(_vit_fused_kernel, n_heads=n_heads,
                               n_layers=n_layers, n_tok=n_tok,
                               dh=dh, dh_pad=dh_pad)

    out = pl.pallas_call(
        kernel,
        grid=grid,
        out_shape=out_shape,
        in_specs=in_specs,
        out_specs=out_specs,
        compiler_params=pltpu.CompilerParams(
            dimension_semantics=("parallel",),
            vmem_limit_bytes=vmem_limit),
    )(*inputs)

    # row 0 of each batch element is the CLS logits; slice off lane padding
    return out[:, 0, :out_dim]


# ----------------------------------------------------------------------------
if __name__ == "__main__":
    # Small configuration consistent with the module's forward:
    #   ch=3, img_size=32, patch_size=8 -> 16 patches + 1 CLS = 17 tokens
    B, CH, IMG, PATCH = 2, 3, 32, 8
    EMB, LAYERS, OUT, HEADS = 128, 2, 37, 2

    n_tok = (IMG // PATCH) ** 2 + 1
    t_pad = _round_up(n_tok, 8)             # sublane-aligned token axis (17 -> 24)
    dh = EMB // HEADS
    dh_pad = _round_up(dh, 128)             # lane-aligned per-head width (64 -> 128)
    out_pad = _round_up(OUT, 128)           # lane-dense head output (37 -> 128)

    key = jax.random.PRNGKey(0)
    k_img, k_par = jax.random.split(key)
    img = jax.random.normal(k_img, (B, CH, IMG, IMG), jnp.float32)
    params = init_vit_params(k_par, ch=CH, img_size=IMG, patch_size=PATCH,
                             emb_dim=EMB, n_layers=LAYERS, out_dim=OUT)

    # one-time weight fusion / padding / bf16 casts (outside the per-call path)
    fused = prepare_fused_params(params, n_heads=HEADS, n_tok=n_tok, t_pad=t_pad,
                                 out_pad=out_pad, dh=dh, dh_pad=dh_pad)

    fwd = jax.jit(functools.partial(
        vit_forward, fused=fused, patch_size=PATCH, n_heads=HEADS, n_tok=n_tok,
        t_pad=t_pad, dh=dh, dh_pad=dh_pad, out_dim=OUT, out_pad=out_pad))

    out = fwd(img)
    out = jax.block_until_ready(out)
    assert out.shape == (B, OUT) and out.dtype == jnp.float32
    assert bool(jnp.all(jnp.isfinite(out)))
    print("KERNEL_OK")
</pallas_src>

<mosaic_0001>
module attributes {stable_mosaic.version = 11 : i64} {
  func.func @_vit_fused_kernel(%arg0: i32, %arg1: memref<1x24x192xbf16, #tpu.memory_space<vmem>>, %arg2: memref<192x128xbf16, #tpu.memory_space<vmem>>, %arg3: memref<24x128xf32, #tpu.memory_space<vmem>>, %arg4: memref<2x1x128xf32, #tpu.memory_space<vmem>>, %arg5: memref<2x1x128xf32, #tpu.memory_space<vmem>>, %arg6: memref<2x128x768xbf16, #tpu.memory_space<vmem>>, %arg7: memref<2x1x768xf32, #tpu.memory_space<vmem>>, %arg8: memref<2x2x128x128xbf16, #tpu.memory_space<vmem>>, %arg9: memref<2x1x128xf32, #tpu.memory_space<vmem>>, %arg10: memref<2x1x128xf32, #tpu.memory_space<vmem>>, %arg11: memref<2x1x128xf32, #tpu.memory_space<vmem>>, %arg12: memref<2x128x128xbf16, #tpu.memory_space<vmem>>, %arg13: memref<2x1x128xf32, #tpu.memory_space<vmem>>, %arg14: memref<2x128x128xbf16, #tpu.memory_space<vmem>>, %arg15: memref<2x1x128xf32, #tpu.memory_space<vmem>>, %arg16: memref<1x128xf32, #tpu.memory_space<vmem>>, %arg17: memref<1x128xf32, #tpu.memory_space<vmem>>, %arg18: memref<128x128xbf16, #tpu.memory_space<vmem>>, %arg19: memref<1x128xf32, #tpu.memory_space<vmem>>, %arg20: memref<1x8x128xf32, #tpu.memory_space<vmem>>) attributes {dimension_semantics = [#tpu.dimension_semantics<parallel>], iteration_bounds = array<i64: 2>, scalar_prefetch = 0 : i64, scratch_operands = 0 : i64, tpu.core_type = #tpu.core_type<tc>, window_params = [{transform_indices = @transform_0, window_bounds = array<i64: 1, 24, 192>}, {pipeline_mode = #tpu.pipeline_mode<synchronous>, transform_indices = @transform_1, window_bounds = array<i64: 192, 128>}, {pipeline_mode = #tpu.pipeline_mode<synchronous>, transform_indices = @transform_2, window_bounds = array<i64: 24, 128>}, {pipeline_mode = #tpu.pipeline_mode<synchronous>, transform_indices = @transform_3, window_bounds = array<i64: 2, 1, 128>}, {pipeline_mode = #tpu.pipeline_mode<synchronous>, transform_indices = @transform_4, window_bounds = array<i64: 2, 1, 128>}, {pipeline_mode = #tpu.pipeline_mode<synchronous>, transform_indices = @transform_5, window_bounds = array<i64: 2, 128, 768>}, {pipeline_mode = #tpu.pipeline_mode<synchronous>, transform_indices = @transform_6, window_bounds = array<i64: 2, 1, 768>}, {pipeline_mode = #tpu.pipeline_mode<synchronous>, transform_indices = @transform_7, window_bounds = array<i64: 2, 2, 128, 128>}, {pipeline_mode = #tpu.pipeline_mode<synchronous>, transform_indices = @transform_8, window_bounds = array<i64: 2, 1, 128>}, {pipeline_mode = #tpu.pipeline_mode<synchronous>, transform_indices = @transform_9, window_bounds = array<i64: 2, 1, 128>}, {pipeline_mode = #tpu.pipeline_mode<synchronous>, transform_indices = @transform_10, window_bounds = array<i64: 2, 1, 128>}, {pipeline_mode = #tpu.pipeline_mode<synchronous>, transform_indices = @transform_11, window_bounds = array<i64: 2, 128, 128>}, {pipeline_mode = #tpu.pipeline_mode<synchronous>, transform_indices = @transform_12, window_bounds = array<i64: 2, 1, 128>}, {pipeline_mode = #tpu.pipeline_mode<synchronous>, transform_indices = @transform_13, window_bounds = array<i64: 2, 128, 128>}, {pipeline_mode = #tpu.pipeline_mode<synchronous>, transform_indices = @transform_14, window_bounds = array<i64: 2, 1, 128>}, {pipeline_mode = #tpu.pipeline_mode<synchronous>, transform_indices = @transform_15, window_bounds = array<i64: 1, 128>}, {pipeline_mode = #tpu.pipeline_mode<synchronous>, transform_indices = @transform_16, window_bounds = array<i64: 1, 128>}, {pipeline_mode = #tpu.pipeline_mode<synchronous>, transform_indices = @transform_17, window_bounds = array<i64: 128, 128>}, {pipeline_mode = #tpu.pipeline_mode<synchronous>, transform_indices = @transform_18, window_bounds = array<i64: 1, 128>}, {transform_indices = @transform_19, window_bounds = array<i64: 1, 8, 128>}]} {
    %c0 = arith.constant 0 : index
    %c0_0 = arith.constant 0 : index
    %c0_1 = arith.constant 0 : index
    %0 = vector.load %arg1[%c0, %c0_0, %c0_1] : memref<1x24x192xbf16, #tpu.memory_space<vmem>>, vector<1x24x192xbf16>
    %1 = vector.shape_cast %0 : vector<1x24x192xbf16> to vector<24x192xbf16>
    %c0_2 = arith.constant 0 : index
    %c0_3 = arith.constant 0 : index
    %2 = vector.load %arg2[%c0_2, %c0_3] : memref<192x128xbf16, #tpu.memory_space<vmem>>, vector<192x128xbf16>
    %cst = arith.constant dense<0.000000e+00> : vector<24x128xf32>
    %3 = tpu.matmul %1, %2, %cst {dimension_numbers = #tpu.dot_dimension_numbers<[1], [0], [0], [1], [0, 0, 1, 1], [], []>} : vector<24x192xbf16>, vector<192x128xbf16>, vector<24x128xf32> -> vector<24x128xf32>
    %4 = vector.shape_cast %3 : vector<24x128xf32> to vector<1x24x128xf32>
    %c0_4 = arith.constant 0 : index
    %c0_5 = arith.constant 0 : index
    %5 = vector.load %arg3[%c0_4, %c0_5] : memref<24x128xf32, #tpu.memory_space<vmem>>, vector<24x128xf32>
    %6 = vector.shape_cast %5 : vector<24x128xf32> to vector<1x24x128xf32>
    %7 = arith.addf %4, %6 : vector<1x24x128xf32>
    %8 = vector.shape_cast %7 : vector<1x24x128xf32> to vector<24x128xf32>
    %9 = tpu.iota {dimensions = array<i32: 1>} : vector<24x24xi32>
    %c17_i32 = arith.constant 17 : i32
    %10 = vector.broadcast %c17_i32 : i32 to vector<24x24xi32>
    %11 = arith.cmpi sge, %9, %10 : vector<24x24xi32>
    %cst_6 = arith.constant -1.000000e+30 : f32
    %cst_7 = arith.constant 0.000000e+00 : f32
    %12 = vector.broadcast %cst_6 : f32 to vector<24x24xf32>
    %13 = vector.broadcast %cst_7 : f32 to vector<24x24xf32>
    %14 = arith.select %11, %12, %13 : vector<24x24xi1>, vector<24x24xf32>
    %c0_8 = arith.constant 0 : index
    %c0_9 = arith.constant 0 : index
    %c0_10 = arith.constant 0 : index
    %15 = vector.load %arg4[%c0_8, %c0_9, %c0_10] : memref<2x1x128xf32, #tpu.memory_space<vmem>>, vector<1x1x128xf32>
    %16 = vector.shape_cast %15 : vector<1x1x128xf32> to vector<1x128xf32>
    %c0_11 = arith.constant 0 : index
    %c0_12 = arith.constant 0 : index
    %c0_13 = arith.constant 0 : index
    %17 = vector.load %arg5[%c0_11, %c0_12, %c0_13] : memref<2x1x128xf32, #tpu.memory_space<vmem>>, vector<1x1x128xf32>
    %18 = vector.shape_cast %17 : vector<1x1x128xf32> to vector<1x128xf32>
    %cst_14 = arith.constant dense<0.000000e+00> : vector<24xf32>
    %19 = vector.multi_reduction <add>, %8, %cst_14 [1] : vector<24x128xf32> to vector<24xf32>
    %20 = vector.shape_cast %19 : vector<24xf32> to vector<24x1xf32>
    %cst_15 = arith.constant 1.280000e+02 : f32
    %21 = vector.broadcast %cst_15 : f32 to vector<24x1xf32>
    %22 = arith.divf %20, %21 : vector<24x1xf32>
    %23 = vector.broadcast %22 : vector<24x1xf32> to vector<24x128xf32>
    %24 = arith.subf %8, %23 : vector<24x128xf32>
    %25 = arith.mulf %24, %24 : vector<24x128xf32>
    %cst_16 = arith.constant dense<0.000000e+00> : vector<24xf32>
    %26 = vector.multi_reduction <add>, %25, %cst_16 [1] : vector<24x128xf32> to vector<24xf32>
    %27 = vector.shape_cast %26 : vector<24xf32> to vector<24x1xf32>
    %cst_17 = arith.constant 1.280000e+02 : f32
    %28 = vector.broadcast %cst_17 : f32 to vector<24x1xf32>
    %29 = arith.divf %27, %28 : vector<24x1xf32>
    %30 = vector.broadcast %22 : vector<24x1xf32> to vector<24x128xf32>
    %31 = arith.subf %8, %30 : vector<24x128xf32>
    %cst_18 = arith.constant 9.99999974E-6 : f32
    %32 = vector.broadcast %cst_18 : f32 to vector<24x1xf32>
    %33 = arith.addf %29, %32 : vector<24x1xf32>
    %34 = math.rsqrt %33 : vector<24x1xf32>
    %35 = vector.broadcast %34 : vector<24x1xf32> to vector<24x128xf32>
    %36 = arith.mulf %31, %35 : vector<24x128xf32>
    %37 = vector.broadcast %16 : vector<1x128xf32> to vector<24x128xf32>
    %38 = arith.mulf %36, %37 : vector<24x128xf32>
    %39 = vector.broadcast %18 : vector<1x128xf32> to vector<24x128xf32>
    %40 = arith.addf %38, %39 : vector<24x128xf32>
    %41 = arith.truncf %40 : vector<24x128xf32> to vector<24x128xbf16>
    %c0_19 = arith.constant 0 : index
    %c0_20 = arith.constant 0 : index
    %c0_21 = arith.constant 0 : index
    %42 = vector.load %arg6[%c0_19, %c0_20, %c0_21] : memref<2x128x768xbf16, #tpu.memory_space<vmem>>, vector<1x128x768xbf16>
    %43 = vector.shape_cast %42 : vector<1x128x768xbf16> to vector<128x768xbf16>
    %cst_22 = arith.constant dense<0.000000e+00> : vector<24x768xf32>
    %44 = tpu.matmul %41, %43, %cst_22 {dimension_numbers = #tpu.dot_dimension_numbers<[1], [0], [0], [1], [0, 0, 1, 1], [], []>} : vector<24x128xbf16>, vector<128x768xbf16>, vector<24x768xf32> -> vector<24x768xf32>
    %c0_23 = arith.constant 0 : index
    %c0_24 = arith.constant 0 : index
    %c0_25 = arith.constant 0 : index
    %45 = vector.load %arg7[%c0_23, %c0_24, %c0_25] : memref<2x1x768xf32, #tpu.memory_space<vmem>>, vector<1x1x768xf32>
    %46 = vector.shape_cast %45 : vector<1x1x768xf32> to vector<1x768xf32>
    %47 = vector.broadcast %46 : vector<1x768xf32> to vector<24x768xf32>
    %48 = arith.addf %44, %47 : vector<24x768xf32>
    %49 = vector.extract_strided_slice %48 {offsets = [0, 0], sizes = [24, 128], strides = [1, 1]} : vector<24x768xf32> to vector<24x128xf32>
    %50 = vector.shape_cast %49 : vector<24x128xf32> to vector<1x24x128xf32>
    %51 = arith.truncf %50 : vector<1x24x128xf32> to vector<1x24x128xbf16>
    %52 = vector.extract_strided_slice %48 {offsets = [0, 256], sizes = [24, 128], strides = [1, 1]} : vector<24x768xf32> to vector<24x128xf32>
    %53 = vector.shape_cast %52 : vector<24x128xf32> to vector<1x24x128xf32>
    %54 = arith.truncf %53 : vector<1x24x128xf32> to vector<1x24x128xbf16>
    %55 = vector.extract_strided_slice %48 {offsets = [0, 512], sizes = [24, 128], strides = [1, 1]} : vector<24x768xf32> to vector<24x128xf32>
    %56 = vector.shape_cast %55 : vector<24x128xf32> to vector<1x24x128xf32>
    %57 = arith.truncf %56 : vector<1x24x128xf32> to vector<1x24x128xbf16>
    "tpu.trace_start"() <{level = 10 : i32, message = "bqd,bkd->bqk"}> : () -> ()
    %cst_26 = arith.constant dense<0.000000e+00> : vector<1x24x24xf32>
    %58 = tpu.matmul %51, %54, %cst_26 {dimension_numbers = #tpu.dot_dimension_numbers<[2], [2], [1], [1], [0, 0, 0, 1, 1, 1], [0], [0]>} : vector<1x24x128xbf16>, vector<1x24x128xbf16>, vector<1x24x24xf32> -> vector<1x24x24xf32>
    "tpu.trace_stop"() : () -> ()
    %cst_27 = arith.constant 1.250000e-01 : f32
    %59 = vector.broadcast %cst_27 : f32 to vector<1x24x24xf32>
    %60 = arith.mulf %58, %59 : vector<1x24x24xf32>
    %61 = vector.shape_cast %14 : vector<24x24xf32> to vector<1x24x24xf32>
    %62 = arith.addf %60, %61 : vector<1x24x24xf32>
    %cst_28 = arith.constant dense<0xFF800000> : vector<1x24xf32>
    %63 = vector.multi_reduction <maximumf>, %62, %cst_28 [2] : vector<1x24x24xf32> to vector<1x24xf32>
    %64 = vector.shape_cast %63 : vector<1x24xf32> to vector<1x24x1xf32>
    %65 = vector.broadcast %64 : vector<1x24x1xf32> to vector<1x24x24xf32>
    %66 = arith.subf %62, %65 : vector<1x24x24xf32>
    %67 = math.exp %66 : vector<1x24x24xf32>
    %cst_29 = arith.constant dense<0.000000e+00> : vector<1x24xf32>
    %68 = vector.multi_reduction <add>, %67, %cst_29 [2] : vector<1x24x24xf32> to vector<1x24xf32>
    %69 = vector.shape_cast %68 : vector<1x24xf32> to vector<1x24x1xf32>
    %70 = tpu.reciprocal %69 {approx = true} : vector<1x24x1xf32> -> vector<1x24x1xf32>
    %71 = vector.broadcast %70 : vector<1x24x1xf32> to vector<1x24x24xf32>
    %72 = arith.mulf %67, %71 : vector<1x24x24xf32>
    %73 = arith.truncf %72 : vector<1x24x24xf32> to vector<1x24x24xbf16>
    "tpu.trace_start"() <{level = 10 : i32, message = "bqk,bkd->bqd"}> : () -> ()
    %cst_30 = arith.constant dense<0.000000e+00> : vector<1x24x128xf32>
    %74 = tpu.matmul %73, %57, %cst_30 {dimension_numbers = #tpu.dot_dimension_numbers<[2], [1], [1], [2], [0, 0, 0, 1, 1, 2], [0], [0]>} : vector<1x24x24xbf16>, vector<1x24x128xbf16>, vector<1x24x128xf32> -> vector<1x24x128xf32>
    "tpu.trace_stop"() : () -> ()
    %75 = vector.shape_cast %74 : vector<1x24x128xf32> to vector<24x128xf32>
    %76 = arith.truncf %75 : vector<24x128xf32> to vector<24x128xbf16>
    %c0_31 = arith.constant 0 : index
    %c0_32 = arith.constant 0 : index
    %c0_33 = arith.constant 0 : index
    %c0_34 = arith.constant 0 : index
    %77 = vector.load %arg8[%c0_31, %c0_32, %c0_33, %c0_34] : memref<2x2x128x128xbf16, #tpu.memory_space<vmem>>, vector<1x1x128x128xbf16>
    %78 = vector.shape_cast %77 : vector<1x1x128x128xbf16> to vector<128x128xbf16>
    %cst_35 = arith.constant dense<0.000000e+00> : vector<24x128xf32>
    %79 = tpu.matmul %76, %78, %cst_35 {dimension_numbers = #tpu.dot_dimension_numbers<[1], [0], [0], [1], [0, 0, 1, 1], [], []>} : vector<24x128xbf16>, vector<128x128xbf16>, vector<24x128xf32> -> vector<24x128xf32>
    %80 = vector.extract_strided_slice %48 {offsets = [0, 128], sizes = [24, 128], strides = [1, 1]} : vector<24x768xf32> to vector<24x128xf32>
    %81 = vector.shape_cast %80 : vector<24x128xf32> to vector<1x24x128xf32>
    %82 = arith.truncf %81 : vector<1x24x128xf32> to vector<1x24x128xbf16>
    %83 = vector.extract_strided_slice %48 {offsets = [0, 384], sizes = [24, 128], strides = [1, 1]} : vector<24x768xf32> to vector<24x128xf32>
    %84 = vector.shape_cast %83 : vector<24x128xf32> to vector<1x24x128xf32>
    %85 = arith.truncf %84 : vector<1x24x128xf32> to vector<1x24x128xbf16>
    %86 = vector.extract_strided_slice %48 {offsets = [0, 640], sizes = [24, 128], strides = [1, 1]} : vector<24x768xf32> to vector<24x128xf32>
    %87 = vector.shape_cast %86 : vector<24x128xf32> to vector<1x24x128xf32>
    %88 = arith.truncf %87 : vector<1x24x128xf32> to vector<1x24x128xbf16>
    "tpu.trace_start"() <{level = 10 : i32, message = "bqd,bkd->bqk"}> : () -> ()
    %cst_36 = arith.constant dense<0.000000e+00> : vector<1x24x24xf32>
    %89 = tpu.matmul %82, %85, %cst_36 {dimension_numbers = #tpu.dot_dimension_numbers<[2], [2], [1], [1], [0, 0, 0, 1, 1, 1], [0], [0]>} : vector<1x24x128xbf16>, vector<1x24x128xbf16>, vector<1x24x24xf32> -> vector<1x24x24xf32>
    "tpu.trace_stop"() : () -> ()
    %cst_37 = arith.constant 1.250000e-01 : f32
    %90 = vector.broadcast %cst_37 : f32 to vector<1x24x24xf32>
    %91 = arith.mulf %89, %90 : vector<1x24x24xf32>
    %92 = vector.shape_cast %14 : vector<24x24xf32> to vector<1x24x24xf32>
    %93 = arith.addf %91, %92 : vector<1x24x24xf32>
    %cst_38 = arith.constant dense<0xFF800000> : vector<1x24xf32>
    %94 = vector.multi_reduction <maximumf>, %93, %cst_38 [2] : vector<1x24x24xf32> to vector<1x24xf32>
    %95 = vector.shape_cast %94 : vector<1x24xf32> to vector<1x24x1xf32>
    %96 = vector.broadcast %95 : vector<1x24x1xf32> to vector<1x24x24xf32>
    %97 = arith.subf %93, %96 : vector<1x24x24xf32>
    %98 = math.exp %97 : vector<1x24x24xf32>
    %cst_39 = arith.constant dense<0.000000e+00> : vector<1x24xf32>
    %99 = vector.multi_reduction <add>, %98, %cst_39 [2] : vector<1x24x24xf32> to vector<1x24xf32>
    %100 = vector.shape_cast %99 : vector<1x24xf32> to vector<1x24x1xf32>
    %101 = tpu.reciprocal %100 {approx = true} : vector<1x24x1xf32> -> vector<1x24x1xf32>
    %102 = vector.broadcast %101 : vector<1x24x1xf32> to vector<1x24x24xf32>
    %103 = arith.mulf %98, %102 : vector<1x24x24xf32>
    %104 = arith.truncf %103 : vector<1x24x24xf32> to vector<1x24x24xbf16>
    "tpu.trace_start"() <{level = 10 : i32, message = "bqk,bkd->bqd"}> : () -> ()
    %cst_40 = arith.constant dense<0.000000e+00> : vector<1x24x128xf32>
    %105 = tpu.matmul %104, %88, %cst_40 {dimension_numbers = #tpu.dot_dimension_numbers<[2], [1], [1], [2], [0, 0, 0, 1, 1, 2], [0], [0]>} : vector<1x24x24xbf16>, vector<1x24x128xbf16>, vector<1x24x128xf32> -> vector<1x24x128xf32>
    "tpu.trace_stop"() : () -> ()
    %106 = vector.shape_cast %105 : vector<1x24x128xf32> to vector<24x128xf32>
    %107 = arith.truncf %106 : vector<24x128xf32> to vector<24x128xbf16>
    %c0_41 = arith.constant 0 : index
    %c1 = arith.constant 1 : index
    %c0_42 = arith.constant 0 : index
    %c0_43 = arith.constant 0 : index
    %108 = vector.load %arg8[%c0_41, %c1, %c0_42, %c0_43] : memref<2x2x128x128xbf16, #tpu.memory_space<vmem>>, vector<1x1x128x128xbf16>
    %109 = vector.shape_cast %108 : vector<1x1x128x128xbf16> to vector<128x128xbf16>
    %cst_44 = arith.constant dense<0.000000e+00> : vector<24x128xf32>
    %110 = tpu.matmul %107, %109, %cst_44 {dimension_numbers = #tpu.dot_dimension_numbers<[1], [0], [0], [1], [0, 0, 1, 1], [], []>} : vector<24x128xbf16>, vector<128x128xbf16>, vector<24x128xf32> -> vector<24x128xf32>
    %111 = arith.addf %79, %110 : vector<24x128xf32>
    %112 = arith.addf %8, %111 : vector<24x128xf32>
    %c0_45 = arith.constant 0 : index
    %c0_46 = arith.constant 0 : index
    %c0_47 = arith.constant 0 : index
    %113 = vector.load %arg9[%c0_45, %c0_46, %c0_47] : memref<2x1x128xf32, #tpu.memory_space<vmem>>, vector<1x1x128xf32>
    %114 = vector.shape_cast %113 : vector<1x1x128xf32> to vector<1x128xf32>
    %115 = vector.broadcast %114 : vector<1x128xf32> to vector<24x128xf32>
    %116 = arith.addf %112, %115 : vector<24x128xf32>
    %c0_48 = arith.constant 0 : index
    %c0_49 = arith.constant 0 : index
    %c0_50 = arith.constant 0 : index
    %117 = vector.load %arg10[%c0_48, %c0_49, %c0_50] : memref<2x1x128xf32, #tpu.memory_space<vmem>>, vector<1x1x128xf32>
    %118 = vector.shape_cast %117 : vector<1x1x128xf32> to vector<1x128xf32>
    %c0_51 = arith.constant 0 : index
    %c0_52 = arith.constant 0 : index
    %c0_53 = arith.constant 0 : index
    %119 = vector.load %arg11[%c0_51, %c0_52, %c0_53] : memref<2x1x128xf32, #tpu.memory_space<vmem>>, vector<1x1x128xf32>
    %120 = vector.shape_cast %119 : vector<1x1x128xf32> to vector<1x128xf32>
    %cst_54 = arith.constant dense<0.000000e+00> : vector<24xf32>
    %121 = vector.multi_reduction <add>, %116, %cst_54 [1] : vector<24x128xf32> to vector<24xf32>
    %122 = vector.shape_cast %121 : vector<24xf32> to vector<24x1xf32>
    %cst_55 = arith.constant 1.280000e+02 : f32
    %123 = vector.broadcast %cst_55 : f32 to vector<24x1xf32>
    %124 = arith.divf %122, %123 : vector<24x1xf32>
    %125 = vector.broadcast %124 : vector<24x1xf32> to vector<24x128xf32>
    %126 = arith.subf %116, %125 : vector<24x128xf32>
    %127 = arith.mulf %126, %126 : vector<24x128xf32>
    %cst_56 = arith.constant dense<0.000000e+00> : vector<24xf32>
    %128 = vector.multi_reduction <add>, %127, %cst_56 [1] : vector<24x128xf32> to vector<24xf32>
    %129 = vector.shape_cast %128 : vector<24xf32> to vector<24x1xf32>
    %cst_57 = arith.constant 1.280000e+02 : f32
    %130 = vector.broadcast %cst_57 : f32 to vector<24x1xf32>
    %131 = arith.divf %129, %130 : vector<24x1xf32>
    %132 = vector.broadcast %124 : vector<24x1xf32> to vector<24x128xf32>
    %133 = arith.subf %116, %132 : vector<24x128xf32>
    %cst_58 = arith.constant 9.99999974E-6 : f32
    %134 = vector.broadcast %cst_58 : f32 to vector<24x1xf32>
    %135 = arith.addf %131, %134 : vector<24x1xf32>
    %136 = math.rsqrt %135 : vector<24x1xf32>
    %137 = vector.broadcast %136 : vector<24x1xf32> to vector<24x128xf32>
    %138 = arith.mulf %133, %137 : vector<24x128xf32>
    %139 = vector.broadcast %118 : vector<1x128xf32> to vector<24x128xf32>
    %140 = arith.mulf %138, %139 : vector<24x128xf32>
    %141 = vector.broadcast %120 : vector<1x128xf32> to vector<24x128xf32>
    %142 = arith.addf %140, %141 : vector<24x128xf32>
    %143 = arith.truncf %142 : vector<24x128xf32> to vector<24x128xbf16>
    %c0_59 = arith.constant 0 : index
    %c0_60 = arith.constant 0 : index
    %c0_61 = arith.constant 0 : index
    %144 = vector.load %arg12[%c0_59, %c0_60, %c0_61] : memref<2x128x128xbf16, #tpu.memory_space<vmem>>, vector<1x128x128xbf16>
    %145 = vector.shape_cast %144 : vector<1x128x128xbf16> to vector<128x128xbf16>
    %cst_62 = arith.constant dense<0.000000e+00> : vector<24x128xf32>
    %146 = tpu.matmul %143, %145, %cst_62 {dimension_numbers = #tpu.dot_dimension_numbers<[1], [0], [0], [1], [0, 0, 1, 1], [], []>} : vector<24x128xbf16>, vector<128x128xbf16>, vector<24x128xf32> -> vector<24x128xf32>
    %c0_63 = arith.constant 0 : index
    %c0_64 = arith.constant 0 : index
    %c0_65 = arith.constant 0 : index
    %147 = vector.load %arg13[%c0_63, %c0_64, %c0_65] : memref<2x1x128xf32, #tpu.memory_space<vmem>>, vector<1x1x128xf32>
    %148 = vector.shape_cast %147 : vector<1x1x128xf32> to vector<1x128xf32>
    %149 = vector.broadcast %148 : vector<1x128xf32> to vector<24x128xf32>
    %150 = arith.addf %146, %149 : vector<24x128xf32>
    %cst_66 = arith.constant 5.000000e-01 : f32
    %151 = vector.broadcast %cst_66 : f32 to vector<24x128xf32>
    %152 = arith.mulf %151, %150 : vector<24x128xf32>
    %cst_67 = arith.constant 0.707106769 : f32
    %153 = vector.broadcast %cst_67 : f32 to vector<24x128xf32>
    %154 = arith.mulf %150, %153 : vector<24x128xf32>
    %155 = math.absf %154 : vector<24x128xf32>
    %cst_68 = arith.constant 0.327591091 : f32
    %156 = vector.broadcast %cst_68 : f32 to vector<24x128xf32>
    %157 = arith.mulf %156, %155 : vector<24x128xf32>
    %cst_69 = arith.constant 1.000000e+00 : f32
    %158 = vector.broadcast %cst_69 : f32 to vector<24x128xf32>
    %159 = arith.addf %158, %157 : vector<24x128xf32>
    %160 = tpu.reciprocal %159 {approx = true} : vector<24x128xf32> -> vector<24x128xf32>
    %cst_70 = arith.constant 1.06140542 : f32
    %161 = vector.broadcast %cst_70 : f32 to vector<24x128xf32>
    %162 = arith.mulf %161, %160 : vector<24x128xf32>
    %cst_71 = arith.constant -1.45315206 : f32
    %163 = vector.broadcast %cst_71 : f32 to vector<24x128xf32>
    %164 = arith.addf %162, %163 : vector<24x128xf32>
    %165 = arith.mulf %164, %160 : vector<24x128xf32>
    %cst_72 = arith.constant 1.42141378 : f32
    %166 = vector.broadcast %cst_72 : f32 to vector<24x128xf32>
    %167 = arith.addf %165, %166 : vector<24x128xf32>
    %168 = arith.mulf %167, %160 : vector<24x128xf32>
    %cst_73 = arith.constant -0.284496725 : f32
    %169 = vector.broadcast %cst_73 : f32 to vector<24x128xf32>
    %170 = arith.addf %168, %169 : vector<24x128xf32>
    %171 = arith.mulf %170, %160 : vector<24x128xf32>
    %cst_74 = arith.constant 0.254829586 : f32
    %172 = vector.broadcast %cst_74 : f32 to vector<24x128xf32>
    %173 = arith.addf %171, %172 : vector<24x128xf32>
    %174 = arith.mulf %173, %160 : vector<24x128xf32>
    %cst_75 = arith.constant 0.000000e+00 : f32
    %175 = vector.broadcast %cst_75 : f32 to vector<24x128xf32>
    %176 = arith.subf %175, %155 : vector<24x128xf32>
    %177 = arith.mulf %176, %155 : vector<24x128xf32>
    %178 = math.exp %177 : vector<24x128xf32>
    %179 = arith.mulf %174, %178 : vector<24x128xf32>
    %cst_76 = arith.constant 1.000000e+00 : f32
    %180 = vector.broadcast %cst_76 : f32 to vector<24x128xf32>
    %181 = arith.subf %180, %179 : vector<24x128xf32>
    %cst_77 = arith.constant 0.000000e+00 : f32
    %182 = vector.broadcast %cst_77 : f32 to vector<24x128xf32>
    %183 = arith.cmpf oge, %154, %182 : vector<24x128xf32>
    %cst_78 = arith.constant 0.000000e+00 : f32
    %184 = vector.broadcast %cst_78 : f32 to vector<24x128xf32>
    %185 = arith.subf %184, %181 : vector<24x128xf32>
    %186 = arith.select %183, %181, %185 : vector<24x128xi1>, vector<24x128xf32>
    %cst_79 = arith.constant 1.000000e+00 : f32
    %187 = vector.broadcast %cst_79 : f32 to vector<24x128xf32>
    %188 = arith.addf %187, %186 : vector<24x128xf32>
    %189 = arith.mulf %152, %188 : vector<24x128xf32>
    %190 = arith.truncf %189 : vector<24x128xf32> to vector<24x128xbf16>
    %c0_80 = arith.constant 0 : index
    %c0_81 = arith.constant 0 : index
    %c0_82 = arith.constant 0 : index
    %191 = vector.load %arg14[%c0_80, %c0_81, %c0_82] : memref<2x128x128xbf16, #tpu.memory_space<vmem>>, vector<1x128x128xbf16>
    %192 = vector.shape_cast %191 : vector<1x128x128xbf16> to vector<128x128xbf16>
    %cst_83 = arith.constant dense<0.000000e+00> : vector<24x128xf32>
    %193 = tpu.matmul %190, %192, %cst_83 {dimension_numbers = #tpu.dot_dimension_numbers<[1], [0], [0], [1], [0, 0, 1, 1], [], []>} : vector<24x128xbf16>, vector<128x128xbf16>, vector<24x128xf32> -> vector<24x128xf32>
    %c0_84 = arith.constant 0 : index
    %c0_85 = arith.constant 0 : index
    %c0_86 = arith.constant 0 : index
    %194 = vector.load %arg15[%c0_84, %c0_85, %c0_86] : memref<2x1x128xf32, #tpu.memory_space<vmem>>, vector<1x1x128xf32>
    %195 = vector.shape_cast %194 : vector<1x1x128xf32> to vector<1x128xf32>
    %196 = vector.broadcast %195 : vector<1x128xf32> to vector<24x128xf32>
    %197 = arith.addf %193, %196 : vector<24x128xf32>
    %198 = arith.addf %116, %197 : vector<24x128xf32>
    %c1_87 = arith.constant 1 : index
    %c0_88 = arith.constant 0 : index
    %c0_89 = arith.constant 0 : index
    %199 = vector.load %arg4[%c1_87, %c0_88, %c0_89] : memref<2x1x128xf32, #tpu.memory_space<vmem>>, vector<1x1x128xf32>
    %200 = vector.shape_cast %199 : vector<1x1x128xf32> to vector<1x128xf32>
    %c1_90 = arith.constant 1 : index
    %c0_91 = arith.constant 0 : index
    %c0_92 = arith.constant 0 : index
    %201 = vector.load %arg5[%c1_90, %c0_91, %c0_92] : memref<2x1x128xf32, #tpu.memory_space<vmem>>, vector<1x1x128xf32>
    %202 = vector.shape_cast %201 : vector<1x1x128xf32> to vector<1x128xf32>
    %cst_93 = arith.constant dense<0.000000e+00> : vector<24xf32>
    %203 = vector.multi_reduction <add>, %198, %cst_93 [1] : vector<24x128xf32> to vector<24xf32>
    %204 = vector.shape_cast %203 : vector<24xf32> to vector<24x1xf32>
    %cst_94 = arith.constant 1.280000e+02 : f32
    %205 = vector.broadcast %cst_94 : f32 to vector<24x1xf32>
    %206 = arith.divf %204, %205 : vector<24x1xf32>
    %207 = vector.broadcast %206 : vector<24x1xf32> to vector<24x128xf32>
    %208 = arith.subf %198, %207 : vector<24x128xf32>
    %209 = arith.mulf %208, %208 : vector<24x128xf32>
    %cst_95 = arith.constant dense<0.000000e+00> : vector<24xf32>
    %210 = vector.multi_reduction <add>, %209, %cst_95 [1] : vector<24x128xf32> to vector<24xf32>
    %211 = vector.shape_cast %210 : vector<24xf32> to vector<24x1xf32>
    %cst_96 = arith.constant 1.280000e+02 : f32
    %212 = vector.broadcast %cst_96 : f32 to vector<24x1xf32>
    %213 = arith.divf %211, %212 : vector<24x1xf32>
    %214 = vector.broadcast %206 : vector<24x1xf32> to vector<24x128xf32>
    %215 = arith.subf %198, %214 : vector<24x128xf32>
    %cst_97 = arith.constant 9.99999974E-6 : f32
    %216 = vector.broadcast %cst_97 : f32 to vector<24x1xf32>
    %217 = arith.addf %213, %216 : vector<24x1xf32>
    %218 = math.rsqrt %217 : vector<24x1xf32>
    %219 = vector.broadcast %218 : vector<24x1xf32> to vector<24x128xf32>
    %220 = arith.mulf %215, %219 : vector<24x128xf32>
    %221 = vector.broadcast %200 : vector<1x128xf32> to vector<24x128xf32>
    %222 = arith.mulf %220, %221 : vector<24x128xf32>
    %223 = vector.broadcast %202 : vector<1x128xf32> to vector<24x128xf32>
    %224 = arith.addf %222, %223 : vector<24x128xf32>
    %225 = arith.truncf %224 : vector<24x128xf32> to vector<24x128xbf16>
    %c1_98 = arith.constant 1 : index
    %c0_99 = arith.constant 0 : index
    %c0_100 = arith.constant 0 : index
    %226 = vector.load %arg6[%c1_98, %c0_99, %c0_100] : memref<2x128x768xbf16, #tpu.memory_space<vmem>>, vector<1x128x768xbf16>
    %227 = vector.shape_cast %226 : vector<1x128x768xbf16> to vector<128x768xbf16>
    %cst_101 = arith.constant dense<0.000000e+00> : vector<24x768xf32>
    %228 = tpu.matmul %225, %227, %cst_101 {dimension_numbers = #tpu.dot_dimension_numbers<[1], [0], [0], [1], [0, 0, 1, 1], [], []>} : vector<24x128xbf16>, vector<128x768xbf16>, vector<24x768xf32> -> vector<24x768xf32>
    %c1_102 = arith.constant 1 : index
    %c0_103 = arith.constant 0 : index
    %c0_104 = arith.constant 0 : index
    %229 = vector.load %arg7[%c1_102, %c0_103, %c0_104] : memref<2x1x768xf32, #tpu.memory_space<vmem>>, vector<1x1x768xf32>
    %230 = vector.shape_cast %229 : vector<1x1x768xf32> to vector<1x768xf32>
    %231 = vector.broadcast %230 : vector<1x768xf32> to vector<24x768xf32>
    %232 = arith.addf %228, %231 : vector<24x768xf32>
    %233 = vector.extract_strided_slice %232 {offsets = [0, 0], sizes = [24, 128], strides = [1, 1]} : vector<24x768xf32> to vector<24x128xf32>
    %234 = vector.shape_cast %233 : vector<24x128xf32> to vector<1x24x128xf32>
    %235 = arith.truncf %234 : vector<1x24x128xf32> to vector<1x24x128xbf16>
    %236 = vector.extract_strided_slice %232 {offsets = [0, 256], sizes = [24, 128], strides = [1, 1]} : vector<24x768xf32> to vector<24x128xf32>
    %237 = vector.shape_cast %236 : vector<24x128xf32> to vector<1x24x128xf32>
    %238 = arith.truncf %237 : vector<1x24x128xf32> to vector<1x24x128xbf16>
    %239 = vector.extract_strided_slice %232 {offsets = [0, 512], sizes = [24, 128], strides = [1, 1]} : vector<24x768xf32> to vector<24x128xf32>
    %240 = vector.shape_cast %239 : vector<24x128xf32> to vector<1x24x128xf32>
    %241 = arith.truncf %240 : vector<1x24x128xf32> to vector<1x24x128xbf16>
    "tpu.trace_start"() <{level = 10 : i32, message = "bqd,bkd->bqk"}> : () -> ()
    %cst_105 = arith.constant dense<0.000000e+00> : vector<1x24x24xf32>
    %242 = tpu.matmul %235, %238, %cst_105 {dimension_numbers = #tpu.dot_dimension_numbers<[2], [2], [1], [1], [0, 0, 0, 1, 1, 1], [0], [0]>} : vector<1x24x128xbf16>, vector<1x24x128xbf16>, vector<1x24x24xf32> -> vector<1x24x24xf32>
    "tpu.trace_stop"() : () -> ()
    %cst_106 = arith.constant 1.250000e-01 : f32
    %243 = vector.broadcast %cst_106 : f32 to vector<1x24x24xf32>
    %244 = arith.mulf %242, %243 : vector<1x24x24xf32>
    %245 = vector.shape_cast %14 : vector<24x24xf32> to vector<1x24x24xf32>
    %246 = arith.addf %244, %245 : vector<1x24x24xf32>
    %cst_107 = arith.constant dense<0xFF800000> : vector<1x24xf32>
    %247 = vector.multi_reduction <maximumf>, %246, %cst_107 [2] : vector<1x24x24xf32> to vector<1x24xf32>
    %248 = vector.shape_cast %247 : vector<1x24xf32> to vector<1x24x1xf32>
    %249 = vector.broadcast %248 : vector<1x24x1xf32> to vector<1x24x24xf32>
    %250 = arith.subf %246, %249 : vector<1x24x24xf32>
    %251 = math.exp %250 : vector<1x24x24xf32>
    %cst_108 = arith.constant dense<0.000000e+00> : vector<1x24xf32>
    %252 = vector.multi_reduction <add>, %251, %cst_108 [2] : vector<1x24x24xf32> to vector<1x24xf32>
    %253 = vector.shape_cast %252 : vector<1x24xf32> to vector<1x24x1xf32>
    %254 = tpu.reciprocal %253 {approx = true} : vector<1x24x1xf32> -> vector<1x24x1xf32>
    %255 = vector.broadcast %254 : vector<1x24x1xf32> to vector<1x24x24xf32>
    %256 = arith.mulf %251, %255 : vector<1x24x24xf32>
    %257 = arith.truncf %256 : vector<1x24x24xf32> to vector<1x24x24xbf16>
    "tpu.trace_start"() <{level = 10 : i32, message = "bqk,bkd->bqd"}> : () -> ()
    %cst_109 = arith.constant dense<0.000000e+00> : vector<1x24x128xf32>
    %258 = tpu.matmul %257, %241, %cst_109 {dimension_numbers = #tpu.dot_dimension_numbers<[2], [1], [1], [2], [0, 0, 0, 1, 1, 2], [0], [0]>} : vector<1x24x24xbf16>, vector<1x24x128xbf16>, vector<1x24x128xf32> -> vector<1x24x128xf32>
    "tpu.trace_stop"() : () -> ()
    %259 = vector.shape_cast %258 : vector<1x24x128xf32> to vector<24x128xf32>
    %260 = arith.truncf %259 : vector<24x128xf32> to vector<24x128xbf16>
    %c1_110 = arith.constant 1 : index
    %c0_111 = arith.constant 0 : index
    %c0_112 = arith.constant 0 : index
    %c0_113 = arith.constant 0 : index
    %261 = vector.load %arg8[%c1_110, %c0_111, %c0_112, %c0_113] : memref<2x2x128x128xbf16, #tpu.memory_space<vmem>>, vector<1x1x128x128xbf16>
    %262 = vector.shape_cast %261 : vector<1x1x128x128xbf16> to vector<128x128xbf16>
    %cst_114 = arith.constant dense<0.000000e+00> : vector<24x128xf32>
    %263 = tpu.matmul %260, %262, %cst_114 {dimension_numbers = #tpu.dot_dimension_numbers<[1], [0], [0], [1], [0, 0, 1, 1], [], []>} : vector<24x128xbf16>, vector<128x128xbf16>, vector<24x128xf32> -> vector<24x128xf32>
    %264 = vector.extract_strided_slice %232 {offsets = [0, 128], sizes = [24, 128], strides = [1, 1]} : vector<24x768xf32> to vector<24x128xf32>
    %265 = vector.shape_cast %264 : vector<24x128xf32> to vector<1x24x128xf32>
    %266 = arith.truncf %265 : vector<1x24x128xf32> to vector<1x24x128xbf16>
    %267 = vector.extract_strided_slice %232 {offsets = [0, 384], sizes = [24, 128], strides = [1, 1]} : vector<24x768xf32> to vector<24x128xf32>
    %268 = vector.shape_cast %267 : vector<24x128xf32> to vector<1x24x128xf32>
    %269 = arith.truncf %268 : vector<1x24x128xf32> to vector<1x24x128xbf16>
    %270 = vector.extract_strided_slice %232 {offsets = [0, 640], sizes = [24, 128], strides = [1, 1]} : vector<24x768xf32> to vector<24x128xf32>
    %271 = vector.shape_cast %270 : vector<24x128xf32> to vector<1x24x128xf32>
    %272 = arith.truncf %271 : vector<1x24x128xf32> to vector<1x24x128xbf16>
    "tpu.trace_start"() <{level = 10 : i32, message = "bqd,bkd->bqk"}> : () -> ()
    %cst_115 = arith.constant dense<0.000000e+00> : vector<1x24x24xf32>
    %273 = tpu.matmul %266, %269, %cst_115 {dimension_numbers = #tpu.dot_dimension_numbers<[2], [2], [1], [1], [0, 0, 0, 1, 1, 1], [0], [0]>} : vector<1x24x128xbf16>, vector<1x24x128xbf16>, vector<1x24x24xf32> -> vector<1x24x24xf32>
    "tpu.trace_stop"() : () -> ()
    %cst_116 = arith.constant 1.250000e-01 : f32
    %274 = vector.broadcast %cst_116 : f32 to vector<1x24x24xf32>
    %275 = arith.mulf %273, %274 : vector<1x24x24xf32>
    %276 = vector.shape_cast %14 : vector<24x24xf32> to vector<1x24x24xf32>
    %277 = arith.addf %275, %276 : vector<1x24x24xf32>
    %cst_117 = arith.constant dense<0xFF800000> : vector<1x24xf32>
    %278 = vector.multi_reduction <maximumf>, %277, %cst_117 [2] : vector<1x24x24xf32> to vector<1x24xf32>
    %279 = vector.shape_cast %278 : vector<1x24xf32> to vector<1x24x1xf32>
    %280 = vector.broadcast %279 : vector<1x24x1xf32> to vector<1x24x24xf32>
    %281 = arith.subf %277, %280 : vector<1x24x24xf32>
    %282 = math.exp %281 : vector<1x24x24xf32>
    %cst_118 = arith.constant dense<0.000000e+00> : vector<1x24xf32>
    %283 = vector.multi_reduction <add>, %282, %cst_118 [2] : vector<1x24x24xf32> to vector<1x24xf32>
    %284 = vector.shape_cast %283 : vector<1x24xf32> to vector<1x24x1xf32>
    %285 = tpu.reciprocal %284 {approx = true} : vector<1x24x1xf32> -> vector<1x24x1xf32>
    %286 = vector.broadcast %285 : vector<1x24x1xf32> to vector<1x24x24xf32>
    %287 = arith.mulf %282, %286 : vector<1x24x24xf32>
    %288 = arith.truncf %287 : vector<1x24x24xf32> to vector<1x24x24xbf16>
    "tpu.trace_start"() <{level = 10 : i32, message = "bqk,bkd->bqd"}> : () -> ()
    %cst_119 = arith.constant dense<0.000000e+00> : vector<1x24x128xf32>
    %289 = tpu.matmul %288, %272, %cst_119 {dimension_numbers = #tpu.dot_dimension_numbers<[2], [1], [1], [2], [0, 0, 0, 1, 1, 2], [0], [0]>} : vector<1x24x24xbf16>, vector<1x24x128xbf16>, vector<1x24x128xf32> -> vector<1x24x128xf32>
    "tpu.trace_stop"() : () -> ()
    %290 = vector.shape_cast %289 : vector<1x24x128xf32> to vector<24x128xf32>
    %291 = arith.truncf %290 : vector<24x128xf32> to vector<24x128xbf16>
    %c1_120 = arith.constant 1 : index
    %c1_121 = arith.constant 1 : index
    %c0_122 = arith.constant 0 : index
    %c0_123 = arith.constant 0 : index
    %292 = vector.load %arg8[%c1_120, %c1_121, %c0_122, %c0_123] : memref<2x2x128x128xbf16, #tpu.memory_space<vmem>>, vector<1x1x128x128xbf16>
    %293 = vector.shape_cast %292 : vector<1x1x128x128xbf16> to vector<128x128xbf16>
    %cst_124 = arith.constant dense<0.000000e+00> : vector<24x128xf32>
    %294 = tpu.matmul %291, %293, %cst_124 {dimension_numbers = #tpu.dot_dimension_numbers<[1], [0], [0], [1], [0, 0, 1, 1], [], []>} : vector<24x128xbf16>, vector<128x128xbf16>, vector<24x128xf32> -> vector<24x128xf32>
    %295 = arith.addf %263, %294 : vector<24x128xf32>
    %296 = arith.addf %198, %295 : vector<24x128xf32>
    %c1_125 = arith.constant 1 : index
    %c0_126 = arith.constant 0 : index
    %c0_127 = arith.constant 0 : index
    %297 = vector.load %arg9[%c1_125, %c0_126, %c0_127] : memref<2x1x128xf32, #tpu.memory_space<vmem>>, vector<1x1x128xf32>
    %298 = vector.shape_cast %297 : vector<1x1x128xf32> to vector<1x128xf32>
    %299 = vector.broadcast %298 : vector<1x128xf32> to vector<24x128xf32>
    %300 = arith.addf %296, %299 : vector<24x128xf32>
    %c1_128 = arith.constant 1 : index
    %c0_129 = arith.constant 0 : index
    %c0_130 = arith.constant 0 : index
    %301 = vector.load %arg10[%c1_128, %c0_129, %c0_130] : memref<2x1x128xf32, #tpu.memory_space<vmem>>, vector<1x1x128xf32>
    %302 = vector.shape_cast %301 : vector<1x1x128xf32> to vector<1x128xf32>
    %c1_131 = arith.constant 1 : index
    %c0_132 = arith.constant 0 : index
    %c0_133 = arith.constant 0 : index
    %303 = vector.load %arg11[%c1_131, %c0_132, %c0_133] : memref<2x1x128xf32, #tpu.memory_space<vmem>>, vector<1x1x128xf32>
    %304 = vector.shape_cast %303 : vector<1x1x128xf32> to vector<1x128xf32>
    %cst_134 = arith.constant dense<0.000000e+00> : vector<24xf32>
    %305 = vector.multi_reduction <add>, %300, %cst_134 [1] : vector<24x128xf32> to vector<24xf32>
    %306 = vector.shape_cast %305 : vector<24xf32> to vector<24x1xf32>
    %cst_135 = arith.constant 1.280000e+02 : f32
    %307 = vector.broadcast %cst_135 : f32 to vector<24x1xf32>
    %308 = arith.divf %306, %307 : vector<24x1xf32>
    %309 = vector.broadcast %308 : vector<24x1xf32> to vector<24x128xf32>
    %310 = arith.subf %300, %309 : vector<24x128xf32>
    %311 = arith.mulf %310, %310 : vector<24x128xf32>
    %cst_136 = arith.constant dense<0.000000e+00> : vector<24xf32>
    %312 = vector.multi_reduction <add>, %311, %cst_136 [1] : vector<24x128xf32> to vector<24xf32>
    %313 = vector.shape_cast %312 : vector<24xf32> to vector<24x1xf32>
    %cst_137 = arith.constant 1.280000e+02 : f32
    %314 = vector.broadcast %cst_137 : f32 to vector<24x1xf32>
    %315 = arith.divf %313, %314 : vector<24x1xf32>
    %316 = vector.broadcast %308 : vector<24x1xf32> to vector<24x128xf32>
    %317 = arith.subf %300, %316 : vector<24x128xf32>
    %cst_138 = arith.constant 9.99999974E-6 : f32
    %318 = vector.broadcast %cst_138 : f32 to vector<24x1xf32>
    %319 = arith.addf %315, %318 : vector<24x1xf32>
    %320 = math.rsqrt %319 : vector<24x1xf32>
    %321 = vector.broadcast %320 : vector<24x1xf32> to vector<24x128xf32>
    %322 = arith.mulf %317, %321 : vector<24x128xf32>
    %323 = vector.broadcast %302 : vector<1x128xf32> to vector<24x128xf32>
    %324 = arith.mulf %322, %323 : vector<24x128xf32>
    %325 = vector.broadcast %304 : vector<1x128xf32> to vector<24x128xf32>
    %326 = arith.addf %324, %325 : vector<24x128xf32>
    %327 = arith.truncf %326 : vector<24x128xf32> to vector<24x128xbf16>
    %c1_139 = arith.constant 1 : index
    %c0_140 = arith.constant 0 : index
    %c0_141 = arith.constant 0 : index
    %328 = vector.load %arg12[%c1_139, %c0_140, %c0_141] : memref<2x128x128xbf16, #tpu.memory_space<vmem>>, vector<1x128x128xbf16>
    %329 = vector.shape_cast %328 : vector<1x128x128xbf16> to vector<128x128xbf16>
    %cst_142 = arith.constant dense<0.000000e+00> : vector<24x128xf32>
    %330 = tpu.matmul %327, %329, %cst_142 {dimension_numbers = #tpu.dot_dimension_numbers<[1], [0], [0], [1], [0, 0, 1, 1], [], []>} : vector<24x128xbf16>, vector<128x128xbf16>, vector<24x128xf32> -> vector<24x128xf32>
    %c1_143 = arith.constant 1 : index
    %c0_144 = arith.constant 0 : index
    %c0_145 = arith.constant 0 : index
    %331 = vector.load %arg13[%c1_143, %c0_144, %c0_145] : memref<2x1x128xf32, #tpu.memory_space<vmem>>, vector<1x1x128xf32>
    %332 = vector.shape_cast %331 : vector<1x1x128xf32> to vector<1x128xf32>
    %333 = vector.broadcast %332 : vector<1x128xf32> to vector<24x128xf32>
    %334 = arith.addf %330, %333 : vector<24x128xf32>
    %cst_146 = arith.constant 5.000000e-01 : f32
    %335 = vector.broadcast %cst_146 : f32 to vector<24x128xf32>
    %336 = arith.mulf %335, %334 : vector<24x128xf32>
    %cst_147 = arith.constant 0.707106769 : f32
    %337 = vector.broadcast %cst_147 : f32 to vector<24x128xf32>
    %338 = arith.mulf %334, %337 : vector<24x128xf32>
    %339 = math.absf %338 : vector<24x128xf32>
    %cst_148 = arith.constant 0.327591091 : f32
    %340 = vector.broadcast %cst_148 : f32 to vector<24x128xf32>
    %341 = arith.mulf %340, %339 : vector<24x128xf32>
    %cst_149 = arith.constant 1.000000e+00 : f32
    %342 = vector.broadcast %cst_149 : f32 to vector<24x128xf32>
    %343 = arith.addf %342, %341 : vector<24x128xf32>
    %344 = tpu.reciprocal %343 {approx = true} : vector<24x128xf32> -> vector<24x128xf32>
    %cst_150 = arith.constant 1.06140542 : f32
    %345 = vector.broadcast %cst_150 : f32 to vector<24x128xf32>
    %346 = arith.mulf %345, %344 : vector<24x128xf32>
    %cst_151 = arith.constant -1.45315206 : f32
    %347 = vector.broadcast %cst_151 : f32 to vector<24x128xf32>
    %348 = arith.addf %346, %347 : vector<24x128xf32>
    %349 = arith.mulf %348, %344 : vector<24x128xf32>
    %cst_152 = arith.constant 1.42141378 : f32
    %350 = vector.broadcast %cst_152 : f32 to vector<24x128xf32>
    %351 = arith.addf %349, %350 : vector<24x128xf32>
    %352 = arith.mulf %351, %344 : vector<24x128xf32>
    %cst_153 = arith.constant -0.284496725 : f32
    %353 = vector.broadcast %cst_153 : f32 to vector<24x128xf32>
    %354 = arith.addf %352, %353 : vector<24x128xf32>
    %355 = arith.mulf %354, %344 : vector<24x128xf32>
    %cst_154 = arith.constant 0.254829586 : f32
    %356 = vector.broadcast %cst_154 : f32 to vector<24x128xf32>
    %357 = arith.addf %355, %356 : vector<24x128xf32>
    %358 = arith.mulf %357, %344 : vector<24x128xf32>
    %cst_155 = arith.constant 0.000000e+00 : f32
    %359 = vector.broadcast %cst_155 : f32 to vector<24x128xf32>
    %360 = arith.subf %359, %339 : vector<24x128xf32>
    %361 = arith.mulf %360, %339 : vector<24x128xf32>
    %362 = math.exp %361 : vector<24x128xf32>
    %363 = arith.mulf %358, %362 : vector<24x128xf32>
    %cst_156 = arith.constant 1.000000e+00 : f32
    %364 = vector.broadcast %cst_156 : f32 to vector<24x128xf32>
    %365 = arith.subf %364, %363 : vector<24x128xf32>
    %cst_157 = arith.constant 0.000000e+00 : f32
    %366 = vector.broadcast %cst_157 : f32 to vector<24x128xf32>
    %367 = arith.cmpf oge, %338, %366 : vector<24x128xf32>
    %cst_158 = arith.constant 0.000000e+00 : f32
    %368 = vector.broadcast %cst_158 : f32 to vector<24x128xf32>
    %369 = arith.subf %368, %365 : vector<24x128xf32>
    %370 = arith.select %367, %365, %369 : vector<24x128xi1>, vector<24x128xf32>
    %cst_159 = arith.constant 1.000000e+00 : f32
    %371 = vector.broadcast %cst_159 : f32 to vector<24x128xf32>
    %372 = arith.addf %371, %370 : vector<24x128xf32>
    %373 = arith.mulf %336, %372 : vector<24x128xf32>
    %374 = arith.truncf %373 : vector<24x128xf32> to vector<24x128xbf16>
    %c1_160 = arith.constant 1 : index
    %c0_161 = arith.constant 0 : index
    %c0_162 = arith.constant 0 : index
    %375 = vector.load %arg14[%c1_160, %c0_161, %c0_162] : memref<2x128x128xbf16, #tpu.memory_space<vmem>>, vector<1x128x128xbf16>
    %376 = vector.shape_cast %375 : vector<1x128x128xbf16> to vector<128x128xbf16>
    %cst_163 = arith.constant dense<0.000000e+00> : vector<24x128xf32>
    %377 = tpu.matmul %374, %376, %cst_163 {dimension_numbers = #tpu.dot_dimension_numbers<[1], [0], [0], [1], [0, 0, 1, 1], [], []>} : vector<24x128xbf16>, vector<128x128xbf16>, vector<24x128xf32> -> vector<24x128xf32>
    %c1_164 = arith.constant 1 : index
    %c0_165 = arith.constant 0 : index
    %c0_166 = arith.constant 0 : index
    %378 = vector.load %arg15[%c1_164, %c0_165, %c0_166] : memref<2x1x128xf32, #tpu.memory_space<vmem>>, vector<1x1x128xf32>
    %379 = vector.shape_cast %378 : vector<1x1x128xf32> to vector<1x128xf32>
    %380 = vector.broadcast %379 : vector<1x128xf32> to vector<24x128xf32>
    %381 = arith.addf %377, %380 : vector<24x128xf32>
    %382 = arith.addf %300, %381 : vector<24x128xf32>
    %383 = vector.shape_cast %382 : vector<24x128xf32> to vector<1x24x128xf32>
    %384 = vector.extract_strided_slice %383 {offsets = [0, 0, 0], sizes = [1, 8, 128], strides = [1, 1, 1]} : vector<1x24x128xf32> to vector<1x8x128xf32>
    %385 = vector.shape_cast %384 : vector<1x8x128xf32> to vector<8x128xf32>
    %c0_167 = arith.constant 0 : index
    %c0_168 = arith.constant 0 : index
    %386 = vector.load %arg16[%c0_167, %c0_168] : memref<1x128xf32, #tpu.memory_space<vmem>>, vector<1x128xf32>
    %c0_169 = arith.constant 0 : index
    %c0_170 = arith.constant 0 : index
    %387 = vector.load %arg17[%c0_169, %c0_170] : memref<1x128xf32, #tpu.memory_space<vmem>>, vector<1x128xf32>
    %cst_171 = arith.constant dense<0.000000e+00> : vector<8xf32>
    %388 = vector.multi_reduction <add>, %385, %cst_171 [1] : vector<8x128xf32> to vector<8xf32>
    %389 = vector.shape_cast %388 : vector<8xf32> to vector<8x1xf32>
    %cst_172 = arith.constant 1.280000e+02 : f32
    %390 = vector.broadcast %cst_172 : f32 to vector<8x1xf32>
    %391 = arith.divf %389, %390 : vector<8x1xf32>
    %392 = vector.broadcast %391 : vector<8x1xf32> to vector<8x128xf32>
    %393 = arith.subf %385, %392 : vector<8x128xf32>
    %394 = arith.mulf %393, %393 : vector<8x128xf32>
    %cst_173 = arith.constant dense<0.000000e+00> : vector<8xf32>
    %395 = vector.multi_reduction <add>, %394, %cst_173 [1] : vector<8x128xf32> to vector<8xf32>
    %396 = vector.shape_cast %395 : vector<8xf32> to vector<8x1xf32>
    %cst_174 = arith.constant 1.280000e+02 : f32
    %397 = vector.broadcast %cst_174 : f32 to vector<8x1xf32>
    %398 = arith.divf %396, %397 : vector<8x1xf32>
    %399 = vector.broadcast %391 : vector<8x1xf32> to vector<8x128xf32>
    %400 = arith.subf %385, %399 : vector<8x128xf32>
    %cst_175 = arith.constant 9.99999974E-6 : f32
    %401 = vector.broadcast %cst_175 : f32 to vector<8x1xf32>
    %402 = arith.addf %398, %401 : vector<8x1xf32>
    %403 = math.rsqrt %402 : vector<8x1xf32>
    %404 = vector.broadcast %403 : vector<8x1xf32> to vector<8x128xf32>
    %405 = arith.mulf %400, %404 : vector<8x128xf32>
    %406 = vector.broadcast %386 : vector<1x128xf32> to vector<8x128xf32>
    %407 = arith.mulf %405, %406 : vector<8x128xf32>
    %408 = vector.broadcast %387 : vector<1x128xf32> to vector<8x128xf32>
    %409 = arith.addf %407, %408 : vector<8x128xf32>
    %410 = arith.truncf %409 : vector<8x128xf32> to vector<8x128xbf16>
    %c0_176 = arith.constant 0 : index
    %c0_177 = arith.constant 0 : index
    %411 = vector.load %arg18[%c0_176, %c0_177] : memref<128x128xbf16, #tpu.memory_space<vmem>>, vector<128x128xbf16>
    %cst_178 = arith.constant dense<0.000000e+00> : vector<8x128xf32>
    %412 = tpu.matmul %410, %411, %cst_178 {dimension_numbers = #tpu.dot_dimension_numbers<[1], [0], [0], [1], [0, 0, 1, 1], [], []>} : vector<8x128xbf16>, vector<128x128xbf16>, vector<8x128xf32> -> vector<8x128xf32>
    %c0_179 = arith.constant 0 : index
    %c0_180 = arith.constant 0 : index
    %413 = vector.load %arg19[%c0_179, %c0_180] : memref<1x128xf32, #tpu.memory_space<vmem>>, vector<1x128xf32>
    %414 = vector.broadcast %413 : vector<1x128xf32> to vector<8x128xf32>
    %415 = arith.addf %412, %414 : vector<8x128xf32>
    %c0_181 = arith.constant 0 : index
    %c0_182 = arith.constant 0 : index
    %c0_183 = arith.constant 0 : index
    %416 = vector.load %arg20[%c0_181, %c0_182, %c0_183] : memref<1x8x128xf32, #tpu.memory_space<vmem>>, vector<1x8x128xf32>
    %417 = vector.shape_cast %416 : vector<1x8x128xf32> to vector<8x128xf32>
    %418 = vector.shape_cast %415 : vector<8x128xf32> to vector<1x8x128xf32>
    tpu.vector_store %arg20[%c0_181, %c0_182, %c0_183], %418 {strides = array<i32>} : memref<1x8x128xf32, #tpu.memory_space<vmem>>, vector<1x8x128xf32>,
    return
  }
  func.func @transform_0(%arg0: i32) -> (i32, i32, i32) {
    %c0_i32 = arith.constant 0 : i32
    %c0_i32_0 = arith.constant 0 : i32
    %c0_i32_1 = arith.constant 0 : i32
    return %arg0, %c0_i32, %c0_i32_0 : i32, i32, i32
  }
  func.func @transform_1(%arg0: i32) -> (i32, i32) {
    %c0_i32 = arith.constant 0 : i32
    %c0_i32_0 = arith.constant 0 : i32
    %c0_i32_1 = arith.constant 0 : i32
    return %c0_i32, %c0_i32_0 : i32, i32
  }
  func.func @transform_2(%arg0: i32) -> (i32, i32) {
    %c0_i32 = arith.constant 0 : i32
    %c0_i32_0 = arith.constant 0 : i32
    %c0_i32_1 = arith.constant 0 : i32
    return %c0_i32, %c0_i32_0 : i32, i32
  }
  func.func @transform_3(%arg0: i32) -> (i32, i32, i32) {
    %c0_i32 = arith.constant 0 : i32
    %c0_i32_0 = arith.constant 0 : i32
    %c0_i32_1 = arith.constant 0 : i32
    %c0_i32_2 = arith.constant 0 : i32
    return %c0_i32, %c0_i32_0, %c0_i32_1 : i32, i32, i32
  }
  func.func @transform_4(%arg0: i32) -> (i32, i32, i32) {
    %c0_i32 = arith.constant 0 : i32
    %c0_i32_0 = arith.constant 0 : i32
    %c0_i32_1 = arith.constant 0 : i32
    %c0_i32_2 = arith.constant 0 : i32
    return %c0_i32, %c0_i32_0, %c0_i32_1 : i32, i32, i32
  }
  func.func @transform_5(%arg0: i32) -> (i32, i32, i32) {
    %c0_i32 = arith.constant 0 : i32
    %c0_i32_0 = arith.constant 0 : i32
    %c0_i32_1 = arith.constant 0 : i32
    %c0_i32_2 = arith.constant 0 : i32
    return %c0_i32, %c0_i32_0, %c0_i32_1 : i32, i32, i32
  }
  func.func @transform_6(%arg0: i32) -> (i32, i32, i32) {
    %c0_i32 = arith.constant 0 : i32
    %c0_i32_0 = arith.constant 0 : i32
    %c0_i32_1 = arith.constant 0 : i32
    %c0_i32_2 = arith.constant 0 : i32
    return %c0_i32, %c0_i32_0, %c0_i32_1 : i32, i32, i32
  }
  func.func @transform_7(%arg0: i32) -> (i32, i32, i32, i32) {
    %c0_i32 = arith.constant 0 : i32
    %c0_i32_0 = arith.constant 0 : i32
    %c0_i32_1 = arith.constant 0 : i32
    %c0_i32_2 = arith.constant 0 : i32
    %c0_i32_3 = arith.constant 0 : i32
    return %c0_i32, %c0_i32_0, %c0_i32_1, %c0_i32_2 : i32, i32, i32, i32
  }
  func.func @transform_8(%arg0: i32) -> (i32, i32, i32) {
    %c0_i32 = arith.constant 0 : i32
    %c0_i32_0 = arith.constant 0 : i32
    %c0_i32_1 = arith.constant 0 : i32
    %c0_i32_2 = arith.constant 0 : i32
    return %c0_i32, %c0_i32_0, %c0_i32_1 : i32, i32, i32
  }
  func.func @transform_9(%arg0: i32) -> (i32, i32, i32) {
    %c0_i32 = arith.constant 0 : i32
    %c0_i32_0 = arith.constant 0 : i32
    %c0_i32_1 = arith.constant 0 : i32
    %c0_i32_2 = arith.constant 0 : i32
    return %c0_i32, %c0_i32_0, %c0_i32_1 : i32, i32, i32
  }
  func.func @transform_10(%arg0: i32) -> (i32, i32, i32) {
    %c0_i32 = arith.constant 0 : i32
    %c0_i32_0 = arith.constant 0 : i32
    %c0_i32_1 = arith.constant 0 : i32
    %c0_i32_2 = arith.constant 0 : i32
    return %c0_i32, %c0_i32_0, %c0_i32_1 : i32, i32, i32
  }
  func.func @transform_11(%arg0: i32) -> (i32, i32, i32) {
    %c0_i32 = arith.constant 0 : i32
    %c0_i32_0 = arith.constant 0 : i32
    %c0_i32_1 = arith.constant 0 : i32
    %c0_i32_2 = arith.constant 0 : i32
    return %c0_i32, %c0_i32_0, %c0_i32_1 : i32, i32, i32
  }
  func.func @transform_12(%arg0: i32) -> (i32, i32, i32) {
    %c0_i32 = arith.constant 0 : i32
    %c0_i32_0 = arith.constant 0 : i32
    %c0_i32_1 = arith.constant 0 : i32
    %c0_i32_2 = arith.constant 0 : i32
    return %c0_i32, %c0_i32_0, %c0_i32_1 : i32, i32, i32
  }
  func.func @transform_13(%arg0: i32) -> (i32, i32, i32) {
    %c0_i32 = arith.constant 0 : i32
    %c0_i32_0 = arith.constant 0 : i32
    %c0_i32_1 = arith.constant 0 : i32
    %c0_i32_2 = arith.constant 0 : i32
    return %c0_i32, %c0_i32_0, %c0_i32_1 : i32, i32, i32
  }
  func.func @transform_14(%arg0: i32) -> (i32, i32, i32) {
    %c0_i32 = arith.constant 0 : i32
    %c0_i32_0 = arith.constant 0 : i32
    %c0_i32_1 = arith.constant 0 : i32
    %c0_i32_2 = arith.constant 0 : i32
    return %c0_i32, %c0_i32_0, %c0_i32_1 : i32, i32, i32
  }
  func.func @transform_15(%arg0: i32) -> (i32, i32) {
    %c0_i32 = arith.constant 0 : i32
    %c0_i32_0 = arith.constant 0 : i32
    %c0_i32_1 = arith.constant 0 : i32
    return %c0_i32, %c0_i32_0 : i32, i32
  }
  func.func @transform_16(%arg0: i32) -> (i32, i32) {
    %c0_i32 = arith.constant 0 : i32
    %c0_i32_0 = arith.constant 0 : i32
    %c0_i32_1 = arith.constant 0 : i32
    return %c0_i32, %c0_i32_0 : i32, i32
  }
  func.func @transform_17(%arg0: i32) -> (i32, i32) {
    %c0_i32 = arith.constant 0 : i32
    %c0_i32_0 = arith.constant 0 : i32
    %c0_i32_1 = arith.constant 0 : i32
    return %c0_i32, %c0_i32_0 : i32, i32
  }
  func.func @transform_18(%arg0: i32) -> (i32, i32) {
    %c0_i32 = arith.constant 0 : i32
    %c0_i32_0 = arith.constant 0 : i32
    %c0_i32_1 = arith.constant 0 : i32
    return %c0_i32, %c0_i32_0 : i32, i32
  }
  func.func @transform_19(%arg0: i32) -> (i32, i32, i32) {
    %c0_i32 = arith.constant 0 : i32
    %c0_i32_0 = arith.constant 0 : i32
    %c0_i32_1 = arith.constant 0 : i32
    return %arg0, %c0_i32, %c0_i32_0 : i32, i32, i32
  }
}

</mosaic_0001>

<llo_original>
// kernel: vit_forward.1
$region0: #{vit_forward.1}
  #allocation0 [shape = 'u32[]', space=smem, size = 0x4, offset = 0x4, fixed_abs, tag = 'smem constant byte address 0x4 - core index']
  #allocation1 [shape = 'u32[144,128]{1,0:T(1,128)}', space=vmem, size = 0x12000, scoped, tag = 'internal scratch']
  %s0 = inlined_call_operand.vmem [shape: bf16[2,24,192], index: 0, kind: input, shape index: {}]
  %s1 = inlined_call_operand.vmem [shape: bf16[192,128], index: 1, kind: input, shape index: {}]
  %s2 = inlined_call_operand.vmem [shape: f32[24,128], index: 2, kind: input, shape index: {}]
  %s3 = inlined_call_operand.vmem [shape: f32[2,1,128], index: 3, kind: input, shape index: {}, may-alias: {3,9}]
  %s4 = inlined_call_operand.vmem [shape: f32[2,1,128], index: 4, kind: input, shape index: {}, may-alias: {4,8,10,12,14}]
  %s5 = inlined_call_operand.vmem [shape: bf16[2,128,768], index: 5, kind: input, shape index: {}]
  %s6 = inlined_call_operand.vmem [shape: f32[2,1,768], index: 6, kind: input, shape index: {}]
  %s7 = inlined_call_operand.vmem [shape: bf16[2,2,128,128], index: 7, kind: input, shape index: {}]
  %s8 = inlined_call_operand.vmem [shape: f32[2,1,128], index: 8, kind: input, shape index: {}, may-alias: {4,8,10,12,14}]
  %s9 = inlined_call_operand.vmem [shape: f32[2,1,128], index: 9, kind: input, shape index: {}, may-alias: {3,9}]
  %s10 = inlined_call_operand.vmem [shape: f32[2,1,128], index: 10, kind: input, shape index: {}, may-alias: {4,8,10,12,14}]
  %s11 = inlined_call_operand.vmem [shape: bf16[2,128,128], index: 11, kind: input, shape index: {}]
  %s12 = inlined_call_operand.vmem [shape: f32[2,1,128], index: 12, kind: input, shape index: {}, may-alias: {4,8,10,12,14}]
  %s13 = inlined_call_operand.vmem [shape: bf16[2,128,128], index: 13, kind: input, shape index: {}]
  %s14 = inlined_call_operand.vmem [shape: f32[2,1,128], index: 14, kind: input, shape index: {}, may-alias: {4,8,10,12,14}]
  %s15 = inlined_call_operand.vmem [shape: f32[1,128], index: 15, kind: input, shape index: {}]
  %s16 = inlined_call_operand.vmem [shape: f32[1,128], index: 16, kind: input, shape index: {}, may-alias: {16,18}]
  %s17 = inlined_call_operand.vmem [shape: bf16[128,128], index: 17, kind: input, shape index: {}]
  %s18 = inlined_call_operand.vmem [shape: f32[1,128], index: 18, kind: input, shape index: {}, may-alias: {16,18}]
  %s19 = inlined_call_operand.vmem [shape: f32[2,8,128], index: 19, kind: output, shape index: {}]
  %s20 = sld [smem:[#allocation0]]
  $region109: #{vit_forward.1} parent=0
    _
  %s22 = ssub.s32 1, %s20
  %s23 = scalar_select 0, %s22, %s20
  loop: start=0, step=1, limit=4
  $region2: #{vit_forward.1} parent=0 // loop_pre_header
    _
  $region3: #{vit_forward.1} parent=0 // loop_header
    %s25 = sphi 0, %s29
    %p26 = scmp.ge.s32.totalorder %s25, 4
    %s35 = sphi 0, %s37
    %s38 = sphi 0, %s35
    %s39 = sphi 0, %s38
    %s55 = sphi 0, %s39
    %s59 = sphi 0, %s59
    %s61 = sphi 0, %s59
    %s62 = sphi 0, %s61
    %s76 = sphi 0, %s62
    %s80 = sphi 0, %s80
    %s82 = sphi 0, %s80
    %s83 = sphi 0, %s82
    %s97 = sphi 0, %s83
    %s101 = sphi 0, %s101
    %s103 = sphi 0, %s101
    %s104 = sphi 0, %s103
    %s118 = sphi 0, %s104
    %s122 = sphi 0, %s122
    %s124 = sphi 0, %s122
    %s125 = sphi 0, %s124
    %s139 = sphi 0, %s125
    %s143 = sphi 0, %s143
    %s145 = sphi 0, %s143
    %s146 = sphi 0, %s145
    %s160 = sphi 0, %s146
    %s164 = sphi 0, %s164
    %s166 = sphi 0, %s164
    %s167 = sphi 0, %s166
    %s181 = sphi 0, %s167
    %s185 = sphi 0, %s185
    %s187 = sphi 0, %s185
    %s188 = sphi 0, %s187
    %s202 = sphi 0, %s188
    %s206 = sphi 0, %s206
    %s208 = sphi 0, %s206
    %s209 = sphi 0, %s208
    %s223 = sphi 0, %s209
    %s227 = sphi 0, %s227
    %s229 = sphi 0, %s227
    %s230 = sphi 0, %s229
    %s244 = sphi 0, %s230
    %s248 = sphi 0, %s248
    %s250 = sphi 0, %s248
    %s251 = sphi 0, %s250
    %s265 = sphi 0, %s251
    %s269 = sphi 0, %s269
    %s271 = sphi 0, %s269
    %s272 = sphi 0, %s271
    %s286 = sphi 0, %s272
    %s290 = sphi 0, %s290
    %s292 = sphi 0, %s290
    %s293 = sphi 0, %s292
    %s307 = sphi 0, %s293
    %s311 = sphi 0, %s311
    %s313 = sphi 0, %s311
    %s314 = sphi 0, %s313
    %s328 = sphi 0, %s314
    %s332 = sphi 0, %s332
    %s334 = sphi 0, %s332
    %s335 = sphi 0, %s334
    %s349 = sphi 0, %s335
    %s353 = sphi 0, %s353
    %s355 = sphi 0, %s353
    %s356 = sphi 0, %s355
    %s370 = sphi 0, %s356
    %s374 = sphi 0, %s374
    %s376 = sphi 0, %s374
    %s377 = sphi 0, %s376
    %s391 = sphi 0, %s377
    %s395 = sphi 0, %s395
    %s397 = sphi 0, %s395
    %s398 = sphi 0, %s397
    %s412 = sphi 0, %s398
    %s416 = sphi 0, %s416
    %s418 = sphi 0, %s416
    %s419 = sphi 0, %s418
    %s433 = sphi 0, %s419
    %s439 = sphi 0, %s441
    %s442 = sphi 0, %s439
    %s443 = sphi 0, %s442
    %s459 = sphi 0, %s443
  $region4: #{vit_forward.1} parent=0 // loop_header_branch
    %28 = sbr.rel (%p26) target = $region8
  $region5: #{vit_forward.1} parent=0 // loop_body
    %s30 = ssub.s32 %s25, 1
    %s31 = ssub.s32 %s25, 2
    %s32 = sadd.s32 %s25, 1
    %s33 = ssub.s32 %s25, %s32
    %p34 = scmp.eq.s32.totalorder %s33, 0
    %s36 = sadd.s32 %s35, 1
    %s37 = scalar_select %p34, %s35, %s36
    %p40 = pneg %p34
    %p41 = scmp.eq.s32.totalorder %s25, 1
    %p42 = por %p40, %p41
    %p43 = scmp.ne.s32.totalorder %s35, %s38
    %p44 = scmp.eq.s32.totalorder %s25, 0
    %p45 = por %p43, %p44
    %p46 = scmp.ne.s32.totalorder %s35, %s38
    %p47 = scmp.eq.s32.totalorder %s30, 1
    %p48 = por %p46, %p47
    %p49 = scmp.ne.s32.totalorder %s38, %s39
    %p50 = scmp.eq.s32.totalorder %s30, 0
    %p51 = por %p49, %p50
    %p52 = scmp.ne.s32.totalorder %s38, %s39
    %p53 = scmp.eq.s32.totalorder %s31, 1
    %p54 = por %p52, %p53
    %p56 = scmp.ne.s32.totalorder %s39, %s55
    %p57 = scmp.eq.s32.totalorder %s31, 0
    %p58 = por %p56, %p57
    %s60 = sadd.s32 %s59, 1
    %p63 = scmp.eq.s32.totalorder %s25, 1
    %p64 = scmp.ne.s32.totalorder %s59, %s61
    %p65 = scmp.eq.s32.totalorder %s25, 0
    %p66 = por %p64, %p65
    %p67 = scmp.ne.s32.totalorder %s59, %s61
    %p68 = scmp.eq.s32.totalorder %s30, 1
    %p69 = por %p67, %p68
    %p70 = scmp.ne.s32.totalorder %s61, %s62
    %p71 = scmp.eq.s32.totalorder %s30, 0
    %p72 = por %p70, %p71
    %p73 = scmp.ne.s32.totalorder %s61, %s62
    %p74 = scmp.eq.s32.totalorder %s31, 1
    %p75 = por %p73, %p74
    %p77 = scmp.ne.s32.totalorder %s62, %s76
    %p78 = scmp.eq.s32.totalorder %s31, 0
    %p79 = por %p77, %p78
    %s81 = sadd.s32 %s80, 1
    %p84 = scmp.eq.s32.totalorder %s25, 1
    %p85 = scmp.ne.s32.totalorder %s80, %s82
    %p86 = scmp.eq.s32.totalorder %s25, 0
    %p87 = por %p85, %p86
    %p88 = scmp.ne.s32.totalorder %s80, %s82
    %p89 = scmp.eq.s32.totalorder %s30, 1
    %p90 = por %p88, %p89
    %p91 = scmp.ne.s32.totalorder %s82, %s83
    %p92 = scmp.eq.s32.totalorder %s30, 0
    %p93 = por %p91, %p92
    %p94 = scmp.ne.s32.totalorder %s82, %s83
    %p95 = scmp.eq.s32.totalorder %s31, 1
    %p96 = por %p94, %p95
    %p98 = scmp.ne.s32.totalorder %s83, %s97
    %p99 = scmp.eq.s32.totalorder %s31, 0
    %p100 = por %p98, %p99
    %s102 = sadd.s32 %s101, 1
    %p105 = scmp.eq.s32.totalorder %s25, 1
    %p106 = scmp.ne.s32.totalorder %s101, %s103
    %p107 = scmp.eq.s32.totalorder %s25, 0
    %p108 = por %p106, %p107
    %p109 = scmp.ne.s32.totalorder %s101, %s103
    %p110 = scmp.eq.s32.totalorder %s30, 1
    %p111 = por %p109, %p110
    %p112 = scmp.ne.s32.totalorder %s103, %s104
    %p113 = scmp.eq.s32.totalorder %s30, 0
    %p114 = por %p112, %p113
    %p115 = scmp.ne.s32.totalorder %s103, %s104
    %p116 = scmp.eq.s32.totalorder %s31, 1
    %p117 = por %p115, %p116
    %p119 = scmp.ne.s32.totalorder %s104, %s118
    %p120 = scmp.eq.s32.totalorder %s31, 0
    %p121 = por %p119, %p120
    %s123 = sadd.s32 %s122, 1
    %p126 = scmp.eq.s32.totalorder %s25, 1
    %p127 = scmp.ne.s32.totalorder %s122, %s124
    %p128 = scmp.eq.s32.totalorder %s25, 0
    %p129 = por %p127, %p128
    %p130 = scmp.ne.s32.totalorder %s122, %s124
    %p131 = scmp.eq.s32.totalorder %s30, 1
    %p132 = por %p130, %p131
    %p133 = scmp.ne.s32.totalorder %s124, %s125
    %p134 = scmp.eq.s32.totalorder %s30, 0
    %p135 = por %p133, %p134
    %p136 = scmp.ne.s32.totalorder %s124, %s125
    %p137 = scmp.eq.s32.totalorder %s31, 1
    %p138 = por %p136, %p137
    %p140 = scmp.ne.s32.totalorder %s125, %s139
    %p141 = scmp.eq.s32.totalorder %s31, 0
    %p142 = por %p140, %p141
    %s144 = sadd.s32 %s143, 1
    %p147 = scmp.eq.s32.totalorder %s25, 1
    %p148 = scmp.ne.s32.totalorder %s143, %s145
    %p149 = scmp.eq.s32.totalorder %s25, 0
    %p150 = por %p148, %p149
    %p151 = scmp.ne.s32.totalorder %s143, %s145
    %p152 = scmp.eq.s32.totalorder %s30, 1
    %p153 = por %p151, %p152
    %p154 = scmp.ne.s32.totalorder %s145, %s146
    %p155 = scmp.eq.s32.totalorder %s30, 0
    %p156 = por %p154, %p155
    %p157 = scmp.ne.s32.totalorder %s145, %s146
    %p158 = scmp.eq.s32.totalorder %s31, 1
    %p159 = por %p157, %p158
    %p161 = scmp.ne.s32.totalorder %s146, %s160
    %p162 = scmp.eq.s32.totalorder %s31, 0
    %p163 = por %p161, %p162
    %s165 = sadd.s32 %s164, 1
    %p168 = scmp.eq.s32.totalorder %s25, 1
    %p169 = scmp.ne.s32.totalorder %s164, %s166
    %p170 = scmp.eq.s32.totalorder %s25, 0
    %p171 = por %p169, %p170
    %p172 = scmp.ne.s32.totalorder %s164, %s166
    %p173 = scmp.eq.s32.totalorder %s30, 1
    %p174 = por %p172, %p173
    %p175 = scmp.ne.s32.totalorder %s166, %s167
    %p176 = scmp.eq.s32.totalorder %s30, 0
    %p177 = por %p175, %p176
    %p178 = scmp.ne.s32.totalorder %s166, %s167
    %p179 = scmp.eq.s32.totalorder %s31, 1
    %p180 = por %p178, %p179
    %p182 = scmp.ne.s32.totalorder %s167, %s181
    %p183 = scmp.eq.s32.totalorder %s31, 0
    %p184 = por %p182, %p183
    %s186 = sadd.s32 %s185, 1
    %p189 = scmp.eq.s32.totalorder %s25, 1
    %p190 = scmp.ne.s32.totalorder %s185, %s187
    %p191 = scmp.eq.s32.totalorder %s25, 0
    %p192 = por %p190, %p191
    %p193 = scmp.ne.s32.totalorder %s185, %s187
    %p194 = scmp.eq.s32.totalorder %s30, 1
    %p195 = por %p193, %p194
    %p196 = scmp.ne.s32.totalorder %s187, %s188
    %p197 = scmp.eq.s32.totalorder %s30, 0
    %p198 = por %p196, %p197
    %p199 = scmp.ne.s32.totalorder %s187, %s188
    %p200 = scmp.eq.s32.totalorder %s31, 1
    %p201 = por %p199, %p200
    %p203 = scmp.ne.s32.totalorder %s188, %s202
    %p204 = scmp.eq.s32.totalorder %s31, 0
    %p205 = por %p203, %p204
    %s207 = sadd.s32 %s206, 1
    %p210 = scmp.eq.s32.totalorder %s25, 1
    %p211 = scmp.ne.s32.totalorder %s206, %s208
    %p212 = scmp.eq.s32.totalorder %s25, 0
    %p213 = por %p211, %p212
    %p214 = scmp.ne.s32.totalorder %s206, %s208
    %p215 = scmp.eq.s32.totalorder %s30, 1
    %p216 = por %p214, %p215
    %p217 = scmp.ne.s32.totalorder %s208, %s209
    %p218 = scmp.eq.s32.totalorder %s30, 0
    %p219 = por %p217, %p218
    %p220 = scmp.ne.s32.totalorder %s208, %s209
    %p221 = scmp.eq.s32.totalorder %s31, 1
    %p222 = por %p220, %p221
    %p224 = scmp.ne.s32.totalorder %s209, %s223
    %p225 = scmp.eq.s32.totalorder %s31, 0
    %p226 = por %p224, %p225
    %s228 = sadd.s32 %s227, 1
    %p231 = scmp.eq.s32.totalorder %s25, 1
    %p232 = scmp.ne.s32.totalorder %s227, %s229
    %p233 = scmp.eq.s32.totalorder %s25, 0
    %p234 = por %p232, %p233
    %p235 = scmp.ne.s32.totalorder %s227, %s229
    %p236 = scmp.eq.s32.totalorder %s30, 1
    %p237 = por %p235, %p236
    %p238 = scmp.ne.s32.totalorder %s229, %s230
    %p239 = scmp.eq.s32.totalorder %s30, 0
    %p240 = por %p238, %p239
    %p241 = scmp.ne.s32.totalorder %s229, %s230
    %p242 = scmp.eq.s32.totalorder %s31, 1
    %p243 = por %p241, %p242
    %p245 = scmp.ne.s32.totalorder %s230, %s244
    %p246 = scmp.eq.s32.totalorder %s31, 0
    %p247 = por %p245, %p246
    %s249 = sadd.s32 %s248, 1
    %p252 = scmp.eq.s32.totalorder %s25, 1
    %p253 = scmp.ne.s32.totalorder %s248, %s250
    %p254 = scmp.eq.s32.totalorder %s25, 0
    %p255 = por %p253, %p254
    %p256 = scmp.ne.s32.totalorder %s248, %s250
    %p257 = scmp.eq.s32.totalorder %s30, 1
    %p258 = por %p256, %p257
    %p259 = scmp.ne.s32.totalorder %s250, %s251
    %p260 = scmp.eq.s32.totalorder %s30, 0
    %p261 = por %p259, %p260
    %p262 = scmp.ne.s32.totalorder %s250, %s251
    %p263 = scmp.eq.s32.totalorder %s31, 1
    %p264 = por %p262, %p263
    %p266 = scmp.ne.s32.totalorder %s251, %s265
    %p267 = scmp.eq.s32.totalorder %s31, 0
    %p268 = por %p266, %p267
    %s270 = sadd.s32 %s269, 1
    %p273 = scmp.eq.s32.totalorder %s25, 1
    %p274 = scmp.ne.s32.totalorder %s269, %s271
    %p275 = scmp.eq.s32.totalorder %s25, 0
    %p276 = por %p274, %p275
    %p277 = scmp.ne.s32.totalorder %s269, %s271
    %p278 = scmp.eq.s32.totalorder %s30, 1
    %p279 = por %p277, %p278
    %p280 = scmp.ne.s32.totalorder %s271, %s272
    %p281 = scmp.eq.s32.totalorder %s30, 0
    %p282 = por %p280, %p281
    %p283 = scmp.ne.s32.totalorder %s271, %s272
    %p284 = scmp.eq.s32.totalorder %s31, 1
    %p285 = por %p283, %p284
    %p287 = scmp.ne.s32.totalorder %s272, %s286
    %p288 = scmp.eq.s32.totalorder %s31, 0
    %p289 = por %p287, %p288
    %s291 = sadd.s32 %s290, 1
    %p294 = scmp.eq.s32.totalorder %s25, 1
    %p295 = scmp.ne.s32.totalorder %s290, %s292
    %p296 = scmp.eq.s32.totalorder %s25, 0
    %p297 = por %p295, %p296
    %p298 = scmp.ne.s32.totalorder %s290, %s292
    %p299 = scmp.eq.s32.totalorder %s30, 1
    %p300 = por %p298, %p299
    %p301 = scmp.ne.s32.totalorder %s292, %s293
    %p302 = scmp.eq.s32.totalorder %s30, 0
    %p303 = por %p301, %p302
    %p304 = scmp.ne.s32.totalorder %s292, %s293
    %p305 = scmp.eq.s32.totalorder %s31, 1
    %p306 = por %p304, %p305
    %p308 = scmp.ne.s32.totalorder %s293, %s307
    %p309 = scmp.eq.s32.totalorder %s31, 0
    %p310 = por %p308, %p309
    %s312 = sadd.s32 %s311, 1
    %p315 = scmp.eq.s32.totalorder %s25, 1
    %p316 = scmp.ne.s32.totalorder %s311, %s313
    %p317 = scmp.eq.s32.totalorder %s25, 0
    %p318 = por %p316, %p317
    %p319 = scmp.ne.s32.totalorder %s311, %s313
    %p320 = scmp.eq.s32.totalorder %s30, 1
    %p321 = por %p319, %p320
    %p322 = scmp.ne.s32.totalorder %s313, %s314
    %p323 = scmp.eq.s32.totalorder %s30, 0
    %p324 = por %p322, %p323
    %p325 = scmp.ne.s32.totalorder %s313, %s314
    %p326 = scmp.eq.s32.totalorder %s31, 1
    %p327 = por %p325, %p326
    %p329 = scmp.ne.s32.totalorder %s314, %s328
    %p330 = scmp.eq.s32.totalorder %s31, 0
    %p331 = por %p329, %p330
    %s333 = sadd.s32 %s332, 1
    %p336 = scmp.eq.s32.totalorder %s25, 1
    %p337 = scmp.ne.s32.totalorder %s332, %s334
    %p338 = scmp.eq.s32.totalorder %s25, 0
    %p339 = por %p337, %p338
    %p340 = scmp.ne.s32.totalorder %s332, %s334
    %p341 = scmp.eq.s32.totalorder %s30, 1
    %p342 = por %p340, %p341
    %p343 = scmp.ne.s32.totalorder %s334, %s335
    %p344 = scmp.eq.s32.totalorder %s30, 0
    %p345 = por %p343, %p344
    %p346 = scmp.ne.s32.totalorder %s334, %s335
    %p347 = scmp.eq.s32.totalorder %s31, 1
    %p348 = por %p346, %p347
    %p350 = scmp.ne.s32.totalorder %s335, %s349
    %p351 = scmp.eq.s32.totalorder %s31, 0
    %p352 = por %p350, %p351
    %s354 = sadd.s32 %s353, 1
    %p357 = scmp.eq.s32.totalorder %s25, 1
    %p358 = scmp.ne.s32.totalorder %s353, %s355
    %p359 = scmp.eq.s32.totalorder %s25, 0
    %p360 = por %p358, %p359
    %p361 = scmp.ne.s32.totalorder %s353, %s355
    %p362 = scmp.eq.s32.totalorder %s30, 1
    %p363 = por %p361, %p362
    %p364 = scmp.ne.s32.totalorder %s355, %s356
    %p365 = scmp.eq.s32.totalorder %s30, 0
    %p366 = por %p364, %p365
    %p367 = scmp.ne.s32.totalorder %s355, %s356
    %p368 = scmp.eq.s32.totalorder %s31, 1
    %p369 = por %p367, %p368
    %p371 = scmp.ne.s32.totalorder %s356, %s370
    %p372 = scmp.eq.s32.totalorder %s31, 0
    %p373 = por %p371, %p372
    %s375 = sadd.s32 %s374, 1
    %p378 = scmp.eq.s32.totalorder %s25, 1
    %p379 = scmp.ne.s32.totalorder %s374, %s376
    %p380 = scmp.eq.s32.totalorder %s25, 0
    %p381 = por %p379, %p380
    %p382 = scmp.ne.s32.totalorder %s374, %s376
    %p383 = scmp.eq.s32.totalorder %s30, 1
    %p384 = por %p382, %p383
    %p385 = scmp.ne.s32.totalorder %s376, %s377
    %p386 = scmp.eq.s32.totalorder %s30, 0
    %p387 = por %p385, %p386
    %p388 = scmp.ne.s32.totalorder %s376, %s377
    %p389 = scmp.eq.s32.totalorder %s31, 1
    %p390 = por %p388, %p389
    %p392 = scmp.ne.s32.totalorder %s377, %s391
    %p393 = scmp.eq.s32.totalorder %s31, 0
    %p394 = por %p392, %p393
    %s396 = sadd.s32 %s395, 1
    %p399 = scmp.eq.s32.totalorder %s25, 1
    %p400 = scmp.ne.s32.totalorder %s395, %s397
    %p401 = scmp.eq.s32.totalorder %s25, 0
    %p402 = por %p400, %p401
    %p403 = scmp.ne.s32.totalorder %s395, %s397
    %p404 = scmp.eq.s32.totalorder %s30, 1
    %p405 = por %p403, %p404
    %p406 = scmp.ne.s32.totalorder %s397, %s398
    %p407 = scmp.eq.s32.totalorder %s30, 0
    %p408 = por %p406, %p407
    %p409 = scmp.ne.s32.totalorder %s397, %s398
    %p410 = scmp.eq.s32.totalorder %s31, 1
    %p411 = por %p409, %p410
    %p413 = scmp.ne.s32.totalorder %s398, %s412
    %p414 = scmp.eq.s32.totalorder %s31, 0
    %p415 = por %p413, %p414
    %s417 = sadd.s32 %s416, 1
    %p420 = scmp.eq.s32.totalorder %s25, 1
    %p421 = scmp.ne.s32.totalorder %s416, %s418
    %p422 = scmp.eq.s32.totalorder %s25, 0
    %p423 = por %p421, %p422
    %p424 = scmp.ne.s32.totalorder %s416, %s418
    %p425 = scmp.eq.s32.totalorder %s30, 1
    %p426 = por %p424, %p425
    %p427 = scmp.ne.s32.totalorder %s418, %s419
    %p428 = scmp.eq.s32.totalorder %s30, 0
    %p429 = por %p427, %p428
    %p430 = scmp.ne.s32.totalorder %s418, %s419
    %p431 = scmp.eq.s32.totalorder %s31, 1
    %p432 = por %p430, %p431
    %p434 = scmp.ne.s32.totalorder %s419, %s433
    %p435 = scmp.eq.s32.totalorder %s31, 0
    %p436 = por %p434, %p435
    %s437 = ssub.s32 %s25, %s32
    %p438 = scmp.eq.s32.totalorder %s437, 0
    %s440 = sadd.s32 %s439, 1
    %s441 = scalar_select %p438, %s439, %s440
    %p444 = pneg %p438
    %p445 = scmp.eq.s32.totalorder %s25, 1
    %p446 = por %p444, %p445
    %p447 = scmp.ne.s32.totalorder %s439, %s442
    %p448 = scmp.eq.s32.totalorder %s25, 0
    %p449 = por %p447, %p448
    %p450 = scmp.ne.s32.totalorder %s439, %s442
    %p451 = scmp.eq.s32.totalorder %s30, 1
    %p452 = por %p450, %p451
    %p453 = scmp.ne.s32.totalorder %s442, %s443
    %p454 = scmp.eq.s32.totalorder %s30, 0
    %p455 = por %p453, %p454
    %p456 = scmp.ne.s32.totalorder %s442, %s443
    %p457 = scmp.eq.s32.totalorder %s31, 1
    %p458 = por %p456, %p457
    %p460 = scmp.ne.s32.totalorder %s443, %s459
    %p461 = scmp.eq.s32.totalorder %s31, 0
    %p462 = por %p460, %p461
    %p463 = scmp.le.s32.totalorder 1, %s25
    %p464 = scmp.lt.s32.totalorder %s25, 3
    %p465 = pnand %p463, %p464
    %p466 = pneg %p465
    // Predicated region
    $region9: #{vit_forward.1} parent=5 // pred_check
      _
    $region10: #{vit_forward.1} parent=5 // pred_check_branch
      %468 = sbr.rel (%p465) target = $region12
    $region11: #{vit_forward.1} parent=5 // pred_region
      %s469 = ssub.s32 %s25, 1
      // Predicated region
      $region13: #{vit_forward.1} parent=11 // pred_check
        %p470 = pneg %p72
      $region14: #{vit_forward.1} parent=11 // pred_check_branch
        %472 = sbr.rel (%p470) target = $region16
      $region15: #{vit_forward.1} parent=11 // pred_region
        _
      $region16: #{vit_forward.1} parent=11 // pred_fallthru
        _
      // Predicated region
      $region17: #{vit_forward.1} parent=11 // pred_check
        %p473 = pneg %p93
      $region18: #{vit_forward.1} parent=11 // pred_check_branch
        %475 = sbr.rel (%p473) target = $region20
      $region19: #{vit_forward.1} parent=11 // pred_region
        _
      $region20: #{vit_forward.1} parent=11 // pred_fallthru
        _
      // Predicated region
      $region21: #{vit_forward.1} parent=11 // pred_check
        %p476 = pneg %p114
      $region22: #{vit_forward.1} parent=11 // pred_check_branch
        %478 = sbr.rel (%p476) target = $region24
      $region23: #{vit_forward.1} parent=11 // pred_region
        _
      $region24: #{vit_forward.1} parent=11 // pred_fallthru
        _
      // Predicated region
      $region25: #{vit_forward.1} parent=11 // pred_check
        %p479 = pneg %p135
      $region26: #{vit_forward.1} parent=11 // pred_check_branch
        %481 = sbr.rel (%p479) target = $region28
      $region27: #{vit_forward.1} parent=11 // pred_region
        _
      $region28: #{vit_forward.1} parent=11 // pred_fallthru
        _
      // Predicated region
      $region29: #{vit_forward.1} parent=11 // pred_check
        %p482 = pneg %p156
      $region30: #{vit_forward.1} parent=11 // pred_check_branch
        %484 = sbr.rel (%p482) target = $region32
      $region31: #{vit_forward.1} parent=11 // pred_region
        _
      $region32: #{vit_forward.1} parent=11 // pred_fallthru
        _
      // Predicated region
      $region33: #{vit_forward.1} parent=11 // pred_check
        %p485 = pneg %p177
      $region34: #{vit_forward.1} parent=11 // pred_check_branch
        %487 = sbr.rel (%p485) target = $region36
      $region35: #{vit_forward.1} parent=11 // pred_region
        _
      $region36: #{vit_forward.1} parent=11 // pred_fallthru
        _
      // Predicated region
      $region37: #{vit_forward.1} parent=11 // pred_check
        %p488 = pneg %p198
      $region38: #{vit_forward.1} parent=11 // pred_check_branch
        %490 = sbr.rel (%p488) target = $region40
      $region39: #{vit_forward.1} parent=11 // pred_region
        _
      $region40: #{vit_forward.1} parent=11 // pred_fallthru
        _
      // Predicated region
      $region41: #{vit_forward.1} parent=11 // pred_check
        %p491 = pneg %p219
      $region42: #{vit_forward.1} parent=11 // pred_check_branch
        %493 = sbr.rel (%p491) target = $region44
      $region43: #{vit_forward.1} parent=11 // pred_region
        _
      $region44: #{vit_forward.1} parent=11 // pred_fallthru
        _
      // Predicated region
      $region45: #{vit_forward.1} parent=11 // pred_check
        %p494 = pneg %p240
      $region46: #{vit_forward.1} parent=11 // pred_check_branch
        %496 = sbr.rel (%p494) target = $region48
      $region47: #{vit_forward.1} parent=11 // pred_region
        _
      $region48: #{vit_forward.1} parent=11 // pred_fallthru
        _
      // Predicated region
      $region49: #{vit_forward.1} parent=11 // pred_check
        %p497 = pneg %p261
      $region50: #{vit_forward.1} parent=11 // pred_check_branch
        %499 = sbr.rel (%p497) target = $region52
      $region51: #{vit_forward.1} parent=11 // pred_region
        _
      $region52: #{vit_forward.1} parent=11 // pred_fallthru
        _
      // Predicated region
      $region53: #{vit_forward.1} parent=11 // pred_check
        %p500 = pneg %p282
      $region54: #{vit_forward.1} parent=11 // pred_check_branch
        %502 = sbr.rel (%p500) target = $region56
      $region55: #{vit_forward.1} parent=11 // pred_region
        _
      $region56: #{vit_forward.1} parent=11 // pred_fallthru
        _
      // Predicated region
      $region57: #{vit_forward.1} parent=11 // pred_check
        %p503 = pneg %p303
      $region58: #{vit_forward.1} parent=11 // pred_check_branch
        %505 = sbr.rel (%p503) target = $region60
      $region59: #{vit_forward.1} parent=11 // pred_region
        _
      $region60: #{vit_forward.1} parent=11 // pred_fallthru
        _
      // Predicated region
      $region61: #{vit_forward.1} parent=11 // pred_check
        %p506 = pneg %p324
      $region62: #{vit_forward.1} parent=11 // pred_check_branch
        %508 = sbr.rel (%p506) target = $region64
      $region63: #{vit_forward.1} parent=11 // pred_region
        _
      $region64: #{vit_forward.1} parent=11 // pred_fallthru
        _
      // Predicated region
      $region65: #{vit_forward.1} parent=11 // pred_check
        %p509 = pneg %p345
      $region66: #{vit_forward.1} parent=11 // pred_check_branch
        %511 = sbr.rel (%p509) target = $region68
      $region67: #{vit_forward.1} parent=11 // pred_region
        _
      $region68: #{vit_forward.1} parent=11 // pred_fallthru
        _
      // Predicated region
      $region69: #{vit_forward.1} parent=11 // pred_check
        %p512 = pneg %p366
      $region70: #{vit_forward.1} parent=11 // pred_check_branch
        %514 = sbr.rel (%p512) target = $region72
      $region71: #{vit_forward.1} parent=11 // pred_region
        _
      $region72: #{vit_forward.1} parent=11 // pred_fallthru
        _
      // Predicated region
      $region73: #{vit_forward.1} parent=11 // pred_check
        %p515 = pneg %p387
      $region74: #{vit_forward.1} parent=11 // pred_check_branch
        %517 = sbr.rel (%p515) target = $region76
      $region75: #{vit_forward.1} parent=11 // pred_region
        _
      $region76: #{vit_forward.1} parent=11 // pred_fallthru
        _
      // Predicated region
      $region77: #{vit_forward.1} parent=11 // pred_check
        %p518 = pneg %p408
      $region78: #{vit_forward.1} parent=11 // pred_check_branch
        %520 = sbr.rel (%p518) target = $region80
      $region79: #{vit_forward.1} parent=11 // pred_region
        _
      $region80: #{vit_forward.1} parent=11 // pred_fallthru
        _
      // Predicated region
      $region81: #{vit_forward.1} parent=11 // pred_check
        %p521 = pneg %p429
      $region82: #{vit_forward.1} parent=11 // pred_check_branch
        %523 = sbr.rel (%p521) target = $region84
      $region83: #{vit_forward.1} parent=11 // pred_region
        _
      $region84: #{vit_forward.1} parent=11 // pred_fallthru
        _
    $region12: #{vit_forward.1} parent=5 // pred_fallthru
      _
    %p524 = scmp.lt.s32.totalorder %s25, 2
    // Predicated region
    $region85: #{vit_forward.1} parent=5 // pred_check
      %p525 = pneg %p524
    $region86: #{vit_forward.1} parent=5 // pred_check_branch
      %527 = sbr.rel (%p525) target = $region88
    $region87: #{vit_forward.1} parent=5 // pred_region
      // Predicated region
      $region89: #{vit_forward.1} parent=87 // pred_check
        %p528 = pneg %p45
      $region90: #{vit_forward.1} parent=87 // pred_check_branch
        %530 = sbr.rel (%p528) target = $region92
      $region91: #{vit_forward.1} parent=87 // pred_region
        %p531 = scmp.lt.s32.totalorder %s25, 1
        %s532 = scalar_select %p531, %s25, 1
        %s533 = smul.addr %s532, 6
        %s534 = smul.addr %s533, 4
        %s535 = scalar_lea.vmem %s0, %s534
      $region92: #{vit_forward.1} parent=87 // pred_fallthru
        _
    $region88: #{vit_forward.1} parent=5 // pred_fallthru
      _
    %p536 = scmp.le.s32.totalorder 1, %s25
    %p537 = scmp.lt.s32.totalorder %s25, 3
    %p538 = pnand %p536, %p537
    %p539 = pneg %p538
    // Predicated region
    $region93: #{vit_forward.1} parent=5 // pred_check
      _
    $region94: #{vit_forward.1} parent=5 // pred_check_branch
      %541 = sbr.rel (%p538) target = $region96
    $region95: #{vit_forward.1} parent=5 // pred_region
      %s542 = ssub.s32 %s25, 1
      %p543 = scmp.lt.s32.totalorder %s30, 1
      %s544 = scalar_select %p543, %s30, 1
      %s545 = smul.addr %s544, 6
      %s546 = smul.addr %s545, 4
      %s547 = scalar_lea.vmem %s0, %s546
      %p548 = pneg %p51
      %p549 = pneg %p48
      %p550 = pneg %p72
      %p551 = pneg %p69
      %p552 = pneg %p93
      %p553 = pneg %p90
      %p554 = pneg %p114
      %p555 = pneg %p111
      %p556 = pneg %p135
      %p557 = pneg %p132
      %p558 = pneg %p156
      %p559 = pneg %p153
      %p560 = pneg %p177
      %p561 = pneg %p174
      %p562 = pneg %p198
      %p563 = pneg %p195
      %p564 = pneg %p219
      %p565 = pneg %p216
      %p566 = pneg %p240
      %p567 = pneg %p237
      %p568 = pneg %p261
      %p569 = pneg %p258
      %p570 = pneg %p282
      %p571 = pneg %p279
      %p572 = pneg %p303
      %p573 = pneg %p300
      %p574 = pneg %p324
      %p575 = pneg %p321
      %p576 = pneg %p345
      %p577 = pneg %p342
      %p578 = pneg %p366
      %p579 = pneg %p363
      %p580 = pneg %p387
      %p581 = pneg %p384
      %p582 = pneg %p408
      %p583 = pneg %p405
      %p584 = pneg %p429
      %p585 = pneg %p426
      %p586 = pneg %p455
      %p587 = pneg %p452
      %p588 = scmp.lt.s32.totalorder %s30, 1
      %s589 = scalar_select %p588, %s30, 1
      %s590 = smul.addr %s589, 8
      %s591 = scalar_lea.vmem %s19, %s590
      %p592 = scmp.lt.s32.totalorder %s30, 1
      %s593 = scalar_select %p592, %s30, 1
      %s594 = smul.addr %s593, 6
      %s595 = smul.addr %s594, 4
      %s596 = scalar_lea.vmem %s0, %s595
      %p597 = scmp.lt.s32.totalorder %s30, 1
      %s598 = scalar_select %p597, %s30, 1
      %s599 = smul.addr %s598, 8
      %s600 = scalar_lea.vmem %s19, %s599
      %v602 = vld [vmem:[%s596] sm:$0xff]
      %v603 = vld [vmem:[%s596 + $0x8] sm:$0xff]
      %v604 = vld [vmem:[%s596 + $0x10] sm:$0xff]
      %v605 = vld [vmem:[%s1] sm:$0xf]
      %v606 = vld [vmem:[%s1 + $0x4] sm:$0xf]
      %v607 = vld [vmem:[%s1 + $0x8] sm:$0xf]
      %v608 = vld [vmem:[%s1 + $0xc] sm:$0xf]
      %v609 = vld [vmem:[%s1 + $0x10] sm:$0xf]
      %v610 = vld [vmem:[%s1 + $0x14] sm:$0xf]
      %v611 = vld [vmem:[%s1 + $0x18] sm:$0xf]
      %v612 = vld [vmem:[%s1 + $0x1c] sm:$0xf]
      %v613 = vld [vmem:[%s1 + $0x20] sm:$0xf]
      %v614 = vld [vmem:[%s1 + $0x24] sm:$0xf]
      %v615 = vld [vmem:[%s1 + $0x28] sm:$0xf]
      %v616 = vld [vmem:[%s1 + $0x2c] sm:$0xf]
      %v617 = vld [vmem:[%s1 + $0x30] sm:$0xf]
      %v618 = vld [vmem:[%s1 + $0x34] sm:$0xf]
      %v619 = vld [vmem:[%s1 + $0x38] sm:$0xf]
      %v620 = vld [vmem:[%s1 + $0x3c] sm:$0xf]
      %v621 = vld [vmem:[%s1 + $0x40] sm:$0xf]
      %v622 = vld [vmem:[%s1 + $0x44] sm:$0xf]
      %v623 = vld [vmem:[%s1 + $0x48] sm:$0xf]
      %v624 = vld [vmem:[%s1 + $0x4c] sm:$0xf]
      %v625 = vld [vmem:[%s1 + $0x50] sm:$0xf]
      %v626 = vld [vmem:[%s1 + $0x54] sm:$0xf]
      %v627 = vld [vmem:[%s1 + $0x58] sm:$0xf]
      %v628 = vld [vmem:[%s1 + $0x5c] sm:$0xf]
      %v632 = vunpack.c.l.b16 %v602
      %v633 = vunpack.c.h.b16 %v602
      %v634 = vunpack.c.l.b16 %v603
      %v635 = vunpack.c.h.b16 %v603
      %v636 = vunpack.c.l.b16 %v604
      %v637 = vunpack.c.h.b16 %v604
      %v638 = vpack.c.b16 %v634, %v632
      %v639 = vpack.c.b16 %v635, %v633
      %v640 = vpack.c.b16 %v636, %v636
      %v641 = vpack.c.b16 %v637, %v637
      %v668 = vunpack.c.l.b16 %v605
      %v669 = vunpack.c.l.b16 %v606
      %v670 = vunpack.c.l.b16 %v607
      %v671 = vunpack.c.l.b16 %v608
      %v672 = vunpack.c.l.b16 %v609
      %v673 = vunpack.c.l.b16 %v610
      %v674 = vunpack.c.l.b16 %v611
      %v675 = vunpack.c.l.b16 %v612
      %v676 = vunpack.c.l.b16 %v613
      %v677 = vunpack.c.l.b16 %v614
      %v678 = vunpack.c.l.b16 %v615
      %v679 = vunpack.c.l.b16 %v616
      %v680 = vunpack.c.l.b16 %v617
      %v681 = vunpack.c.l.b16 %v618
      %v682 = vunpack.c.l.b16 %v619
      %v683 = vunpack.c.l.b16 %v620
      %v684 = vunpack.c.l.b16 %v621
      %v685 = vunpack.c.l.b16 %v622
      %v686 = vunpack.c.l.b16 %v623
      %v687 = vunpack.c.l.b16 %v624
      %v688 = vunpack.c.l.b16 %v625
      %v689 = vunpack.c.l.b16 %v626
      %v690 = vunpack.c.l.b16 %v627
      %v691 = vunpack.c.l.b16 %v628
      %v692 = vpack.c.b16 %v669, %v668
      %v693 = vpack.c.b16 %v671, %v670
      %v694 = vpack.c.b16 %v673, %v672
      %v695 = vpack.c.b16 %v675, %v674
      %v696 = vpack.c.b16 %v677, %v676
      %v697 = vpack.c.b16 %v679, %v678
      %v698 = vpack.c.b16 %v681, %v680
      %v699 = vpack.c.b16 %v683, %v682
      %v700 = vpack.c.b16 %v685, %v684
      %v701 = vpack.c.b16 %v687, %v686
      %v702 = vpack.c.b16 %v689, %v688
      %v703 = vpack.c.b16 %v691, %v690
      %vm716 = vcmask 523264
      %v718 = vsel %vm716, %v639, 0
      %v721 = vsel %vm716, %v641, 0
      %723 = vmatprep.subr.bf16.mxu0 0
      %724 = vmatpush1.bf16.msra.mxu0 %v692
      %725 = vmatprep.subr.bf16.mxu0 0
      %726 = vmatpush1.bf16.msra.mxu0 %v693
      %727 = vmatprep.subr.bf16.mxu0 0
      %728 = vmatpush1.bf16.msra.mxu0 %v694
      %729 = vmatprep.subr.bf16.mxu0 0
      %730 = vmatpush1.bf16.msra.mxu0 %v695
      %731 = vmatprep.subr.bf16.mxu0 0
      %732 = vmatpush1.bf16.msra.mxu0 %v696
      %733 = vmatprep.subr.bf16.mxu0 0
      %734 = vmatpush1.bf16.msra.mxu0 %v697
      %735 = vmatprep.subr.bf16.mxu0 0
      %736 = vmatpush1.bf16.msra.mxu0 %v698
      %737 = vmatprep.subr.bf16.mxu0 0
      %738 = vmatpush1.bf16.msra.mxu0 %v699
      %739 = vmatprep.subr.bf16.mxu0 0
      %740 = vmatpush1.bf16.msra.mxu0 %v700
      %741 = vmatprep.subr.bf16.mxu0 0
      %742 = vmatpush1.bf16.msra.mxu0 %v701
      %743 = vmatprep.subr.bf16.mxu0 0
      %744 = vmatpush1.bf16.msra.mxu0 %v702
      %745 = vmatprep.subr.bf16.mxu0 0
      %746 = vmatpush1.bf16.msra.mxu0 %v703
      %747 = vmatprep.subr.bf16.mxu0 0
      %748 = vmatpush1.bf16.msra.mxu0 0
      %749 = vmatprep.subr.bf16.mxu0 0
      %750 = vmatpush1.bf16.msra.mxu0 0
      %751 = vmatprep.subr.bf16.mxu0 0
      %752 = vmatpush1.bf16.msra.mxu0 0
      %753 = vmatprep.subr.bf16.mxu0 0
      %754 = vmatpush1.bf16.msra.mxu0 0
      %755 = vmatprep.mubr.bf16.mxu0 %v718
      %756 = vmatmul.mubr.bf16.gmra.mrb[0].mxu0 %v638
      %v757 = vpop.f32.mrb[0].mxu0
      %v758 = vadd.f32 0.0, %v757
      %v759 = vpop.f32.mrb[0].mxu0
      %v760 = vpop.f32.mrb[0].mxu0
      %v761 = vadd.f32 0.0, %v760
      %v762 = vpop.f32.mrb[0].mxu0
      %763 = vmatprep.mubr.bf16.mxu0 %v721
      %764 = vmatmul.mubr.bf16.gmra.mrb[0].mxu0 %v640
      %v765 = vpop.f32.mrb[0].mxu0
      %v766 = vadd.f32 0.0, %v765
      %v767 = vpop.f32.mrb[0].mxu0
      %v768 = vpop.f32.mrb[0].mxu0
      %v769 = vpop.f32.mrb[0].mxu0
      %770 = vdwg.mxu0
      %v771 = vld [vmem:[%s2] sm:$0xff]
      %v772 = vld [vmem:[%s2 + $0x8] sm:$0xff]
      %v773 = vld [vmem:[%s2 + $0x10] sm:$0xff]
      %v774 = vadd.f32 %v758, %v771
      %v775 = vadd.f32 %v761, %v772
      %v776 = vadd.f32 %v766, %v773
      %v777 = vlaneseq
      %v778 = vand.u32 %v777, 127
      %vm779 = vcmp.ge.s32.totalorder %v778, 17
      %v780 = vsel %vm779, -1e+30, 0.0
      %v781 = vld [vmem:[%s3] sm:$0x1]
      %v782 = vld [vmem:[%s4] sm:$0x1]
      %783 = vadd.xlane.f32.xlu0 %v774
      %v784 = vpop.xlane.xlu0 %783
      %785 = vadd.xlane.f32.xlu0 %v775
      %v786 = vpop.xlane.xlu0 %785
      %787 = vadd.xlane.f32.xlu0 %v776
      %v788 = vpop.xlane.xlu0 %787
      %v789 = vrcp.pop 128.0
      %v790 = vmul.f32 %v784, %v789
      %v791 = vmul.f32 %v786, %v789
      %v792 = vmul.f32 %v788, %v789
      %v793 = vsub.f32 %v774, %v790
      %v794 = vsub.f32 %v775, %v791
      %v795 = vsub.f32 %v776, %v792
      %v796 = vmul.f32 %v793, %v793
      %v797 = vmul.f32 %v794, %v794
      %v798 = vmul.f32 %v795, %v795
      %799 = vadd.xlane.f32.xlu0 %v796
      %v800 = vpop.xlane.xlu0 %799
      %801 = vadd.xlane.f32.xlu0 %v797
      %v802 = vpop.xlane.xlu0 %801
      %803 = vadd.xlane.f32.xlu0 %v798
      %v804 = vpop.xlane.xlu0 %803
      %v805 = vmul.f32 %v800, %v789
      %v806 = vmul.f32 %v802, %v789
      %v807 = vmul.f32 %v804, %v789
      %v808 = vadd.f32 %v805, 1e-05
      %v809 = vadd.f32 %v806, 1e-05
      %v810 = vadd.f32 %v807, 1e-05
      %v811 = vrsqrt.pop %v808
      %v812 = vrsqrt.pop %v809
      %v813 = vrsqrt.pop %v810
      %v814 = vmul.f32 %v793, %v811
      %v815 = vmul.f32 %v794, %v812
      %v816 = vmul.f32 %v795, %v813
      %v818 = vlaneseq
      %v819 = vshrl.u32 %v818, 7
      %v820 = vsub.s32 0, %v819
      %v821 = vrot.slane %v781, %v820
      %v823 = vmul.f32 %v814, %v821
      %v824 = vmul.f32 %v815, %v821
      %v825 = vmul.f32 %v816, %v821
      %v827 = vlaneseq
      %v828 = vshrl.u32 %v827, 7
      %v829 = vsub.s32 0, %v828
      %v830 = vrot.slane %v782, %v829
      %v832 = vadd.f32 %v823, %v830
      %v833 = vadd.f32 %v824, %v830
      %v834 = vadd.f32 %v825, %v830
      %v835 = vpack.c.bf16 %v833, %v832
      %v836 = vpack.c.bf16 %v834, %v834
      %v837 = vld [vmem:[%s5] sm:$0xff]
      %v838 = vld [vmem:[%s5 + $0x8] sm:$0xff]
      %v839 = vld [vmem:[%s5 + $0x10] sm:$0xff]
      %v840 = vld [vmem:[%s5 + $0x18] sm:$0xff]
      %v841 = vld [vmem:[%s5 + $0x20] sm:$0xff]
      %v842 = vld [vmem:[%s5 + $0x28] sm:$0xff]
      %v843 = vld [vmem:[%s5 + $0x30] sm:$0xff]
      %v844 = vld [vmem:[%s5 + $0x38] sm:$0xff]
      %v845 = vld [vmem:[%s5 + $0x40] sm:$0xff]
      %v846 = vld [vmem:[%s5 + $0x48] sm:$0xff]
      %v847 = vld [vmem:[%s5 + $0x50] sm:$0xff]
      %v848 = vld [vmem:[%s5 + $0x58] sm:$0xff]
      %v849 = vld [vmem:[%s5 + $0x60] sm:$0xff]
      %v850 = vld [vmem:[%s5 + $0x68] sm:$0xff]
      %v851 = vld [vmem:[%s5 + $0x70] sm:$0xff]
      %v852 = vld [vmem:[%s5 + $0x78] sm:$0xff]
      %v853 = vld [vmem:[%s5 + $0x80] sm:$0xff]
      %v854 = vld [vmem:[%s5 + $0x88] sm:$0xff]
      %v855 = vld [vmem:[%s5 + $0x90] sm:$0xff]
      %v856 = vld [vmem:[%s5 + $0x98] sm:$0xff]
      %v857 = vld [vmem:[%s5 + $0xa0] sm:$0xff]
      %v858 = vld [vmem:[%s5 + $0xa8] sm:$0xff]
      %v859 = vld [vmem:[%s5 + $0xb0] sm:$0xff]
      %v860 = vld [vmem:[%s5 + $0xb8] sm:$0xff]
      %v861 = vld [vmem:[%s5 + $0xc0] sm:$0xff]
      %v862 = vld [vmem:[%s5 + $0xc8] sm:$0xff]
      %v863 = vld [vmem:[%s5 + $0xd0] sm:$0xff]
      %v864 = vld [vmem:[%s5 + $0xd8] sm:$0xff]
      %v865 = vld [vmem:[%s5 + $0xe0] sm:$0xff]
      %v866 = vld [vmem:[%s5 + $0xe8] sm:$0xff]
      %v867 = vld [vmem:[%s5 + $0xf0] sm:$0xff]
      %v868 = vld [vmem:[%s5 + $0xf8] sm:$0xff]
      %v869 = vld [vmem:[%s5 + $0x100] sm:$0xff]
      %v870 = vld [vmem:[%s5 + $0x108] sm:$0xff]
      %v871 = vld [vmem:[%s5 + $0x110] sm:$0xff]
      %v872 = vld [vmem:[%s5 + $0x118] sm:$0xff]
      %v873 = vld [vmem:[%s5 + $0x120] sm:$0xff]
      %v874 = vld [vmem:[%s5 + $0x128] sm:$0xff]
      %v875 = vld [vmem:[%s5 + $0x130] sm:$0xff]
      %v876 = vld [vmem:[%s5 + $0x138] sm:$0xff]
      %v877 = vld [vmem:[%s5 + $0x140] sm:$0xff]
      %v878 = vld [vmem:[%s5 + $0x148] sm:$0xff]
      %v879 = vld [vmem:[%s5 + $0x150] sm:$0xff]
      %v880 = vld [vmem:[%s5 + $0x158] sm:$0xff]
      %v881 = vld [vmem:[%s5 + $0x160] sm:$0xff]
      %v882 = vld [vmem:[%s5 + $0x168] sm:$0xff]
      %v883 = vld [vmem:[%s5 + $0x170] sm:$0xff]
      %v884 = vld [vmem:[%s5 + $0x178] sm:$0xff]
      %v885 = vld [vmem:[%s6] sm:$0x3f]
      %v887 = vlaneseq
      %v888 = vshrl.u32 %v887, 7
      %v889 = vsub.s32 0, %v888
      %v890 = vrot.slane %v885, %v889
      %v891 = vlaneseq
      %v892 = vshrl.u32 %v891, 7
      %v893 = vsub.s32 1, %v892
      %v894 = vrot.slane %v885, %v893
      %v895 = vlaneseq
      %v896 = vshrl.u32 %v895, 7
      %v897 = vsub.s32 2, %v896
      %v898 = vrot.slane %v885, %v897
      %v899 = vlaneseq
      %v900 = vshrl.u32 %v899, 7
      %v901 = vsub.s32 3, %v900
      %v902 = vrot.slane %v885, %v901
      %v903 = vlaneseq
      %v904 = vshrl.u32 %v903, 7
      %v905 = vsub.s32 4, %v904
      %v906 = vrot.slane %v885, %v905
      %v907 = vlaneseq
      %v908 = vshrl.u32 %v907, 7
      %v909 = vsub.s32 5, %v908
      %v910 = vrot.slane %v885, %v909
      %v965 = vunpack.c.l.b16 %v837
      %v966 = vunpack.c.h.b16 %v837
      %v967 = vunpack.c.l.b16 %v838
      %v968 = vunpack.c.h.b16 %v838
      %v969 = vunpack.c.l.b16 %v839
      %v970 = vunpack.c.h.b16 %v839
      %v971 = vunpack.c.l.b16 %v840
      %v972 = vunpack.c.h.b16 %v840
      %v973 = vunpack.c.l.b16 %v841
      %v974 = vunpack.c.h.b16 %v841
      %v975 = vunpack.c.l.b16 %v842
      %v976 = vunpack.c.h.b16 %v842
      %v977 = vunpack.c.l.b16 %v843
      %v978 = vunpack.c.h.b16 %v843
      %v979 = vunpack.c.l.b16 %v844
      %v980 = vunpack.c.h.b16 %v844
      %v981 = vunpack.c.l.b16 %v845
      %v982 = vunpack.c.h.b16 %v845
      %v983 = vunpack.c.l.b16 %v846
      %v984 = vunpack.c.h.b16 %v846
      %v985 = vunpack.c.l.b16 %v847
      %v986 = vunpack.c.h.b16 %v847
      %v987 = vunpack.c.l.b16 %v848
      %v988 = vunpack.c.h.b16 %v848
      %v989 = vunpack.c.l.b16 %v849
      %v990 = vunpack.c.h.b16 %v849
      %v991 = vunpack.c.l.b16 %v850
      %v992 = vunpack.c.h.b16 %v850
      %v993 = vunpack.c.l.b16 %v851
      %v994 = vunpack.c.h.b16 %v851
      %v995 = vunpack.c.l.b16 %v852
      %v996 = vunpack.c.h.b16 %v852
      %v997 = vunpack.c.l.b16 %v853
      %v998 = vunpack.c.h.b16 %v853
      %v999 = vunpack.c.l.b16 %v854
      %v1000 = vunpack.c.h.b16 %v854
      %v1001 = vunpack.c.l.b16 %v855
      %v1002 = vunpack.c.h.b16 %v855
      %v1003 = vunpack.c.l.b16 %v856
      %v1004 = vunpack.c.h.b16 %v856
      %v1005 = vunpack.c.l.b16 %v857
      %v1006 = vunpack.c.h.b16 %v857
      %v1007 = vunpack.c.l.b16 %v858
      %v1008 = vunpack.c.h.b16 %v858
      %v1009 = vunpack.c.l.b16 %v859
      %v1010 = vunpack.c.h.b16 %v859
      %v1011 = vunpack.c.l.b16 %v860
      %v1012 = vunpack.c.h.b16 %v860
      %v1013 = vunpack.c.l.b16 %v861
      %v1014 = vunpack.c.h.b16 %v861
      %v1015 = vunpack.c.l.b16 %v862
      %v1016 = vunpack.c.h.b16 %v862
      %v1017 = vunpack.c.l.b16 %v863
      %v1018 = vunpack.c.h.b16 %v863
      %v1019 = vunpack.c.l.b16 %v864
      %v1020 = vunpack.c.h.b16 %v864
      %v1021 = vunpack.c.l.b16 %v865
      %v1022 = vunpack.c.h.b16 %v865
      %v1023 = vunpack.c.l.b16 %v866
      %v1024 = vunpack.c.h.b16 %v866
      %v1025 = vunpack.c.l.b16 %v867
      %v1026 = vunpack.c.h.b16 %v867
      %v1027 = vunpack.c.l.b16 %v868
      %v1028 = vunpack.c.h.b16 %v868
      %v1029 = vunpack.c.l.b16 %v869
      %v1030 = vunpack.c.h.b16 %v869
      %v1031 = vunpack.c.l.b16 %v870
      %v1032 = vunpack.c.h.b16 %v870
      %v1033 = vunpack.c.l.b16 %v871
      %v1034 = vunpack.c.h.b16 %v871
      %v1035 = vunpack.c.l.b16 %v872
      %v1036 = vunpack.c.h.b16 %v872
      %v1037 = vunpack.c.l.b16 %v873
      %v1038 = vunpack.c.h.b16 %v873
      %v1039 = vunpack.c.l.b16 %v874
      %v1040 = vunpack.c.h.b16 %v874
      %v1041 = vunpack.c.l.b16 %v875
      %v1042 = vunpack.c.h.b16 %v875
      %v1043 = vunpack.c.l.b16 %v876
      %v1044 = vunpack.c.h.b16 %v876
      %v1045 = vunpack.c.l.b16 %v877
      %v1046 = vunpack.c.h.b16 %v877
      %v1047 = vunpack.c.l.b16 %v878
      %v1048 = vunpack.c.h.b16 %v878
      %v1049 = vunpack.c.l.b16 %v879
      %v1050 = vunpack.c.h.b16 %v879
      %v1051 = vunpack.c.l.b16 %v880
      %v1052 = vunpack.c.h.b16 %v880
      %v1053 = vunpack.c.l.b16 %v881
      %v1054 = vunpack.c.h.b16 %v881
      %v1055 = vunpack.c.l.b16 %v882
      %v1056 = vunpack.c.h.b16 %v882
      %v1057 = vunpack.c.l.b16 %v883
      %v1058 = vunpack.c.h.b16 %v883
      %v1059 = vunpack.c.l.b16 %v884
      %v1060 = vunpack.c.h.b16 %v884
      %v1061 = vpack.c.b16 %v971, %v965
      %v1062 = vpack.c.b16 %v972, %v966
      %v1063 = vpack.c.b16 %v973, %v967
      %v1064 = vpack.c.b16 %v974, %v968
      %v1065 = vpack.c.b16 %v975, %v969
      %v1066 = vpack.c.b16 %v976, %v970
      %v1067 = vpack.c.b16 %v983, %v977
      %v1068 = vpack.c.b16 %v984, %v978
      %v1069 = vpack.c.b16 %v985, %v979
      %v1070 = vpack.c.b16 %v986, %v980
      %v1071 = vpack.c.b16 %v987, %v981
      %v1072 = vpack.c.b16 %v988, %v982
      %v1073 = vpack.c.b16 %v995, %v989
      %v1074 = vpack.c.b16 %v996, %v990
      %v1075 = vpack.c.b16 %v997, %v991
      %v1076 = vpack.c.b16 %v998, %v992
      %v1077 = vpack.c.b16 %v999, %v993
      %v1078 = vpack.c.b16 %v1000, %v994
      %v1079 = vpack.c.b16 %v1007, %v1001
      %v1080 = vpack.c.b16 %v1008, %v1002
      %v1081 = vpack.c.b16 %v1009, %v1003
      %v1082 = vpack.c.b16 %v1010, %v1004
      %v1083 = vpack.c.b16 %v1011, %v1005
      %v1084 = vpack.c.b16 %v1012, %v1006
      %v1085 = vpack.c.b16 %v1019, %v1013
      %v1086 = vpack.c.b16 %v1020, %v1014
      %v1087 = vpack.c.b16 %v1021, %v1015
      %v1088 = vpack.c.b16 %v1022, %v1016
      %v1089 = vpack.c.b16 %v1023, %v1017
      %v1090 = vpack.c.b16 %v1024, %v1018
      %v1091 = vpack.c.b16 %v1031, %v1025
      %v1092 = vpack.c.b16 %v1032, %v1026
      %v1093 = vpack.c.b16 %v1033, %v1027
      %v1094 = vpack.c.b16 %v1034, %v1028
      %v1095 = vpack.c.b16 %v1035, %v1029
      %v1096 = vpack.c.b16 %v1036, %v1030
      %v1097 = vpack.c.b16 %v1043, %v1037
      %v1098 = vpack.c.b16 %v1044, %v1038
      %v1099 = vpack.c.b16 %v1045, %v1039
      %v1100 = vpack.c.b16 %v1046, %v1040
      %v1101 = vpack.c.b16 %v1047, %v1041
      %v1102 = vpack.c.b16 %v1048, %v1042
      %v1103 = vpack.c.b16 %v1055, %v1049
      %v1104 = vpack.c.b16 %v1056, %v1050
      %v1105 = vpack.c.b16 %v1057, %v1051
      %v1106 = vpack.c.b16 %v1058, %v1052
      %v1107 = vpack.c.b16 %v1059, %v1053
      %v1108 = vpack.c.b16 %v1060, %v1054
      %1157 = vmatprep.subr.bf16.mxu0 %v1062
      %1158 = vmatpush1.bf16.msra.mxu0 %v1061
      %1159 = vmatprep.subr.bf16.mxu0 %v1068
      %1160 = vmatpush1.bf16.msra.mxu0 %v1067
      %1161 = vmatprep.subr.bf16.mxu0 %v1074
      %1162 = vmatpush1.bf16.msra.mxu0 %v1073
      %1163 = vmatprep.subr.bf16.mxu0 %v1080
      %1164 = vmatpush1.bf16.msra.mxu0 %v1079
      %1165 = vmatprep.subr.bf16.mxu0 %v1086
      %1166 = vmatpush1.bf16.msra.mxu0 %v1085
      %1167 = vmatprep.subr.bf16.mxu0 %v1092
      %1168 = vmatpush1.bf16.msra.mxu0 %v1091
      %1169 = vmatprep.subr.bf16.mxu0 %v1098
      %1170 = vmatpush1.bf16.msra.mxu0 %v1097
      %1171 = vmatprep.subr.bf16.mxu0 %v1104
      %1172 = vmatpush1.bf16.msra.mxu0 %v1103
      %1173 = vmatprep.subr.bf16.mxu0 0
      %1174 = vmatpush1.bf16.msra.mxu0 0
      %1175 = vmatprep.subr.bf16.mxu0 0
      %1176 = vmatpush1.bf16.msra.mxu0 0
      %1177 = vmatprep.subr.bf16.mxu0 0
      %1178 = vmatpush1.bf16.msra.mxu0 0
      %1179 = vmatprep.subr.bf16.mxu0 0
      %1180 = vmatpush1.bf16.msra.mxu0 0
      %1181 = vmatprep.subr.bf16.mxu0 0
      %1182 = vmatpush1.bf16.msra.mxu0 0
      %1183 = vmatprep.subr.bf16.mxu0 0
      %1184 = vmatpush1.bf16.msra.mxu0 0
      %1185 = vmatprep.subr.bf16.mxu0 0
      %1186 = vmatpush1.bf16.msra.mxu0 0
      %1187 = vmatprep.subr.bf16.mxu0 0
      %1188 = vmatpush1.bf16.msra.mxu0 0
      %1189 = vmatprep.mubr.bf16.mxu0 0
      %1190 = vmatmul.mubr.bf16.gmra.mrb[0].mxu0 %v835
      %v1191 = vpop.f32.mrb[0].mxu0
      %v1192 = vadd.f32 %v890, %v1191
      %v1193 = vpop.f32.mrb[0].mxu0
      %v1194 = vadd.f32 %v894, %v1193
      %v1195 = vpop.f32.mrb[0].mxu0
      %v1196 = vadd.f32 %v890, %v1195
      %v1197 = vpop.f32.mrb[0].mxu0
      %v1198 = vadd.f32 %v894, %v1197
      %1199 = vmatprep.mubr.bf16.mxu0 0
      %1200 = vmatmul.mubr.bf16.gmra.mrb[0].mxu0 %v836
      %v1201 = vpop.f32.mrb[0].mxu0
      %v1202 = vadd.f32 %v890, %v1201
      %v1203 = vpop.f32.mrb[0].mxu0
      %v1204 = vadd.f32 %v894, %v1203
      %v1205 = vpop.f32.mrb[0].mxu0
      %v1206 = vpop.f32.mrb[0].mxu0
      %1207 = vdwg.mxu0
      %1208 = vmatprep.subr.bf16.mxu0 %v1064
      %1209 = vmatpush1.bf16.msra.mxu0 %v1063
      %1210 = vmatprep.subr.bf16.mxu0 %v1070
      %1211 = vmatpush1.bf16.msra.mxu0 %v1069
      %1212 = vmatprep.subr.bf16.mxu0 %v1076
      %1213 = vmatpush1.bf16.msra.mxu0 %v1075
      %1214 = vmatprep.subr.bf16.mxu0 %v1082
      %1215 = vmatpush1.bf16.msra.mxu0 %v1081
      %1216 = vmatprep.subr.bf16.mxu0 %v1088
      %1217 = vmatpush1.bf16.msra.mxu0 %v1087
      %1218 = vmatprep.subr.bf16.mxu0 %v1094
      %1219 = vmatpush1.bf16.msra.mxu0 %v1093
      %1220 = vmatprep.subr.bf16.mxu0 %v1100
      %1221 = vmatpush1.bf16.msra.mxu0 %v1099
      %1222 = vmatprep.subr.bf16.mxu0 %v1106
      %1223 = vmatpush1.bf16.msra.mxu0 %v1105
      %1224 = vmatprep.subr.bf16.mxu0 0
      %1225 = vmatpush1.bf16.msra.mxu0 0
      %1226 = vmatprep.subr.bf16.mxu0 0
      %1227 = vmatpush1.bf16.msra.mxu0 0
      %1228 = vmatprep.subr.bf16.mxu0 0
      %1229 = vmatpush1.bf16.msra.mxu0 0
      %1230 = vmatprep.subr.bf16.mxu0 0
      %1231 = vmatpush1.bf16.msra.mxu0 0
      %1232 = vmatprep.subr.bf16.mxu0 0
      %1233 = vmatpush1.bf16.msra.mxu0 0
      %1234 = vmatprep.subr.bf16.mxu0 0
      %1235 = vmatpush1.bf16.msra.mxu0 0
      %1236 = vmatprep.subr.bf16.mxu0 0
      %1237 = vmatpush1.bf16.msra.mxu0 0
      %1238 = vmatprep.subr.bf16.mxu0 0
      %1239 = vmatpush1.bf16.msra.mxu0 0
      %1240 = vmatprep.mubr.bf16.mxu0 0
      %1241 = vmatmul.mubr.bf16.gmra.mrb[0].mxu0 %v835
      %v1242 = vpop.f32.mrb[0].mxu0
      %v1243 = vadd.f32 %v898, %v1242
      %v1244 = vpop.f32.mrb[0].mxu0
      %v1245 = vadd.f32 %v902, %v1244
      %v1246 = vpop.f32.mrb[0].mxu0
      %v1247 = vadd.f32 %v898, %v1246
      %v1248 = vpop.f32.mrb[0].mxu0
      %v1249 = vadd.f32 %v902, %v1248
      %1250 = vmatprep.mubr.bf16.mxu0 0
      %1251 = vmatmul.mubr.bf16.gmra.mrb[0].mxu0 %v836
      %v1252 = vpop.f32.mrb[0].mxu0
      %v1253 = vadd.f32 %v898, %v1252
      %v1254 = vpop.f32.mrb[0].mxu0
      %v1255 = vadd.f32 %v902, %v1254
      %v1256 = vpop.f32.mrb[0].mxu0
      %v1257 = vpop.f32.mrb[0].mxu0
      %1258 = vdwg.mxu0
      %1259 = vmatprep.subr.bf16.mxu0 %v1066
      %1260 = vmatpush1.bf16.msra.mxu0 %v1065
      %1261 = vmatprep.subr.bf16.mxu0 %v1072
      %1262 = vmatpush1.bf16.msra.mxu0 %v1071
      %1263 = vmatprep.subr.bf16.mxu0 %v1078
      %1264 = vmatpush1.bf16.msra.mxu0 %v1077
      %1265 = vmatprep.subr.bf16.mxu0 %v1084
      %1266 = vmatpush1.bf16.msra.mxu0 %v1083
      %1267 = vmatprep.subr.bf16.mxu0 %v1090
      %1268 = vmatpush1.bf16.msra.mxu0 %v1089
      %1269 = vmatprep.subr.bf16.mxu0 %v1096
      %1270 = vmatpush1.bf16.msra.mxu0 %v1095
      %1271 = vmatprep.subr.bf16.mxu0 %v1102
      %1272 = vmatpush1.bf16.msra.mxu0 %v1101
      %1273 = vmatprep.subr.bf16.mxu0 %v1108
      %1274 = vmatpush1.bf16.msra.mxu0 %v1107
      %1275 = vmatprep.subr.bf16.mxu0 0
      %1276 = vmatpush1.bf16.msra.mxu0 0
      %1277 = vmatprep.subr.bf16.mxu0 0
      %1278 = vmatpush1.bf16.msra.mxu0 0
      %1279 = vmatprep.subr.bf16.mxu0 0
      %1280 = vmatpush1.bf16.msra.mxu0 0
      %1281 = vmatprep.subr.bf16.mxu0 0
      %1282 = vmatpush1.bf16.msra.mxu0 0
      %1283 = vmatprep.subr.bf16.mxu0 0
      %1284 = vmatpush1.bf16.msra.mxu0 0
      %1285 = vmatprep.subr.bf16.mxu0 0
      %1286 = vmatpush1.bf16.msra.mxu0 0
      %1287 = vmatprep.subr.bf16.mxu0 0
      %1288 = vmatpush1.bf16.msra.mxu0 0
      %1289 = vmatprep.subr.bf16.mxu0 0
      %1290 = vmatpush1.bf16.msra.mxu0 0
      %1291 = vmatprep.mubr.bf16.mxu0 0
      %1292 = vmatmul.mubr.bf16.gmra.mrb[0].mxu0 %v835
      %v1293 = vpop.f32.mrb[0].mxu0
      %v1294 = vadd.f32 %v906, %v1293
      %v1295 = vpop.f32.mrb[0].mxu0
      %v1296 = vadd.f32 %v910, %v1295
      %v1297 = vpop.f32.mrb[0].mxu0
      %v1298 = vadd.f32 %v906, %v1297
      %v1299 = vpop.f32.mrb[0].mxu0
      %v1300 = vadd.f32 %v910, %v1299
      %1301 = vmatprep.mubr.bf16.mxu0 0
      %1302 = vmatmul.mubr.bf16.gmra.mrb[0].mxu0 %v836
      %v1303 = vpop.f32.mrb[0].mxu0
      %v1304 = vadd.f32 %v906, %v1303
      %v1305 = vpop.f32.mrb[0].mxu0
      %v1306 = vadd.f32 %v910, %v1305
      %v1307 = vpop.f32.mrb[0].mxu0
      %v1308 = vpop.f32.mrb[0].mxu0
      %1309 = vdwg.mxu0
      %v1310 = vpack.c.bf16 %v1196, %v1192
      %v1311 = vpack.c.bf16 %v1202, %v1202
      %v1312 = vpack.c.bf16 %v1247, %v1243
      %v1313 = vpack.c.bf16 %v1253, %v1253
      %v1314 = vpack.c.bf16 %v1298, %v1294
      %v1315 = vpack.c.bf16 %v1304, %v1304
      %1316 = vmatprep.subr.bf16.mxu0 0
      %1317 = vmatpush1.bf16.xpose.msra.mxu0 %v1312
      %1318 = vmatprep.subr.bf16.mxu0 0
      %1319 = vmatpush1.bf16.xpose.msra.mxu0 %v1313
      %1320 = vmatprep.subr.bf16.mxu0 0
      %1321 = vmatpush1.bf16.xpose.msra.mxu0 0
      %1322 = vmatprep.subr.bf16.mxu0 0
      %1323 = vmatpush1.bf16.xpose.msra.mxu0 0
      %1324 = vmatprep.subr.bf16.mxu0 0
      %1325 = vmatpush1.bf16.xpose.msra.mxu0 0
      %1326 = vmatprep.subr.bf16.mxu0 0
      %1327 = vmatpush1.bf16.xpose.msra.mxu0 0
      %1328 = vmatprep.subr.bf16.mxu0 0
      %1329 = vmatpush1.bf16.xpose.msra.mxu0 0
      %1330 = vmatprep.subr.bf16.mxu0 0
      %1331 = vmatpush1.bf16.xpose.msra.mxu0 0
      %1332 = vmatprep.subr.bf16.mxu0 0
      %1333 = vmatpush1.bf16.xpose.msra.mxu0 0
      %1334 = vmatprep.subr.bf16.mxu0 0
      %1335 = vmatpush1.bf16.xpose.msra.mxu0 0
      %1336 = vmatprep.subr.bf16.mxu0 0
      %1337 = vmatpush1.bf16.xpose.msra.mxu0 0
      %1338 = vmatprep.subr.bf16.mxu0 0
      %1339 = vmatpush1.bf16.xpose.msra.mxu0 0
      %1340 = vmatprep.subr.bf16.mxu0 0
      %1341 = vmatpush1.bf16.xpose.msra.mxu0 0
      %1342 = vmatprep.subr.bf16.mxu0 0
      %1343 = vmatpush1.bf16.xpose.msra.mxu0 0
      %1344 = vmatprep.subr.bf16.mxu0 0
      %1345 = vmatpush1.bf16.xpose.msra.mxu0 0
      %1346 = vmatprep.subr.bf16.mxu0 0
      %1347 = vmatpush1.bf16.xpose.msra.mxu0 0
      %1348 = vmatprep.mubr.bf16.mxu0 0
      %1349 = vmatmul.mubr.bf16.gmra.mrb[0].mxu0 %v1310
      %v1350 = vpop.f32.mrb[0].mxu0
      %v1351 = vadd.f32 0.0, %v1350
      %v1352 = vpop.f32.mrb[0].mxu0
      %v1353 = vpop.f32.mrb[0].mxu0
      %v1354 = vadd.f32 0.0, %v1353
      %v1355 = vpop.f32.mrb[0].mxu0
      %1356 = vmatprep.mubr.bf16.mxu0 0
      %1357 = vmatmul.mubr.bf16.gmra.mrb[0].mxu0 %v1311
      %v1358 = vpop.f32.mrb[0].mxu0
      %v1359 = vadd.f32 0.0, %v1358
      %v1360 = vpop.f32.mrb[0].mxu0
      %v1361 = vpop.f32.mrb[0].mxu0
      %v1362 = vpop.f32.mrb[0].mxu0
      %1363 = vdwg.mxu0
      %v1364 = vmul.f32 %v1351, 0.125
      %v1365 = vmul.f32 %v1354, 0.125
      %v1366 = vmul.f32 %v1359, 0.125
      %v1367 = vadd.f32 %v1364, %v780
      %v1368 = vadd.f32 %v1365, %v780
      %v1369 = vadd.f32 %v1366, %v780
      %vm1370 = vcmask 195584
      %v1371 = vsel %vm1370, %v1367, -inf
      %1372 = vmax.xlane.f32.xlu0 %v1371
      %v1373 = vpop.xlane.xlu0 %1372
      %v1374 = vsel %vm1370, %v1368, -inf
      %1375 = vmax.xlane.f32.xlu0 %v1374
      %v1376 = vpop.xlane.xlu0 %1375
      %v1377 = vsel %vm1370, %v1369, -inf
      %1378 = vmax.xlane.f32.xlu0 %v1377
      %v1379 = vpop.xlane.xlu0 %1378
      %v1380 = vsub.f32 %v1367, %v1373
      %v1381 = vsub.f32 %v1368, %v1376
      %v1382 = vsub.f32 %v1369, %v1379
      %v1383 = vmul.f32 %v1380, 1.442695
      %v1384 = vpow.pop %v1383
      %v1385 = vmul.f32 %v1381, 1.442695
      %v1386 = vpow.pop %v1385
      %v1387 = vmul.f32 %v1382, 1.442695
      %v1388 = vpow.pop %v1387
      %v1389 = vsel %vm1370, %v1384, 0.0
      %1390 = vadd.xlane.f32.xlu0 %v1389
      %v1391 = vpop.xlane.xlu0 %1390
      %v1392 = vsel %vm1370, %v1386, 0.0
      %1393 = vadd.xlane.f32.xlu0 %v1392
      %v1394 = vpop.xlane.xlu0 %1393
      %v1395 = vsel %vm1370, %v1388, 0.0
      %1396 = vadd.xlane.f32.xlu0 %v1395
      %v1397 = vpop.xlane.xlu0 %1396
      %v1398 = vrcp.pop %v1391
      %v1399 = vrcp.pop %v1394
      %v1400 = vrcp.pop %v1397
      %v1401 = vmul.f32 %v1384, %v1398
      %v1402 = vmul.f32 %v1386, %v1399
      %v1403 = vmul.f32 %v1388, %v1400
      %v1404 = vpack.c.bf16 %v1402, %v1401
      %v1405 = vpack.c.bf16 %v1403, %v1403
      %v1407 = vsel %vm1370, %v1404, 0
      %v1410 = vsel %vm1370, %v1405, 0
      %vm1412 = vcmask 1043456
      %v1414 = vsel %vm1412, %v1315, 0
      %1416 = vmatprep.subr.bf16.mxu0 0
      %1417 = vmatpush1.bf16.msra.mxu0 %v1314
      %1418 = vmatprep.subr.bf16.mxu0 0
      %1419 = vmatpush1.bf16.msra.mxu0 %v1414
      %1420 = vmatprep.subr.bf16.mxu0 0
      %1421 = vmatpush1.bf16.msra.mxu0 0
      %1422 = vmatprep.subr.bf16.mxu0 0
      %1423 = vmatpush1.bf16.msra.mxu0 0
      %1424 = vmatprep.subr.bf16.mxu0 0
      %1425 = vmatpush1.bf16.msra.mxu0 0
      %1426 = vmatprep.subr.bf16.mxu0 0
      %1427 = vmatpush1.bf16.msra.mxu0 0
      %1428 = vmatprep.subr.bf16.mxu0 0
      %1429 = vmatpush1.bf16.msra.mxu0 0
      %1430 = vmatprep.subr.bf16.mxu0 0
      %1431 = vmatpush1.bf16.msra.mxu0 0
      %1432 = vmatprep.subr.bf16.mxu0 0
      %1433 = vmatpush1.bf16.msra.mxu0 0
      %1434 = vmatprep.subr.bf16.mxu0 0
      %1435 = vmatpush1.bf16.msra.mxu0 0
      %1436 = vmatprep.subr.bf16.mxu0 0
      %1437 = vmatpush1.bf16.msra.mxu0 0
      %1438 = vmatprep.subr.bf16.mxu0 0
      %1439 = vmatpush1.bf16.msra.mxu0 0
      %1440 = vmatprep.subr.bf16.mxu0 0
      %1441 = vmatpush1.bf16.msra.mxu0 0
      %1442 = vmatprep.subr.bf16.mxu0 0
      %1443 = vmatpush1.bf16.msra.mxu0 0
      %1444 = vmatprep.subr.bf16.mxu0 0
      %1445 = vmatpush1.bf16.msra.mxu0 0
      %1446 = vmatprep.subr.bf16.mxu0 0
      %1447 = vmatpush1.bf16.msra.mxu0 0
      %1448 = vmatprep.mubr.bf16.mxu0 0
      %1449 = vmatmul.mubr.bf16.gmra.mrb[0].mxu0 %v1407
      %v1450 = vpop.f32.mrb[0].mxu0
      %v1451 = vadd.f32 0.0, %v1450
      %v1452 = vpop.f32.mrb[0].mxu0
      %v1453 = vpop.f32.mrb[0].mxu0
      %v1454 = vadd.f32 0.0, %v1453
      %v1455 = vpop.f32.mrb[0].mxu0
      %1456 = vmatprep.mubr.bf16.mxu0 0
      %1457 = vmatmul.mubr.bf16.gmra.mrb[0].mxu0 %v1410
      %v1458 = vpop.f32.mrb[0].mxu0
      %v1459 = vadd.f32 0.0, %v1458
      %v1460 = vpop.f32.mrb[0].mxu0
      %v1461 = vpop.f32.mrb[0].mxu0
      %v1462 = vpop.f32.mrb[0].mxu0
      %1463 = vdwg.mxu0
      %v1464 = vpack.c.bf16 %v1454, %v1451
      %v1465 = vpack.c.bf16 %v1459, %v1459
      %v1466 = vld [vmem:[%s7] sm:$0xf]
      %v1467 = vld [vmem:[%s7 + $0x4] sm:$0xf]
      %v1468 = vld [vmem:[%s7 + $0x8] sm:$0xf]
      %v1469 = vld [vmem:[%s7 + $0xc] sm:$0xf]
      %v1470 = vld [vmem:[%s7 + $0x10] sm:$0xf]
      %v1471 = vld [vmem:[%s7 + $0x14] sm:$0xf]
      %v1472 = vld [vmem:[%s7 + $0x18] sm:$0xf]
      %v1473 = vld [vmem:[%s7 + $0x1c] sm:$0xf]
      %v1474 = vld [vmem:[%s7 + $0x20] sm:$0xf]
      %v1475 = vld [vmem:[%s7 + $0x24] sm:$0xf]
      %v1476 = vld [vmem:[%s7 + $0x28] sm:$0xf]
      %v1477 = vld [vmem:[%s7 + $0x2c] sm:$0xf]
      %v1478 = vld [vmem:[%s7 + $0x30] sm:$0xf]
      %v1479 = vld [vmem:[%s7 + $0x34] sm:$0xf]
      %v1480 = vld [vmem:[%s7 + $0x38] sm:$0xf]
      %v1481 = vld [vmem:[%s7 + $0x3c] sm:$0xf]
      %v1482 = vpack.c.bf16 %v1198, %v1194
      %v1483 = vpack.c.bf16 %v1204, %v1204
      %v1484 = vpack.c.bf16 %v1249, %v1245
      %v1485 = vpack.c.bf16 %v1255, %v1255
      %v1486 = vpack.c.bf16 %v1300, %v1296
      %v1487 = vpack.c.bf16 %v1306, %v1306
      %1488 = vmatprep.subr.bf16.mxu0 0
      %1489 = vmatpush1.bf16.xpose.msra.mxu0 %v1484
      %1490 = vmatprep.subr.bf16.mxu0 0
      %1491 = vmatpush1.bf16.xpose.msra.mxu0 %v1485
      %1492 = vmatprep.subr.bf16.mxu0 0
      %1493 = vmatpush1.bf16.xpose.msra.mxu0 0
      %1494 = vmatprep.subr.bf16.mxu0 0
      %1495 = vmatpush1.bf16.xpose.msra.mxu0 0
      %1496 = vmatprep.subr.bf16.mxu0 0
      %1497 = vmatpush1.bf16.xpose.msra.mxu0 0
      %1498 = vmatprep.subr.bf16.mxu0 0
      %1499 = vmatpush1.bf16.xpose.msra.mxu0 0
      %1500 = vmatprep.subr.bf16.mxu0 0
      %1501 = vmatpush1.bf16.xpose.msra.mxu0 0
      %1502 = vmatprep.subr.bf16.mxu0 0
      %1503 = vmatpush1.bf16.xpose.msra.mxu0 0
      %1504 = vmatprep.subr.bf16.mxu0 0
      %1505 = vmatpush1.bf16.xpose.msra.mxu0 0
      %1506 = vmatprep.subr.bf16.mxu0 0
      %1507 = vmatpush1.bf16.xpose.msra.mxu0 0
      %1508 = vmatprep.subr.bf16.mxu0 0
      %1509 = vmatpush1.bf16.xpose.msra.mxu0 0
      %1510 = vmatprep.subr.bf16.mxu0 0
      %1511 = vmatpush1.bf16.xpose.msra.mxu0 0
      %1512 = vmatprep.subr.bf16.mxu0 0
      %1513 = vmatpush1.bf16.xpose.msra.mxu0 0
      %1514 = vmatprep.subr.bf16.mxu0 0
      %1515 = vmatpush1.bf16.xpose.msra.mxu0 0
      %1516 = vmatprep.subr.bf16.mxu0 0
      %1517 = vmatpush1.bf16.xpose.msra.mxu0 0
      %1518 = vmatprep.subr.bf16.mxu0 0
      %1519 = vmatpush1.bf16.xpose.msra.mxu0 0
      %1520 = vmatprep.mubr.bf16.mxu0 0
      %1521 = vmatmul.mubr.bf16.gmra.mrb[0].mxu0 %v1482
      %v1522 = vpop.f32.mrb[0].mxu0
      %v1523 = vadd.f32 0.0, %v1522
      %v1524 = vpop.f32.mrb[0].mxu0
      %v1525 = vpop.f32.mrb[0].mxu0
      %v1526 = vadd.f32 0.0, %v1525
      %v1527 = vpop.f32.mrb[0].mxu0
      %1528 = vmatprep.mubr.bf16.mxu0 0
      %1529 = vmatmul.mubr.bf16.gmra.mrb[0].mxu0 %v1483
      %v1530 = vpop.f32.mrb[0].mxu0
      %v1531 = vadd.f32 0.0, %v1530
      %v1532 = vpop.f32.mrb[0].mxu0
      %v1533 = vpop.f32.mrb[0].mxu0
      %v1534 = vpop.f32.mrb[0].mxu0
      %1535 = vdwg.mxu0
      %v1536 = vmul.f32 %v1523, 0.125
      %v1537 = vmul.f32 %v1526, 0.125
      %v1538 = vmul.f32 %v1531, 0.125
      %v1539 = vadd.f32 %v1536, %v780
      %v1540 = vadd.f32 %v1537, %v780
      %v1541 = vadd.f32 %v1538, %v780
      %v1542 = vsel %vm1370, %v1539, -inf
      %1543 = vmax.xlane.f32.xlu0 %v1542
      %v1544 = vpop.xlane.xlu0 %1543
      %v1545 = vsel %vm1370, %v1540, -inf
      %1546 = vmax.xlane.f32.xlu0 %v1545
      %v1547 = vpop.xlane.xlu0 %1546
      %v1548 = vsel %vm1370, %v1541, -inf
      %1549 = vmax.xlane.f32.xlu0 %v1548
      %v1550 = vpop.xlane.xlu0 %1549
      %v1551 = vsub.f32 %v1539, %v1544
      %v1552 = vsub.f32 %v1540, %v1547
      %v1553 = vsub.f32 %v1541, %v1550
      %v1554 = vmul.f32 %v1551, 1.442695
      %v1555 = vpow.pop %v1554
      %v1556 = vmul.f32 %v1552, 1.442695
      %v1557 = vpow.pop %v1556
      %v1558 = vmul.f32 %v1553, 1.442695
      %v1559 = vpow.pop %v1558
      %v1560 = vsel %vm1370, %v1555, 0.0
      %1561 = vadd.xlane.f32.xlu0 %v1560
      %v1562 = vpop.xlane.xlu0 %1561
      %v1563 = vsel %vm1370, %v1557, 0.0
      %1564 = vadd.xlane.f32.xlu0 %v1563
      %v1565 = vpop.xlane.xlu0 %1564
      %v1566 = vsel %vm1370, %v1559, 0.0
      %1567 = vadd.xlane.f32.xlu0 %v1566
      %v1568 = vpop.xlane.xlu0 %1567
      %v1569 = vrcp.pop %v1562
      %v1570 = vrcp.pop %v1565
      %v1571 = vrcp.pop %v1568
      %v1572 = vmul.f32 %v1555, %v1569
      %v1573 = vmul.f32 %v1557, %v1570
      %v1574 = vmul.f32 %v1559, %v1571
      %v1575 = vpack.c.bf16 %v1573, %v1572
      %v1576 = vpack.c.bf16 %v1574, %v1574
      %v1578 = vsel %vm1370, %v1575, 0
      %v1581 = vsel %vm1370, %v1576, 0
      %v1584 = vsel %vm1412, %v1487, 0
      %1586 = vmatprep.subr.bf16.mxu0 0
      %1587 = vmatpush1.bf16.msra.mxu0 %v1486
      %1588 = vmatprep.subr.bf16.mxu0 0
      %1589 = vmatpush1.bf16.msra.mxu0 %v1584
      %1590 = vmatprep.subr.bf16.mxu0 0
      %1591 = vmatpush1.bf16.msra.mxu0 0
      %1592 = vmatprep.subr.bf16.mxu0 0
      %1593 = vmatpush1.bf16.msra.mxu0 0
      %1594 = vmatprep.subr.bf16.mxu0 0
      %1595 = vmatpush1.bf16.msra.mxu0 0
      %1596 = vmatprep.subr.bf16.mxu0 0
      %1597 = vmatpush1.bf16.msra.mxu0 0
      %1598 = vmatprep.subr.bf16.mxu0 0
      %1599 = vmatpush1.bf16.msra.mxu0 0
      %1600 = vmatprep.subr.bf16.mxu0 0
      %1601 = vmatpush1.bf16.msra.mxu0 0
      %1602 = vmatprep.subr.bf16.mxu0 0
      %1603 = vmatpush1.bf16.msra.mxu0 0
      %1604 = vmatprep.subr.bf16.mxu0 0
      %1605 = vmatpush1.bf16.msra.mxu0 0
      %1606 = vmatprep.subr.bf16.mxu0 0
      %1607 = vmatpush1.bf16.msra.mxu0 0
      %1608 = vmatprep.subr.bf16.mxu0 0
      %1609 = vmatpush1.bf16.msra.mxu0 0
      %1610 = vmatprep.subr.bf16.mxu0 0
      %1611 = vmatpush1.bf16.msra.mxu0 0
      %1612 = vmatprep.subr.bf16.mxu0 0
      %1613 = vmatpush1.bf16.msra.mxu0 0
      %1614 = vmatprep.subr.bf16.mxu0 0
      %1615 = vmatpush1.bf16.msra.mxu0 0
      %1616 = vmatprep.subr.bf16.mxu0 0
      %1617 = vmatpush1.bf16.msra.mxu0 0
      %1618 = vmatprep.mubr.bf16.mxu0 0
      %1619 = vmatmul.mubr.bf16.gmra.mrb[0].mxu0 %v1578
      %v1620 = vpop.f32.mrb[0].mxu0
      %v1621 = vadd.f32 0.0, %v1620
      %v1622 = vpop.f32.mrb[0].mxu0
      %v1623 = vpop.f32.mrb[0].mxu0
      %v1624 = vadd.f32 0.0, %v1623
      %v1625 = vpop.f32.mrb[0].mxu0
      %1626 = vmatprep.mubr.bf16.mxu0 0
      %1627 = vmatmul.mubr.bf16.gmra.mrb[0].mxu0 %v1581
      %v1628 = vpop.f32.mrb[0].mxu0
      %v1629 = vadd.f32 0.0, %v1628
      %v1630 = vpop.f32.mrb[0].mxu0
      %v1631 = vpop.f32.mrb[0].mxu0
      %v1632 = vpop.f32.mrb[0].mxu0
      %1633 = vdwg.mxu0
      %v1634 = vpack.c.bf16 %v1624, %v1621
      %v1635 = vpack.c.bf16 %v1629, %v1629
      %s1636 = scalar_lea.vmem %s7, 64
      %v1637 = vld [vmem:[%s1636] sm:$0xf]
      %v1638 = vld [vmem:[%s1636 + $0x4] sm:$0xf]
      %v1639 = vld [vmem:[%s1636 + $0x8] sm:$0xf]
      %v1640 = vld [vmem:[%s1636 + $0xc] sm:$0xf]
      %v1641 = vld [vmem:[%s1636 + $0x10] sm:$0xf]
      %v1642 = vld [vmem:[%s1636 + $0x14] sm:$0xf]
      %v1643 = vld [vmem:[%s1636 + $0x18] sm:$0xf]
      %v1644 = vld [vmem:[%s1636 + $0x1c] sm:$0xf]
      %v1645 = vld [vmem:[%s1636 + $0x20] sm:$0xf]
      %v1646 = vld [vmem:[%s1636 + $0x24] sm:$0xf]
      %v1647 = vld [vmem:[%s1636 + $0x28] sm:$0xf]
      %v1648 = vld [vmem:[%s1636 + $0x2c] sm:$0xf]
      %v1649 = vld [vmem:[%s1636 + $0x30] sm:$0xf]
      %v1650 = vld [vmem:[%s1636 + $0x34] sm:$0xf]
      %v1651 = vld [vmem:[%s1636 + $0x38] sm:$0xf]
      %v1652 = vld [vmem:[%s1636 + $0x3c] sm:$0xf]
      %v1669 = vunpack.c.l.b16 %v1637
      %v1670 = vunpack.c.l.b16 %v1638
      %v1671 = vunpack.c.l.b16 %v1639
      %v1672 = vunpack.c.l.b16 %v1640
      %v1673 = vunpack.c.l.b16 %v1641
      %v1674 = vunpack.c.l.b16 %v1642
      %v1675 = vunpack.c.l.b16 %v1643
      %v1676 = vunpack.c.l.b16 %v1644
      %v1677 = vunpack.c.l.b16 %v1645
      %v1678 = vunpack.c.l.b16 %v1646
      %v1679 = vunpack.c.l.b16 %v1647
      %v1680 = vunpack.c.l.b16 %v1648
      %v1681 = vunpack.c.l.b16 %v1649
      %v1682 = vunpack.c.l.b16 %v1650
      %v1683 = vunpack.c.l.b16 %v1651
      %v1684 = vunpack.c.l.b16 %v1652
      %v1685 = vpack.c.b16 %v1670, %v1669
      %v1686 = vpack.c.b16 %v1672, %v1671
      %v1687 = vpack.c.b16 %v1674, %v1673
      %v1688 = vpack.c.b16 %v1676, %v1675
      %v1689 = vpack.c.b16 %v1678, %v1677
      %v1690 = vpack.c.b16 %v1680, %v1679
      %v1691 = vpack.c.b16 %v1682, %v1681
      %v1692 = vpack.c.b16 %v1684, %v1683
      %1701 = vmatprep.subr.bf16.mxu0 0
      %1702 = vmatpush1.bf16.msra.mxu0 %v1685
      %1703 = vmatprep.subr.bf16.mxu0 0
      %1704 = vmatpush1.bf16.msra.mxu0 %v1686
      %1705 = vmatprep.subr.bf16.mxu0 0
      %1706 = vmatpush1.bf16.msra.mxu0 %v1687
      %1707 = vmatprep.subr.bf16.mxu0 0
      %1708 = vmatpush1.bf16.msra.mxu0 %v1688
      %1709 = vmatprep.subr.bf16.mxu0 0
      %1710 = vmatpush1.bf16.msra.mxu0 %v1689
      %1711 = vmatprep.subr.bf16.mxu0 0
      %1712 = vmatpush1.bf16.msra.mxu0 %v1690
      %1713 = vmatprep.subr.bf16.mxu0 0
      %1714 = vmatpush1.bf16.msra.mxu0 %v1691
      %1715 = vmatprep.subr.bf16.mxu0 0
      %1716 = vmatpush1.bf16.msra.mxu0 %v1692
      %1717 = vmatprep.subr.bf16.mxu0 0
      %1718 = vmatpush1.bf16.msra.mxu0 0
      %1719 = vmatprep.subr.bf16.mxu0 0
      %1720 = vmatpush1.bf16.msra.mxu0 0
      %1721 = vmatprep.subr.bf16.mxu0 0
      %1722 = vmatpush1.bf16.msra.mxu0 0
      %1723 = vmatprep.subr.bf16.mxu0 0
      %1724 = vmatpush1.bf16.msra.mxu0 0
      %1725 = vmatprep.subr.bf16.mxu0 0
      %1726 = vmatpush1.bf16.msra.mxu0 0
      %1727 = vmatprep.subr.bf16.mxu0 0
      %1728 = vmatpush1.bf16.msra.mxu0 0
      %1729 = vmatprep.subr.bf16.mxu0 0
      %1730 = vmatpush1.bf16.msra.mxu0 0
      %1731 = vmatprep.subr.bf16.mxu0 0
      %1732 = vmatpush1.bf16.msra.mxu0 0
      %1733 = vmatprep.mubr.bf16.mxu0 0
      %1734 = vmatmul.mubr.bf16.gmra.mrb[0].mxu0 %v1634
      %v1735 = vpop.f32.mrb[0].mxu0
      %v1736 = vadd.f32 0.0, %v1735
      %v1737 = vpop.f32.mrb[0].mxu0
      %v1738 = vpop.f32.mrb[0].mxu0
      %v1739 = vadd.f32 0.0, %v1738
      %v1740 = vpop.f32.mrb[0].mxu0
      %1741 = vmatprep.mubr.bf16.mxu0 0
      %1742 = vmatmul.mubr.bf16.gmra.mrb[0].mxu0 %v1635
      %v1743 = vpop.f32.mrb[0].mxu0
      %v1744 = vadd.f32 0.0, %v1743
      %v1745 = vpop.f32.mrb[0].mxu0
      %v1746 = vpop.f32.mrb[0].mxu0
      %v1747 = vpop.f32.mrb[0].mxu0
      %1748 = vdwg.mxu0
      %v1765 = vunpack.c.l.b16 %v1466
      %v1766 = vunpack.c.l.b16 %v1467
      %v1767 = vunpack.c.l.b16 %v1468
      %v1768 = vunpack.c.l.b16 %v1469
      %v1769 = vunpack.c.l.b16 %v1470
      %v1770 = vunpack.c.l.b16 %v1471
      %v1771 = vunpack.c.l.b16 %v1472
      %v1772 = vunpack.c.l.b16 %v1473
      %v1773 = vunpack.c.l.b16 %v1474
      %v1774 = vunpack.c.l.b16 %v1475
      %v1775 = vunpack.c.l.b16 %v1476
      %v1776 = vunpack.c.l.b16 %v1477
      %v1777 = vunpack.c.l.b16 %v1478
      %v1778 = vunpack.c.l.b16 %v1479
      %v1779 = vunpack.c.l.b16 %v1480
      %v1780 = vunpack.c.l.b16 %v1481
      %v1781 = vpack.c.b16 %v1766, %v1765
      %v1782 = vpack.c.b16 %v1768, %v1767
      %v1783 = vpack.c.b16 %v1770, %v1769
      %v1784 = vpack.c.b16 %v1772, %v1771
      %v1785 = vpack.c.b16 %v1774, %v1773
      %v1786 = vpack.c.b16 %v1776, %v1775
      %v1787 = vpack.c.b16 %v1778, %v1777
      %v1788 = vpack.c.b16 %v1780, %v1779
      %1797 = vmatprep.subr.bf16.mxu0 0
      %1798 = vmatpush1.bf16.msra.mxu0 %v1781
      %1799 = vmatprep.subr.bf16.mxu0 0
      %1800 = vmatpush1.bf16.msra.mxu0 %v1782
      %1801 = vmatprep.subr.bf16.mxu0 0
      %1802 = vmatpush1.bf16.msra.mxu0 %v1783
      %1803 = vmatprep.subr.bf16.mxu0 0
      %1804 = vmatpush1.bf16.msra.mxu0 %v1784
      %1805 = vmatprep.subr.bf16.mxu0 0
      %1806 = vmatpush1.bf16.msra.mxu0 %v1785
      %1807 = vmatprep.subr.bf16.mxu0 0
      %1808 = vmatpush1.bf16.msra.mxu0 %v1786
      %1809 = vmatprep.subr.bf16.mxu0 0
      %1810 = vmatpush1.bf16.msra.mxu0 %v1787
      %1811 = vmatprep.subr.bf16.mxu0 0
      %1812 = vmatpush1.bf16.msra.mxu0 %v1788
      %1813 = vmatprep.subr.bf16.mxu0 0
      %1814 = vmatpush1.bf16.msra.mxu0 0
      %1815 = vmatprep.subr.bf16.mxu0 0
      %1816 = vmatpush1.bf16.msra.mxu0 0
      %1817 = vmatprep.subr.bf16.mxu0 0
      %1818 = vmatpush1.bf16.msra.mxu0 0
      %1819 = vmatprep.subr.bf16.mxu0 0
      %1820 = vmatpush1.bf16.msra.mxu0 0
      %1821 = vmatprep.subr.bf16.mxu0 0
      %1822 = vmatpush1.bf16.msra.mxu0 0
      %1823 = vmatprep.subr.bf16.mxu0 0
      %1824 = vmatpush1.bf16.msra.mxu0 0
      %1825 = vmatprep.subr.bf16.mxu0 0
      %1826 = vmatpush1.bf16.msra.mxu0 0
      %1827 = vmatprep.subr.bf16.mxu0 0
      %1828 = vmatpush1.bf16.msra.mxu0 0
      %1829 = vmatprep.mubr.bf16.mxu0 0
      %1830 = vmatmul.mubr.bf16.gmra.mrb[0].mxu0 %v1464
      %v1831 = vpop.f32.mrb[0].mxu0
      %v1832 = vadd.f32 %v1736, %v1831
      %v1833 = vpop.f32.mrb[0].mxu0
      %v1834 = vpop.f32.mrb[0].mxu0
      %v1835 = vadd.f32 %v1739, %v1834
      %v1836 = vpop.f32.mrb[0].mxu0
      %1837 = vmatprep.mubr.bf16.mxu0 0
      %1838 = vmatmul.mubr.bf16.gmra.mrb[0].mxu0 %v1465
      %v1839 = vpop.f32.mrb[0].mxu0
      %v1840 = vadd.f32 %v1744, %v1839
      %v1841 = vpop.f32.mrb[0].mxu0
      %v1842 = vpop.f32.mrb[0].mxu0
      %v1843 = vpop.f32.mrb[0].mxu0
      %1844 = vdwg.mxu0
      %v1845 = vadd.f32 %v774, %v1832
      %v1846 = vadd.f32 %v775, %v1835
      %v1847 = vadd.f32 %v776, %v1840
      %v1848 = vld [vmem:[%s8] sm:$0x1]
      %v1850 = vlaneseq
      %v1851 = vshrl.u32 %v1850, 7
      %v1852 = vsub.s32 0, %v1851
      %v1853 = vrot.slane %v1848, %v1852
      %v1855 = vadd.f32 %v1845, %v1853
      %v1856 = vadd.f32 %v1846, %v1853
      %v1857 = vadd.f32 %v1847, %v1853
      %v1858 = vld [vmem:[%s9] sm:$0x1]
      %v1859 = vld [vmem:[%s10] sm:$0x1]
      %1860 = vadd.xlane.f32.xlu0 %v1855
      %v1861 = vpop.xlane.xlu0 %1860
      %1862 = vadd.xlane.f32.xlu0 %v1856
      %v1863 = vpop.xlane.xlu0 %1862
      %1864 = vadd.xlane.f32.xlu0 %v1857
      %v1865 = vpop.xlane.xlu0 %1864
      %v1866 = vmul.f32 %v1861, %v789
      %v1867 = vmul.f32 %v1863, %v789
      %v1868 = vmul.f32 %v1865, %v789
      %v1869 = vsub.f32 %v1855, %v1866
      %v1870 = vsub.f32 %v1856, %v1867
      %v1871 = vsub.f32 %v1857, %v1868
      %v1872 = vmul.f32 %v1869, %v1869
      %v1873 = vmul.f32 %v1870, %v1870
      %v1874 = vmul.f32 %v1871, %v1871
      %1875 = vadd.xlane.f32.xlu0 %v1872
      %v1876 = vpop.xlane.xlu0 %1875
      %1877 = vadd.xlane.f32.xlu0 %v1873
      %v1878 = vpop.xlane.xlu0 %1877
      %1879 = vadd.xlane.f32.xlu0 %v1874
      %v1880 = vpop.xlane.xlu0 %1879
      %v1881 = vmul.f32 %v1876, %v789
      %v1882 = vmul.f32 %v1878, %v789
      %v1883 = vmul.f32 %v1880, %v789
      %v1884 = vadd.f32 %v1881, 1e-05
      %v1885 = vadd.f32 %v1882, 1e-05
      %v1886 = vadd.f32 %v1883, 1e-05
      %v1887 = vrsqrt.pop %v1884
      %v1888 = vrsqrt.pop %v1885
      %v1889 = vrsqrt.pop %v1886
      %v1890 = vmul.f32 %v1869, %v1887
      %v1891 = vmul.f32 %v1870, %v1888
      %v1892 = vmul.f32 %v1871, %v1889
      %v1894 = vlaneseq
      %v1895 = vshrl.u32 %v1894, 7
      %v1896 = vsub.s32 0, %v1895
      %v1897 = vrot.slane %v1858, %v1896
      %v1899 = vmul.f32 %v1890, %v1897
      %v1900 = vmul.f32 %v1891, %v1897
      %v1901 = vmul.f32 %v1892, %v1897
      %v1903 = vlaneseq
      %v1904 = vshrl.u32 %v1903, 7
      %v1905 = vsub.s32 0, %v1904
      %v1906 = vrot.slane %v1859, %v1905
      %v1908 = vadd.f32 %v1899, %v1906
      %v1909 = vadd.f32 %v1900, %v1906
      %v1910 = vadd.f32 %v1901, %v1906
      %v1911 = vpack.c.bf16 %v1909, %v1908
      %v1912 = vpack.c.bf16 %v1910, %v1910
      %v1913 = vld [vmem:[%s11] sm:$0xf]
      %v1914 = vld [vmem:[%s11 + $0x4] sm:$0xf]
      %v1915 = vld [vmem:[%s11 + $0x8] sm:$0xf]
      %v1916 = vld [vmem:[%s11 + $0xc] sm:$0xf]
      %v1917 = vld [vmem:[%s11 + $0x10] sm:$0xf]
      %v1918 = vld [vmem:[%s11 + $0x14] sm:$0xf]
      %v1919 = vld [vmem:[%s11 + $0x18] sm:$0xf]
      %v1920 = vld [vmem:[%s11 + $0x1c] sm:$0xf]
      %v1921 = vld [vmem:[%s11 + $0x20] sm:$0xf]
      %v1922 = vld [vmem:[%s11 + $0x24] sm:$0xf]
      %v1923 = vld [vmem:[%s11 + $0x28] sm:$0xf]
      %v1924 = vld [vmem:[%s11 + $0x2c] sm:$0xf]
      %v1925 = vld [vmem:[%s11 + $0x30] sm:$0xf]
      %v1926 = vld [vmem:[%s11 + $0x34] sm:$0xf]
      %v1927 = vld [vmem:[%s11 + $0x38] sm:$0xf]
      %v1928 = vld [vmem:[%s11 + $0x3c] sm:$0xf]
      %v1929 = vld [vmem:[%s12] sm:$0x1]
      %v1931 = vlaneseq
      %v1932 = vshrl.u32 %v1931, 7
      %v1933 = vsub.s32 0, %v1932
      %v1934 = vrot.slane %v1929, %v1933
      %v1952 = vunpack.c.l.b16 %v1913
      %v1953 = vunpack.c.l.b16 %v1914
      %v1954 = vunpack.c.l.b16 %v1915
      %v1955 = vunpack.c.l.b16 %v1916
      %v1956 = vunpack.c.l.b16 %v1917
      %v1957 = vunpack.c.l.b16 %v1918
      %v1958 = vunpack.c.l.b16 %v1919
      %v1959 = vunpack.c.l.b16 %v1920
      %v1960 = vunpack.c.l.b16 %v1921
      %v1961 = vunpack.c.l.b16 %v1922
      %v1962 = vunpack.c.l.b16 %v1923
      %v1963 = vunpack.c.l.b16 %v1924
      %v1964 = vunpack.c.l.b16 %v1925
      %v1965 = vunpack.c.l.b16 %v1926
      %v1966 = vunpack.c.l.b16 %v1927
      %v1967 = vunpack.c.l.b16 %v1928
      %v1968 = vpack.c.b16 %v1953, %v1952
      %v1969 = vpack.c.b16 %v1955, %v1954
      %v1970 = vpack.c.b16 %v1957, %v1956
      %v1971 = vpack.c.b16 %v1959, %v1958
      %v1972 = vpack.c.b16 %v1961, %v1960
      %v1973 = vpack.c.b16 %v1963, %v1962
      %v1974 = vpack.c.b16 %v1965, %v1964
      %v1975 = vpack.c.b16 %v1967, %v1966
      %1984 = vmatprep.subr.bf16.mxu0 0
      %1985 = vmatpush1.bf16.msra.mxu0 %v1968
      %1986 = vmatprep.subr.bf16.mxu0 0
      %1987 = vmatpush1.bf16.msra.mxu0 %v1969
      %1988 = vmatprep.subr.bf16.mxu0 0
      %1989 = vmatpush1.bf16.msra.mxu0 %v1970
      %1990 = vmatprep.subr.bf16.mxu0 0
      %1991 = vmatpush1.bf16.msra.mxu0 %v1971
      %1992 = vmatprep.subr.bf16.mxu0 0
      %1993 = vmatpush1.bf16.msra.mxu0 %v1972
      %1994 = vmatprep.subr.bf16.mxu0 0
      %1995 = vmatpush1.bf16.msra.mxu0 %v1973
      %1996 = vmatprep.subr.bf16.mxu0 0
      %1997 = vmatpush1.bf16.msra.mxu0 %v1974
      %1998 = vmatprep.subr.bf16.mxu0 0
      %1999 = vmatpush1.bf16.msra.mxu0 %v1975
      %2000 = vmatprep.subr.bf16.mxu0 0
      %2001 = vmatpush1.bf16.msra.mxu0 0
      %2002 = vmatprep.subr.bf16.mxu0 0
      %2003 = vmatpush1.bf16.msra.mxu0 0
      %2004 = vmatprep.subr.bf16.mxu0 0
      %2005 = vmatpush1.bf16.msra.mxu0 0
      %2006 = vmatprep.subr.bf16.mxu0 0
      %2007 = vmatpush1.bf16.msra.mxu0 0
      %2008 = vmatprep.subr.bf16.mxu0 0
      %2009 = vmatpush1.bf16.msra.mxu0 0
      %2010 = vmatprep.subr.bf16.mxu0 0
      %2011 = vmatpush1.bf16.msra.mxu0 0
      %2012 = vmatprep.subr.bf16.mxu0 0
      %2013 = vmatpush1.bf16.msra.mxu0 0
      %2014 = vmatprep.subr.bf16.mxu0 0
      %2015 = vmatpush1.bf16.msra.mxu0 0
      %2016 = vmatprep.mubr.bf16.mxu0 0
      %2017 = vmatmul.mubr.bf16.gmra.mrb[0].mxu0 %v1911
      %v2018 = vpop.f32.mrb[0].mxu0
      %v2019 = vadd.f32 %v1934, %v2018
      %v2020 = vpop.f32.mrb[0].mxu0
      %v2021 = vpop.f32.mrb[0].mxu0
      %v2022 = vadd.f32 %v1934, %v2021
      %v2023 = vpop.f32.mrb[0].mxu0
      %2024 = vmatprep.mubr.bf16.mxu0 0
      %2025 = vmatmul.mubr.bf16.gmra.mrb[0].mxu0 %v1912
      %v2026 = vpop.f32.mrb[0].mxu0
      %v2027 = vadd.f32 %v1934, %v2026
      %v2028 = vpop.f32.mrb[0].mxu0
      %v2029 = vpop.f32.mrb[0].mxu0
      %v2030 = vpop.f32.mrb[0].mxu0
      %2031 = vdwg.mxu0
      %v2032 = vmul.f32 %v2019, 0.5
      %v2033 = vmul.f32 %v2022, 0.5
      %v2034 = vmul.f32 %v2027, 0.5
      %v2035 = vmul.f32 %v2019, 0.70710677
      %v2036 = vmul.f32 %v2022, 0.70710677
      %v2037 = vmul.f32 %v2027, 0.70710677
      %v2038 = vand.u32 2147483647, %v2035
      %v2039 = vand.u32 2147483647, %v2036
      %v2040 = vand.u32 2147483647, %v2037
      %v2041 = vmul.f32 %v2038, 0.3275911
      %v2042 = vmul.f32 %v2039, 0.3275911
      %v2043 = vmul.f32 %v2040, 0.3275911
      %v2044 = vadd.f32 %v2041, 1.0
      %v2045 = vadd.f32 %v2042, 1.0
      %v2046 = vadd.f32 %v2043, 1.0
      %v2047 = vrcp.pop %v2044
      %v2048 = vrcp.pop %v2045
      %v2049 = vrcp.pop %v2046
      %v2050 = vmul.f32 %v2047, 1.0614054
      %v2051 = vmul.f32 %v2048, 1.0614054
      %v2052 = vmul.f32 %v2049, 1.0614054
      %v2053 = vadd.f32 %v2050, -1.4531521
      %v2054 = vadd.f32 %v2051, -1.4531521
      %v2055 = vadd.f32 %v2052, -1.4531521
      %v2056 = vmul.f32 %v2053, %v2047
      %v2057 = vmul.f32 %v2054, %v2048
      %v2058 = vmul.f32 %v2055, %v2049
      %v2059 = vadd.f32 %v2056, 1.4214138
      %v2060 = vadd.f32 %v2057, 1.4214138
      %v2061 = vadd.f32 %v2058, 1.4214138
      %v2062 = vmul.f32 %v2059, %v2047
      %v2063 = vmul.f32 %v2060, %v2048
      %v2064 = vmul.f32 %v2061, %v2049
      %v2065 = vadd.f32 %v2062, -0.28449672
      %v2066 = vadd.f32 %v2063, -0.28449672
      %v2067 = vadd.f32 %v2064, -0.28449672
      %v2068 = vmul.f32 %v2065, %v2047
      %v2069 = vmul.f32 %v2066, %v2048
      %v2070 = vmul.f32 %v2067, %v2049
      %v2071 = vadd.f32 %v2068, 0.2548296
      %v2072 = vadd.f32 %v2069, 0.2548296
      %v2073 = vadd.f32 %v2070, 0.2548296
      %v2074 = vmul.f32 %v2071, %v2047
      %v2075 = vmul.f32 %v2072, %v2048
      %v2076 = vmul.f32 %v2073, %v2049
      %v2077 = vsub.f32 0.0, %v2038
      %v2078 = vsub.f32 0.0, %v2039
      %v2079 = vsub.f32 0.0, %v2040
      %v2080 = vmul.f32 %v2077, %v2038
      %v2081 = vmul.f32 %v2078, %v2039
      %v2082 = vmul.f32 %v2079, %v2040
      %v2083 = vmul.f32 %v2080, 1.442695
      %v2084 = vpow.pop %v2083
      %v2085 = vmul.f32 %v2081, 1.442695
      %v2086 = vpow.pop %v2085
      %v2087 = vmul.f32 %v2082, 1.442695
      %v2088 = vpow.pop %v2087
      %v2089 = vmul.f32 %v2074, %v2084
      %v2090 = vmul.f32 %v2075, %v2086
      %v2091 = vmul.f32 %v2076, %v2088
      %v2092 = vsub.f32 1.0, %v2089
      %v2093 = vsub.f32 1.0, %v2090
      %v2094 = vsub.f32 1.0, %v2091
      %vm2095 = vcmp.ge.f32.partialorder %v2035, 0.0
      %vm2096 = vcmp.ge.f32.partialorder %v2036, 0.0
      %vm2097 = vcmp.ge.f32.partialorder %v2037, 0.0
      %v2098 = vsub.f32 0.0, %v2092
      %v2099 = vsub.f32 0.0, %v2093
      %v2100 = vsub.f32 0.0, %v2094
      %v2101 = vsel %vm2095, %v2092, %v2098
      %v2102 = vsel %vm2096, %v2093, %v2099
      %v2103 = vsel %vm2097, %v2094, %v2100
      %v2104 = vadd.f32 %v2101, 1.0
      %v2105 = vadd.f32 %v2102, 1.0
      %v2106 = vadd.f32 %v2103, 1.0
      %v2107 = vmul.f32 %v2032, %v2104
      %v2108 = vmul.f32 %v2033, %v2105
      %v2109 = vmul.f32 %v2034, %v2106
      %v2110 = vpack.c.bf16 %v2108, %v2107
      %v2111 = vpack.c.bf16 %v2109, %v2109
      %v2112 = vld [vmem:[%s13] sm:$0xf]
      %v2113 = vld [vmem:[%s13 + $0x4] sm:$0xf]
      %v2114 = vld [vmem:[%s13 + $0x8] sm:$0xf]
      %v2115 = vld [vmem:[%s13 + $0xc] sm:$0xf]
      %v2116 = vld [vmem:[%s13 + $0x10] sm:$0xf]
      %v2117 = vld [vmem:[%s13 + $0x14] sm:$0xf]
      %v2118 = vld [vmem:[%s13 + $0x18] sm:$0xf]
      %v2119 = vld [vmem:[%s13 + $0x1c] sm:$0xf]
      %v2120 = vld [vmem:[%s13 + $0x20] sm:$0xf]
      %v2121 = vld [vmem:[%s13 + $0x24] sm:$0xf]
      %v2122 = vld [vmem:[%s13 + $0x28] sm:$0xf]
      %v2123 = vld [vmem:[%s13 + $0x2c] sm:$0xf]
      %v2124 = vld [vmem:[%s13 + $0x30] sm:$0xf]
      %v2125 = vld [vmem:[%s13 + $0x34] sm:$0xf]
      %v2126 = vld [vmem:[%s13 + $0x38] sm:$0xf]
      %v2127 = vld [vmem:[%s13 + $0x3c] sm:$0xf]
      %v2128 = vld [vmem:[%s14] sm:$0x1]
      %v2130 = vlaneseq
      %v2131 = vshrl.u32 %v2130, 7
      %v2132 = vsub.s32 0, %v2131
      %v2133 = vrot.slane %v2128, %v2132
      %v2151 = vunpack.c.l.b16 %v2112
      %v2152 = vunpack.c.l.b16 %v2113
      %v2153 = vunpack.c.l.b16 %v2114
      %v2154 = vunpack.c.l.b16 %v2115
      %v2155 = vunpack.c.l.b16 %v2116
      %v2156 = vunpack.c.l.b16 %v2117
      %v2157 = vunpack.c.l.b16 %v2118
      %v2158 = vunpack.c.l.b16 %v2119
      %v2159 = vunpack.c.l.b16 %v2120
      %v2160 = vunpack.c.l.b16 %v2121
      %v2161 = vunpack.c.l.b16 %v2122
      %v2162 = vunpack.c.l.b16 %v2123
      %v2163 = vunpack.c.l.b16 %v2124
      %v2164 = vunpack.c.l.b16 %v2125
      %v2165 = vunpack.c.l.b16 %v2126
      %v2166 = vunpack.c.l.b16 %v2127
      %v2167 = vpack.c.b16 %v2152, %v2151
      %v2168 = vpack.c.b16 %v2154, %v2153
      %v2169 = vpack.c.b16 %v2156, %v2155
      %v2170 = vpack.c.b16 %v2158, %v2157
      %v2171 = vpack.c.b16 %v2160, %v2159
      %v2172 = vpack.c.b16 %v2162, %v2161
      %v2173 = vpack.c.b16 %v2164, %v2163
      %v2174 = vpack.c.b16 %v2166, %v2165
      %2183 = vmatprep.subr.bf16.mxu0 0
      %2184 = vmatpush1.bf16.msra.mxu0 %v2167
      %2185 = vmatprep.subr.bf16.mxu0 0
      %2186 = vmatpush1.bf16.msra.mxu0 %v2168
      %2187 = vmatprep.subr.bf16.mxu0 0
      %2188 = vmatpush1.bf16.msra.mxu0 %v2169
      %2189 = vmatprep.subr.bf16.mxu0 0
      %2190 = vmatpush1.bf16.msra.mxu0 %v2170
      %2191 = vmatprep.subr.bf16.mxu0 0
      %2192 = vmatpush1.bf16.msra.mxu0 %v2171
      %2193 = vmatprep.subr.bf16.mxu0 0
      %2194 = vmatpush1.bf16.msra.mxu0 %v2172
      %2195 = vmatprep.subr.bf16.mxu0 0
      %2196 = vmatpush1.bf16.msra.mxu0 %v2173
      %2197 = vmatprep.subr.bf16.mxu0 0
      %2198 = vmatpush1.bf16.msra.mxu0 %v2174
      %2199 = vmatprep.subr.bf16.mxu0 0
      %2200 = vmatpush1.bf16.msra.mxu0 0
      %2201 = vmatprep.subr.bf16.mxu0 0
      %2202 = vmatpush1.bf16.msra.mxu0 0
      %2203 = vmatprep.subr.bf16.mxu0 0
      %2204 = vmatpush1.bf16.msra.mxu0 0
      %2205 = vmatprep.subr.bf16.mxu0 0
      %2206 = vmatpush1.bf16.msra.mxu0 0
      %2207 = vmatprep.subr.bf16.mxu0 0
      %2208 = vmatpush1.bf16.msra.mxu0 0
      %2209 = vmatprep.subr.bf16.mxu0 0
      %2210 = vmatpush1.bf16.msra.mxu0 0
      %2211 = vmatprep.subr.bf16.mxu0 0
      %2212 = vmatpush1.bf16.msra.mxu0 0
      %2213 = vmatprep.subr.bf16.mxu0 0
      %2214 = vmatpush1.bf16.msra.mxu0 0
      %2215 = vmatprep.mubr.bf16.mxu0 0
      %2216 = vmatmul.mubr.bf16.gmra.mrb[0].mxu0 %v2110
      %v2217 = vpop.f32.mrb[0].mxu0
      %v2218 = vadd.f32 %v2133, %v2217
      %v2219 = vpop.f32.mrb[0].mxu0
      %v2220 = vpop.f32.mrb[0].mxu0
      %v2221 = vadd.f32 %v2133, %v2220
      %v2222 = vpop.f32.mrb[0].mxu0
      %2223 = vmatprep.mubr.bf16.mxu0 0
      %2224 = vmatmul.mubr.bf16.gmra.mrb[0].mxu0 %v2111
      %v2225 = vpop.f32.mrb[0].mxu0
      %v2226 = vadd.f32 %v2133, %v2225
      %v2227 = vpop.f32.mrb[0].mxu0
      %v2228 = vpop.f32.mrb[0].mxu0
      %v2229 = vpop.f32.mrb[0].mxu0
      %2230 = vdwg.mxu0
      %v2231 = vadd.f32 %v1855, %v2218
      %v2232 = vadd.f32 %v1856, %v2221
      %v2233 = vadd.f32 %v1857, %v2226
      %s2234 = scalar_lea.vmem %s3, 1
      %v2235 = vld [vmem:[%s2234] sm:$0x1]
      %s2236 = scalar_lea.vmem %s4, 1
      %v2237 = vld [vmem:[%s2236] sm:$0x1]
      %2238 = vadd.xlane.f32.xlu0 %v2231
      %v2239 = vpop.xlane.xlu0 %2238
      %2240 = vadd.xlane.f32.xlu0 %v2232
      %v2241 = vpop.xlane.xlu0 %2240
      %2242 = vadd.xlane.f32.xlu0 %v2233
      %v2243 = vpop.xlane.xlu0 %2242
      %v2244 = vmul.f32 %v2239, %v789
      %v2245 = vmul.f32 %v2241, %v789
      %v2246 = vmul.f32 %v2243, %v789
      %v2247 = vsub.f32 %v2231, %v2244
      %v2248 = vsub.f32 %v2232, %v2245
      %v2249 = vsub.f32 %v2233, %v2246
      %v2250 = vmul.f32 %v2247, %v2247
      %v2251 = vmul.f32 %v2248, %v2248
      %v2252 = vmul.f32 %v2249, %v2249
      %2253 = vadd.xlane.f32.xlu0 %v2250
      %v2254 = vpop.xlane.xlu0 %2253
      %2255 = vadd.xlane.f32.xlu0 %v2251
      %v2256 = vpop.xlane.xlu0 %2255
      %2257 = vadd.xlane.f32.xlu0 %v2252
      %v2258 = vpop.xlane.xlu0 %2257
      %v2259 = vmul.f32 %v2254, %v789
      %v2260 = vmul.f32 %v2256, %v789
      %v2261 = vmul.f32 %v2258, %v789
      %v2262 = vadd.f32 %v2259, 1e-05
      %v2263 = vadd.f32 %v2260, 1e-05
      %v2264 = vadd.f32 %v2261, 1e-05
      %v2265 = vrsqrt.pop %v2262
      %v2266 = vrsqrt.pop %v2263
      %v2267 = vrsqrt.pop %v2264
      %v2268 = vmul.f32 %v2247, %v2265
      %v2269 = vmul.f32 %v2248, %v2266
      %v2270 = vmul.f32 %v2249, %v2267
      %v2272 = vlaneseq
      %v2273 = vshrl.u32 %v2272, 7
      %v2274 = vsub.s32 0, %v2273
      %v2275 = vrot.slane %v2235, %v2274
      %v2277 = vmul.f32 %v2268, %v2275
      %v2278 = vmul.f32 %v2269, %v2275
      %v2279 = vmul.f32 %v2270, %v2275
      %v2281 = vlaneseq
      %v2282 = vshrl.u32 %v2281, 7
      %v2283 = vsub.s32 0, %v2282
      %v2284 = vrot.slane %v2237, %v2283
      %v2286 = vadd.f32 %v2277, %v2284
      %v2287 = vadd.f32 %v2278, %v2284
      %v2288 = vadd.f32 %v2279, %v2284
      %v2289 = vpack.c.bf16 %v2287, %v2286
      %v2290 = vpack.c.bf16 %v2288, %v2288
      %s2291 = scalar_lea.vmem %s5, 384
      %v2292 = vld [vmem:[%s2291] sm:$0xff]
      %v2293 = vld [vmem:[%s2291 + $0x8] sm:$0xff]
      %v2294 = vld [vmem:[%s2291 + $0x10] sm:$0xff]
      %v2295 = vld [vmem:[%s2291 + $0x18] sm:$0xff]
      %v2296 = vld [vmem:[%s2291 + $0x20] sm:$0xff]
      %v2297 = vld [vmem:[%s2291 + $0x28] sm:$0xff]
      %v2298 = vld [vmem:[%s2291 + $0x30] sm:$0xff]
      %v2299 = vld [vmem:[%s2291 + $0x38] sm:$0xff]
      %v2300 = vld [vmem:[%s2291 + $0x40] sm:$0xff]
      %v2301 = vld [vmem:[%s2291 + $0x48] sm:$0xff]
      %v2302 = vld [vmem:[%s2291 + $0x50] sm:$0xff]
      %v2303 = vld [vmem:[%s2291 + $0x58] sm:$0xff]
      %v2304 = vld [vmem:[%s2291 + $0x60] sm:$0xff]
      %v2305 = vld [vmem:[%s2291 + $0x68] sm:$0xff]
      %v2306 = vld [vmem:[%s2291 + $0x70] sm:$0xff]
      %v2307 = vld [vmem:[%s2291 + $0x78] sm:$0xff]
      %v2308 = vld [vmem:[%s2291 + $0x80] sm:$0xff]
      %v2309 = vld [vmem:[%s2291 + $0x88] sm:$0xff]
      %v2310 = vld [vmem:[%s2291 + $0x90] sm:$0xff]
      %v2311 = vld [vmem:[%s2291 + $0x98] sm:$0xff]
      %v2312 = vld [vmem:[%s2291 + $0xa0] sm:$0xff]
      %v2313 = vld [vmem:[%s2291 + $0xa8] sm:$0xff]
      %v2314 = vld [vmem:[%s2291 + $0xb0] sm:$0xff]
      %v2315 = vld [vmem:[%s2291 + $0xb8] sm:$0xff]
      %v2316 = vld [vmem:[%s2291 + $0xc0] sm:$0xff]
      %v2317 = vld [vmem:[%s2291 + $0xc8] sm:$0xff]
      %v2318 = vld [vmem:[%s2291 + $0xd0] sm:$0xff]
      %v2319 = vld [vmem:[%s2291 + $0xd8] sm:$0xff]
      %v2320 = vld [vmem:[%s2291 + $0xe0] sm:$0xff]
      %v2321 = vld [vmem:[%s2291 + $0xe8] sm:$0xff]
      %v2322 = vld [vmem:[%s2291 + $0xf0] sm:$0xff]
      %v2323 = vld [vmem:[%s2291 + $0xf8] sm:$0xff]
      %v2324 = vld [vmem:[%s2291 + $0x100] sm:$0xff]
      %v2325 = vld [vmem:[%s2291 + $0x108] sm:$0xff]
      %v2326 = vld [vmem:[%s2291 + $0x110] sm:$0xff]
      %v2327 = vld [vmem:[%s2291 + $0x118] sm:$0xff]
      %v2328 = vld [vmem:[%s2291 + $0x120] sm:$0xff]
      %v2329 = vld [vmem:[%s2291 + $0x128] sm:$0xff]
      %v2330 = vld [vmem:[%s2291 + $0x130] sm:$0xff]
      %v2331 = vld [vmem:[%s2291 + $0x138] sm:$0xff]
      %v2332 = vld [vmem:[%s2291 + $0x140] sm:$0xff]
      %v2333 = vld [vmem:[%s2291 + $0x148] sm:$0xff]
      %v2334 = vld [vmem:[%s2291 + $0x150] sm:$0xff]
      %v2335 = vld [vmem:[%s2291 + $0x158] sm:$0xff]
      %v2336 = vld [vmem:[%s2291 + $0x160] sm:$0xff]
      %v2337 = vld [vmem:[%s2291 + $0x168] sm:$0xff]
      %v2338 = vld [vmem:[%s2291 + $0x170] sm:$0xff]
      %v2339 = vld [vmem:[%s2291 + $0x178] sm:$0xff]
      %s2340 = scalar_lea.vmem %s6, 6
      %v2341 = vld [vmem:[%s2340] sm:$0x3f]
      %v2343 = vlaneseq
      %v2344 = vshrl.u32 %v2343, 7
      %v2345 = vsub.s32 0, %v2344
      %v2346 = vrot.slane %v2341, %v2345
      %v2347 = vlaneseq
      %v2348 = vshrl.u32 %v2347, 7
      %v2349 = vsub.s32 1, %v2348
      %v2350 = vrot.slane %v2341, %v2349
      %v2351 = vlaneseq
      %v2352 = vshrl.u32 %v2351, 7
      %v2353 = vsub.s32 2, %v2352
      %v2354 = vrot.slane %v2341, %v2353
      %v2355 = vlaneseq
      %v2356 = vshrl.u32 %v2355, 7
      %v2357 = vsub.s32 3, %v2356
      %v2358 = vrot.slane %v2341, %v2357
      %v2359 = vlaneseq
      %v2360 = vshrl.u32 %v2359, 7
      %v2361 = vsub.s32 4, %v2360
      %v2362 = vrot.slane %v2341, %v2361
      %v2363 = vlaneseq
      %v2364 = vshrl.u32 %v2363, 7
      %v2365 = vsub.s32 5, %v2364
      %v2366 = vrot.slane %v2341, %v2365
      %v2421 = vunpack.c.l.b16 %v2292
      %v2422 = vunpack.c.h.b16 %v2292
      %v2423 = vunpack.c.l.b16 %v2293
      %v2424 = vunpack.c.h.b16 %v2293
      %v2425 = vunpack.c.l.b16 %v2294
      %v2426 = vunpack.c.h.b16 %v2294
      %v2427 = vunpack.c.l.b16 %v2295
      %v2428 = vunpack.c.h.b16 %v2295
      %v2429 = vunpack.c.l.b16 %v2296
      %v2430 = vunpack.c.h.b16 %v2296
      %v2431 = vunpack.c.l.b16 %v2297
      %v2432 = vunpack.c.h.b16 %v2297
      %v2433 = vunpack.c.l.b16 %v2298
      %v2434 = vunpack.c.h.b16 %v2298
      %v2435 = vunpack.c.l.b16 %v2299
      %v2436 = vunpack.c.h.b16 %v2299
      %v2437 = vunpack.c.l.b16 %v2300
      %v2438 = vunpack.c.h.b16 %v2300
      %v2439 = vunpack.c.l.b16 %v2301
      %v2440 = vunpack.c.h.b16 %v2301
      %v2441 = vunpack.c.l.b16 %v2302
      %v2442 = vunpack.c.h.b16 %v2302
      %v2443 = vunpack.c.l.b16 %v2303
      %v2444 = vunpack.c.h.b16 %v2303
      %v2445 = vunpack.c.l.b16 %v2304
      %v2446 = vunpack.c.h.b16 %v2304
      %v2447 = vunpack.c.l.b16 %v2305
      %v2448 = vunpack.c.h.b16 %v2305
      %v2449 = vunpack.c.l.b16 %v2306
      %v2450 = vunpack.c.h.b16 %v2306
      %v2451 = vunpack.c.l.b16 %v2307
      %v2452 = vunpack.c.h.b16 %v2307
      %v2453 = vunpack.c.l.b16 %v2308
      %v2454 = vunpack.c.h.b16 %v2308
      %v2455 = vunpack.c.l.b16 %v2309
      %v2456 = vunpack.c.h.b16 %v2309
      %v2457 = vunpack.c.l.b16 %v2310
      %v2458 = vunpack.c.h.b16 %v2310
      %v2459 = vunpack.c.l.b16 %v2311
      %v2460 = vunpack.c.h.b16 %v2311
      %v2461 = vunpack.c.l.b16 %v2312
      %v2462 = vunpack.c.h.b16 %v2312
      %v2463 = vunpack.c.l.b16 %v2313
      %v2464 = vunpack.c.h.b16 %v2313
      %v2465 = vunpack.c.l.b16 %v2314
      %v2466 = vunpack.c.h.b16 %v2314
      %v2467 = vunpack.c.l.b16 %v2315
      %v2468 = vunpack.c.h.b16 %v2315
      %v2469 = vunpack.c.l.b16 %v2316
      %v2470 = vunpack.c.h.b16 %v2316
      %v2471 = vunpack.c.l.b16 %v2317
      %v2472 = vunpack.c.h.b16 %v2317
      %v2473 = vunpack.c.l.b16 %v2318
      %v2474 = vunpack.c.h.b16 %v2318
      %v2475 = vunpack.c.l.b16 %v2319
      %v2476 = vunpack.c.h.b16 %v2319
      %v2477 = vunpack.c.l.b16 %v2320
      %v2478 = vunpack.c.h.b16 %v2320
      %v2479 = vunpack.c.l.b16 %v2321
      %v2480 = vunpack.c.h.b16 %v2321
      %v2481 = vunpack.c.l.b16 %v2322
      %v2482 = vunpack.c.h.b16 %v2322
      %v2483 = vunpack.c.l.b16 %v2323
      %v2484 = vunpack.c.h.b16 %v2323
      %v2485 = vunpack.c.l.b16 %v2324
      %v2486 = vunpack.c.h.b16 %v2324
      %v2487 = vunpack.c.l.b16 %v2325
      %v2488 = vunpack.c.h.b16 %v2325
      %v2489 = vunpack.c.l.b16 %v2326
      %v2490 = vunpack.c.h.b16 %v2326
      %v2491 = vunpack.c.l.b16 %v2327
      %v2492 = vunpack.c.h.b16 %v2327
      %v2493 = vunpack.c.l.b16 %v2328
      %v2494 = vunpack.c.h.b16 %v2328
      %v2495 = vunpack.c.l.b16 %v2329
      %v2496 = vunpack.c.h.b16 %v2329
      %v2497 = vunpack.c.l.b16 %v2330
      %v2498 = vunpack.c.h.b16 %v2330
      %v2499 = vunpack.c.l.b16 %v2331
      %v2500 = vunpack.c.h.b16 %v2331
      %v2501 = vunpack.c.l.b16 %v2332
      %v2502 = vunpack.c.h.b16 %v2332
      %v2503 = vunpack.c.l.b16 %v2333
      %v2504 = vunpack.c.h.b16 %v2333
      %v2505 = vunpack.c.l.b16 %v2334
      %v2506 = vunpack.c.h.b16 %v2334
      %v2507 = vunpack.c.l.b16 %v2335
      %v2508 = vunpack.c.h.b16 %v2335
      %v2509 = vunpack.c.l.b16 %v2336
      %v2510 = vunpack.c.h.b16 %v2336
      %v2511 = vunpack.c.l.b16 %v2337
      %v2512 = vunpack.c.h.b16 %v2337
      %v2513 = vunpack.c.l.b16 %v2338
      %v2514 = vunpack.c.h.b16 %v2338
      %v2515 = vunpack.c.l.b16 %v2339
      %v2516 = vunpack.c.h.b16 %v2339
      %v2517 = vpack.c.b16 %v2427, %v2421
      %v2518 = vpack.c.b16 %v2428, %v2422
      %v2519 = vpack.c.b16 %v2429, %v2423
      %v2520 = vpack.c.b16 %v2430, %v2424
      %v2521 = vpack.c.b16 %v2431, %v2425
      %v2522 = vpack.c.b16 %v2432, %v2426
      %v2523 = vpack.c.b16 %v2439, %v2433
      %v2524 = vpack.c.b16 %v2440, %v2434
      %v2525 = vpack.c.b16 %v2441, %v2435
      %v2526 = vpack.c.b16 %v2442, %v2436
      %v2527 = vpack.c.b16 %v2443, %v2437
      %v2528 = vpack.c.b16 %v2444, %v2438
      %v2529 = vpack.c.b16 %v2451, %v2445
      %v2530 = vpack.c.b16 %v2452, %v2446
      %v2531 = vpack.c.b16 %v2453, %v2447
      %v2532 = vpack.c.b16 %v2454, %v2448
      %v2533 = vpack.c.b16 %v2455, %v2449
      %v2534 = vpack.c.b16 %v2456, %v2450
      %v2535 = vpack.c.b16 %v2463, %v2457
      %v2536 = vpack.c.b16 %v2464, %v2458
      %v2537 = vpack.c.b16 %v2465, %v2459
      %v2538 = vpack.c.b16 %v2466, %v2460
      %v2539 = vpack.c.b16 %v2467, %v2461
      %v2540 = vpack.c.b16 %v2468, %v2462
      %v2541 = vpack.c.b16 %v2475, %v2469
      %v2542 = vpack.c.b16 %v2476, %v2470
      %v2543 = vpack.c.b16 %v2477, %v2471
      %v2544 = vpack.c.b16 %v2478, %v2472
      %v2545 = vpack.c.b16 %v2479, %v2473
      %v2546 = vpack.c.b16 %v2480, %v2474
      %v2547 = vpack.c.b16 %v2487, %v2481
      %v2548 = vpack.c.b16 %v2488, %v2482
      %v2549 = vpack.c.b16 %v2489, %v2483
      %v2550 = vpack.c.b16 %v2490, %v2484
      %v2551 = vpack.c.b16 %v2491, %v2485
      %v2552 = vpack.c.b16 %v2492, %v2486
      %v2553 = vpack.c.b16 %v2499, %v2493
      %v2554 = vpack.c.b16 %v2500, %v2494
      %v2555 = vpack.c.b16 %v2501, %v2495
      %v2556 = vpack.c.b16 %v2502, %v2496
      %v2557 = vpack.c.b16 %v2503, %v2497
      %v2558 = vpack.c.b16 %v2504, %v2498
      %v2559 = vpack.c.b16 %v2511, %v2505
      %v2560 = vpack.c.b16 %v2512, %v2506
      %v2561 = vpack.c.b16 %v2513, %v2507
      %v2562 = vpack.c.b16 %v2514, %v2508
      %v2563 = vpack.c.b16 %v2515, %v2509
      %v2564 = vpack.c.b16 %v2516, %v2510
      %2613 = vmatprep.subr.bf16.mxu0 %v2518
      %2614 = vmatpush1.bf16.msra.mxu0 %v2517
      %2615 = vmatprep.subr.bf16.mxu0 %v2524
      %2616 = vmatpush1.bf16.msra.mxu0 %v2523
      %2617 = vmatprep.subr.bf16.mxu0 %v2530
      %2618 = vmatpush1.bf16.msra.mxu0 %v2529
      %2619 = vmatprep.subr.bf16.mxu0 %v2536
      %2620 = vmatpush1.bf16.msra.mxu0 %v2535
      %2621 = vmatprep.subr.bf16.mxu0 %v2542
      %2622 = vmatpush1.bf16.msra.mxu0 %v2541
      %2623 = vmatprep.subr.bf16.mxu0 %v2548
      %2624 = vmatpush1.bf16.msra.mxu0 %v2547
      %2625 = vmatprep.subr.bf16.mxu0 %v2554
      %2626 = vmatpush1.bf16.msra.mxu0 %v2553
      %2627 = vmatprep.subr.bf16.mxu0 %v2560
      %2628 = vmatpush1.bf16.msra.mxu0 %v2559
      %2629 = vmatprep.subr.bf16.mxu0 0
      %2630 = vmatpush1.bf16.msra.mxu0 0
      %2631 = vmatprep.subr.bf16.mxu0 0
      %2632 = vmatpush1.bf16.msra.mxu0 0
      %2633 = vmatprep.subr.bf16.mxu0 0
      %2634 = vmatpush1.bf16.msra.mxu0 0
      %2635 = vmatprep.subr.bf16.mxu0 0
      %2636 = vmatpush1.bf16.msra.mxu0 0
      %2637 = vmatprep.subr.bf16.mxu0 0
      %2638 = vmatpush1.bf16.msra.mxu0 0
      %2639 = vmatprep.subr.bf16.mxu0 0
      %2640 = vmatpush1.bf16.msra.mxu0 0
      %2641 = vmatprep.subr.bf16.mxu0 0
      %2642 = vmatpush1.bf16.msra.mxu0 0
      %2643 = vmatprep.subr.bf16.mxu0 0
      %2644 = vmatpush1.bf16.msra.mxu0 0
      %2645 = vmatprep.mubr.bf16.mxu0 0
      %2646 = vmatmul.mubr.bf16.gmra.mrb[0].mxu0 %v2289
      %v2647 = vpop.f32.mrb[0].mxu0
      %v2648 = vadd.f32 %v2346, %v2647
      %v2649 = vpop.f32.mrb[0].mxu0
      %v2650 = vadd.f32 %v2350, %v2649
      %v2651 = vpop.f32.mrb[0].mxu0
      %v2652 = vadd.f32 %v2346, %v2651
      %v2653 = vpop.f32.mrb[0].mxu0
      %v2654 = vadd.f32 %v2350, %v2653
      %2655 = vmatprep.mubr.bf16.mxu0 0
      %2656 = vmatmul.mubr.bf16.gmra.mrb[0].mxu0 %v2290
      %v2657 = vpop.f32.mrb[0].mxu0
      %v2658 = vadd.f32 %v2346, %v2657
      %v2659 = vpop.f32.mrb[0].mxu0
      %v2660 = vadd.f32 %v2350, %v2659
      %v2661 = vpop.f32.mrb[0].mxu0
      %v2662 = vpop.f32.mrb[0].mxu0
      %2663 = vdwg.mxu0
      %2664 = vmatprep.subr.bf16.mxu0 %v2520
      %2665 = vmatpush1.bf16.msra.mxu0 %v2519
      %2666 = vmatprep.subr.bf16.mxu0 %v2526
      %2667 = vmatpush1.bf16.msra.mxu0 %v2525
      %2668 = vmatprep.subr.bf16.mxu0 %v2532
      %2669 = vmatpush1.bf16.msra.mxu0 %v2531
      %2670 = vmatprep.subr.bf16.mxu0 %v2538
      %2671 = vmatpush1.bf16.msra.mxu0 %v2537
      %2672 = vmatprep.subr.bf16.mxu0 %v2544
      %2673 = vmatpush1.bf16.msra.mxu0 %v2543
      %2674 = vmatprep.subr.bf16.mxu0 %v2550
      %2675 = vmatpush1.bf16.msra.mxu0 %v2549
      %2676 = vmatprep.subr.bf16.mxu0 %v2556
      %2677 = vmatpush1.bf16.msra.mxu0 %v2555
      %2678 = vmatprep.subr.bf16.mxu0 %v2562
      %2679 = vmatpush1.bf16.msra.mxu0 %v2561
      %2680 = vmatprep.subr.bf16.mxu0 0
      %2681 = vmatpush1.bf16.msra.mxu0 0
      %2682 = vmatprep.subr.bf16.mxu0 0
      %2683 = vmatpush1.bf16.msra.mxu0 0
      %2684 = vmatprep.subr.bf16.mxu0 0
      %2685 = vmatpush1.bf16.msra.mxu0 0
      %2686 = vmatprep.subr.bf16.mxu0 0
      %2687 = vmatpush1.bf16.msra.mxu0 0
      %2688 = vmatprep.subr.bf16.mxu0 0
      %2689 = vmatpush1.bf16.msra.mxu0 0
      %2690 = vmatprep.subr.bf16.mxu0 0
      %2691 = vmatpush1.bf16.msra.mxu0 0
      %2692 = vmatprep.subr.bf16.mxu0 0
      %2693 = vmatpush1.bf16.msra.mxu0 0
      %2694 = vmatprep.subr.bf16.mxu0 0
      %2695 = vmatpush1.bf16.msra.mxu0 0
      %2696 = vmatprep.mubr.bf16.mxu0 0
      %2697 = vmatmul.mubr.bf16.gmra.mrb[0].mxu0 %v2289
      %v2698 = vpop.f32.mrb[0].mxu0
      %v2699 = vadd.f32 %v2354, %v2698
      %v2700 = vpop.f32.mrb[0].mxu0
      %v2701 = vadd.f32 %v2358, %v2700
      %v2702 = vpop.f32.mrb[0].mxu0
      %v2703 = vadd.f32 %v2354, %v2702
      %v2704 = vpop.f32.mrb[0].mxu0
      %v2705 = vadd.f32 %v2358, %v2704
      %2706 = vmatprep.mubr.bf16.mxu0 0
      %2707 = vmatmul.mubr.bf16.gmra.mrb[0].mxu0 %v2290
      %v2708 = vpop.f32.mrb[0].mxu0
      %v2709 = vadd.f32 %v2354, %v2708
      %v2710 = vpop.f32.mrb[0].mxu0
      %v2711 = vadd.f32 %v2358, %v2710
      %v2712 = vpop.f32.mrb[0].mxu0
      %v2713 = vpop.f32.mrb[0].mxu0
      %2714 = vdwg.mxu0
      %2715 = vmatprep.subr.bf16.mxu0 %v2522
      %2716 = vmatpush1.bf16.msra.mxu0 %v2521
      %2717 = vmatprep.subr.bf16.mxu0 %v2528
      %2718 = vmatpush1.bf16.msra.mxu0 %v2527
      %2719 = vmatprep.subr.bf16.mxu0 %v2534
      %2720 = vmatpush1.bf16.msra.mxu0 %v2533
      %2721 = vmatprep.subr.bf16.mxu0 %v2540
      %2722 = vmatpush1.bf16.msra.mxu0 %v2539
      %2723 = vmatprep.subr.bf16.mxu0 %v2546
      %2724 = vmatpush1.bf16.msra.mxu0 %v2545
      %2725 = vmatprep.subr.bf16.mxu0 %v2552
      %2726 = vmatpush1.bf16.msra.mxu0 %v2551
      %2727 = vmatprep.subr.bf16.mxu0 %v2558
      %2728 = vmatpush1.bf16.msra.mxu0 %v2557
      %2729 = vmatprep.subr.bf16.mxu0 %v2564
      %2730 = vmatpush1.bf16.msra.mxu0 %v2563
      %2731 = vmatprep.subr.bf16.mxu0 0
      %2732 = vmatpush1.bf16.msra.mxu0 0
      %2733 = vmatprep.subr.bf16.mxu0 0
      %2734 = vmatpush1.bf16.msra.mxu0 0
      %2735 = vmatprep.subr.bf16.mxu0 0
      %2736 = vmatpush1.bf16.msra.mxu0 0
      %2737 = vmatprep.subr.bf16.mxu0 0
      %2738 = vmatpush1.bf16.msra.mxu0 0
      %2739 = vmatprep.subr.bf16.mxu0 0
      %2740 = vmatpush1.bf16.msra.mxu0 0
      %2741 = vmatprep.subr.bf16.mxu0 0
      %2742 = vmatpush1.bf16.msra.mxu0 0
      %2743 = vmatprep.subr.bf16.mxu0 0
      %2744 = vmatpush1.bf16.msra.mxu0 0
      %2745 = vmatprep.subr.bf16.mxu0 0
      %2746 = vmatpush1.bf16.msra.mxu0 0
      %2747 = vmatprep.mubr.bf16.mxu0 0
      %2748 = vmatmul.mubr.bf16.gmra.mrb[0].mxu0 %v2289
      %v2749 = vpop.f32.mrb[0].mxu0
      %v2750 = vadd.f32 %v2362, %v2749
      %v2751 = vpop.f32.mrb[0].mxu0
      %v2752 = vadd.f32 %v2366, %v2751
      %v2753 = vpop.f32.mrb[0].mxu0
      %v2754 = vadd.f32 %v2362, %v2753
      %v2755 = vpop.f32.mrb[0].mxu0
      %v2756 = vadd.f32 %v2366, %v2755
      %2757 = vmatprep.mubr.bf16.mxu0 0
      %2758 = vmatmul.mubr.bf16.gmra.mrb[0].mxu0 %v2290
      %v2759 = vpop.f32.mrb[0].mxu0
      %v2760 = vadd.f32 %v2362, %v2759
      %v2761 = vpop.f32.mrb[0].mxu0
      %v2762 = vadd.f32 %v2366, %v2761
      %v2763 = vpop.f32.mrb[0].mxu0
      %v2764 = vpop.f32.mrb[0].mxu0
      %2765 = vdwg.mxu0
      %v2766 = vpack.c.bf16 %v2652, %v2648
      %v2767 = vpack.c.bf16 %v2658, %v2658
      %v2768 = vpack.c.bf16 %v2703, %v2699
      %v2769 = vpack.c.bf16 %v2709, %v2709
      %v2770 = vpack.c.bf16 %v2754, %v2750
      %v2771 = vpack.c.bf16 %v2760, %v2760
      %2772 = vmatprep.subr.bf16.mxu0 0
      %2773 = vmatpush1.bf16.xpose.msra.mxu0 %v2768
      %2774 = vmatprep.subr.bf16.mxu0 0
      %2775 = vmatpush1.bf16.xpose.msra.mxu0 %v2769
      %2776 = vmatprep.subr.bf16.mxu0 0
      %2777 = vmatpush1.bf16.xpose.msra.mxu0 0
      %2778 = vmatprep.subr.bf16.mxu0 0
      %2779 = vmatpush1.bf16.xpose.msra.mxu0 0
      %2780 = vmatprep.subr.bf16.mxu0 0
      %2781 = vmatpush1.bf16.xpose.msra.mxu0 0
      %2782 = vmatprep.subr.bf16.mxu0 0
      %2783 = vmatpush1.bf16.xpose.msra.mxu0 0
      %2784 = vmatprep.subr.bf16.mxu0 0
      %2785 = vmatpush1.bf16.xpose.msra.mxu0 0
      %2786 = vmatprep.subr.bf16.mxu0 0
      %2787 = vmatpush1.bf16.xpose.msra.mxu0 0
      %2788 = vmatprep.subr.bf16.mxu0 0
      %2789 = vmatpush1.bf16.xpose.msra.mxu0 0
      %2790 = vmatprep.subr.bf16.mxu0 0
      %2791 = vmatpush1.bf16.xpose.msra.mxu0 0
      %2792 = vmatprep.subr.bf16.mxu0 0
      %2793 = vmatpush1.bf16.xpose.msra.mxu0 0
      %2794 = vmatprep.subr.bf16.mxu0 0
      %2795 = vmatpush1.bf16.xpose.msra.mxu0 0
      %2796 = vmatprep.subr.bf16.mxu0 0
      %2797 = vmatpush1.bf16.xpose.msra.mxu0 0
      %2798 = vmatprep.subr.bf16.mxu0 0
      %2799 = vmatpush1.bf16.xpose.msra.mxu0 0
      %2800 = vmatprep.subr.bf16.mxu0 0
      %2801 = vmatpush1.bf16.xpose.msra.mxu0 0
      %2802 = vmatprep.subr.bf16.mxu0 0
      %2803 = vmatpush1.bf16.xpose.msra.mxu0 0
      %2804 = vmatprep.mubr.bf16.mxu0 0
      %2805 = vmatmul.mubr.bf16.gmra.mrb[0].mxu0 %v2766
      %v2806 = vpop.f32.mrb[0].mxu0
      %v2807 = vadd.f32 0.0, %v2806
      %v2808 = vpop.f32.mrb[0].mxu0
      %v2809 = vpop.f32.mrb[0].mxu0
      %v2810 = vadd.f32 0.0, %v2809
      %v2811 = vpop.f32.mrb[0].mxu0
      %2812 = vmatprep.mubr.bf16.mxu0 0
      %2813 = vmatmul.mubr.bf16.gmra.mrb[0].mxu0 %v2767
      %v2814 = vpop.f32.mrb[0].mxu0
      %v2815 = vadd.f32 0.0, %v2814
      %v2816 = vpop.f32.mrb[0].mxu0
      %v2817 = vpop.f32.mrb[0].mxu0
      %v2818 = vpop.f32.mrb[0].mxu0
      %2819 = vdwg.mxu0
      %v2820 = vmul.f32 %v2807, 0.125
      %v2821 = vmul.f32 %v2810, 0.125
      %v2822 = vmul.f32 %v2815, 0.125
      %v2823 = vadd.f32 %v2820, %v780
      %v2824 = vadd.f32 %v2821, %v780
      %v2825 = vadd.f32 %v2822, %v780
      %v2826 = vsel %vm1370, %v2823, -inf
      %2827 = vmax.xlane.f32.xlu0 %v2826
      %v2828 = vpop.xlane.xlu0 %2827
      %v2829 = vsel %vm1370, %v2824, -inf
      %2830 = vmax.xlane.f32.xlu0 %v2829
      %v2831 = vpop.xlane.xlu0 %2830
      %v2832 = vsel %vm1370, %v2825, -inf
      %2833 = vmax.xlane.f32.xlu0 %v2832
      %v2834 = vpop.xlane.xlu0 %2833
      %v2835 = vsub.f32 %v2823, %v2828
      %v2836 = vsub.f32 %v2824, %v2831
      %v2837 = vsub.f32 %v2825, %v2834
      %v2838 = vmul.f32 %v2835, 1.442695
      %v2839 = vpow.pop %v2838
      %v2840 = vmul.f32 %v2836, 1.442695
      %v2841 = vpow.pop %v2840
      %v2842 = vmul.f32 %v2837, 1.442695
      %v2843 = vpow.pop %v2842
      %v2844 = vsel %vm1370, %v2839, 0.0
      %2845 = vadd.xlane.f32.xlu0 %v2844
      %v2846 = vpop.xlane.xlu0 %2845
      %v2847 = vsel %vm1370, %v2841, 0.0
      %2848 = vadd.xlane.f32.xlu0 %v2847
      %v2849 = vpop.xlane.xlu0 %2848
      %v2850 = vsel %vm1370, %v2843, 0.0
      %2851 = vadd.xlane.f32.xlu0 %v2850
      %v2852 = vpop.xlane.xlu0 %2851
      %v2853 = vrcp.pop %v2846
      %v2854 = vrcp.pop %v2849
      %v2855 = vrcp.pop %v2852
      %v2856 = vmul.f32 %v2839, %v2853
      %v2857 = vmul.f32 %v2841, %v2854
      %v2858 = vmul.f32 %v2843, %v2855
      %v2859 = vpack.c.bf16 %v2857, %v2856
      %v2860 = vpack.c.bf16 %v2858, %v2858
      %v2862 = vsel %vm1370, %v2859, 0
      %v2865 = vsel %vm1370, %v2860, 0
      %v2868 = vsel %vm1412, %v2771, 0
      %2870 = vmatprep.subr.bf16.mxu0 0
      %2871 = vmatpush1.bf16.msra.mxu0 %v2770
      %2872 = vmatprep.subr.bf16.mxu0 0
      %2873 = vmatpush1.bf16.msra.mxu0 %v2868
      %2874 = vmatprep.subr.bf16.mxu0 0
      %2875 = vmatpush1.bf16.msra.mxu0 0
      %2876 = vmatprep.subr.bf16.mxu0 0
      %2877 = vmatpush1.bf16.msra.mxu0 0
      %2878 = vmatprep.subr.bf16.mxu0 0
      %2879 = vmatpush1.bf16.msra.mxu0 0
      %2880 = vmatprep.subr.bf16.mxu0 0
      %2881 = vmatpush1.bf16.msra.mxu0 0
      %2882 = vmatprep.subr.bf16.mxu0 0
      %2883 = vmatpush1.bf16.msra.mxu0 0
      %2884 = vmatprep.subr.bf16.mxu0 0
      %2885 = vmatpush1.bf16.msra.mxu0 0
      %2886 = vmatprep.subr.bf16.mxu0 0
      %2887 = vmatpush1.bf16.msra.mxu0 0
      %2888 = vmatprep.subr.bf16.mxu0 0
      %2889 = vmatpush1.bf16.msra.mxu0 0
      %2890 = vmatprep.subr.bf16.mxu0 0
      %2891 = vmatpush1.bf16.msra.mxu0 0
      %2892 = vmatprep.subr.bf16.mxu0 0
      %2893 = vmatpush1.bf16.msra.mxu0 0
      %2894 = vmatprep.subr.bf16.mxu0 0
      %2895 = vmatpush1.bf16.msra.mxu0 0
      %2896 = vmatprep.subr.bf16.mxu0 0
      %2897 = vmatpush1.bf16.msra.mxu0 0
      %2898 = vmatprep.subr.bf16.mxu0 0
      %2899 = vmatpush1.bf16.msra.mxu0 0
      %2900 = vmatprep.subr.bf16.mxu0 0
      %2901 = vmatpush1.bf16.msra.mxu0 0
      %2902 = vmatprep.mubr.bf16.mxu0 0
      %2903 = vmatmul.mubr.bf16.gmra.mrb[0].mxu0 %v2862
      %v2904 = vpop.f32.mrb[0].mxu0
      %v2905 = vadd.f32 0.0, %v2904
      %v2906 = vpop.f32.mrb[0].mxu0
      %v2907 = vpop.f32.mrb[0].mxu0
      %v2908 = vadd.f32 0.0, %v2907
      %v2909 = vpop.f32.mrb[0].mxu0
      %2910 = vmatprep.mubr.bf16.mxu0 0
      %2911 = vmatmul.mubr.bf16.gmra.mrb[0].mxu0 %v2865
      %v2912 = vpop.f32.mrb[0].mxu0
      %v2913 = vadd.f32 0.0, %v2912
      %v2914 = vpop.f32.mrb[0].mxu0
      %v2915 = vpop.f32.mrb[0].mxu0
      %v2916 = vpop.f32.mrb[0].mxu0
      %2917 = vdwg.mxu0
      %v2918 = vpack.c.bf16 %v2908, %v2905
      %v2919 = vpack.c.bf16 %v2913, %v2913
      %s2920 = scalar_lea.vmem %s7, 128
      %v2921 = vld [vmem:[%s2920] sm:$0xf]
      %v2922 = vld [vmem:[%s2920 + $0x4] sm:$0xf]
      %v2923 = vld [vmem:[%s2920 + $0x8] sm:$0xf]
      %v2924 = vld [vmem:[%s2920 + $0xc] sm:$0xf]
      %v2925 = vld [vmem:[%s2920 + $0x10] sm:$0xf]
      %v2926 = vld [vmem:[%s2920 + $0x14] sm:$0xf]
      %v2927 = vld [vmem:[%s2920 + $0x18] sm:$0xf]
      %v2928 = vld [vmem:[%s2920 + $0x1c] sm:$0xf]
      %v2929 = vld [vmem:[%s2920 + $0x20] sm:$0xf]
      %v2930 = vld [vmem:[%s2920 + $0x24] sm:$0xf]
      %v2931 = vld [vmem:[%s2920 + $0x28] sm:$0xf]
      %v2932 = vld [vmem:[%s2920 + $0x2c] sm:$0xf]
      %v2933 = vld [vmem:[%s2920 + $0x30] sm:$0xf]
      %v2934 = vld [vmem:[%s2920 + $0x34] sm:$0xf]
      %v2935 = vld [vmem:[%s2920 + $0x38] sm:$0xf]
      %v2936 = vld [vmem:[%s2920 + $0x3c] sm:$0xf]
      %v2937 = vpack.c.bf16 %v2654, %v2650
      %v2938 = vpack.c.bf16 %v2660, %v2660
      %v2939 = vpack.c.bf16 %v2705, %v2701
      %v2940 = vpack.c.bf16 %v2711, %v2711
      %v2941 = vpack.c.bf16 %v2756, %v2752
      %v2942 = vpack.c.bf16 %v2762, %v2762
      %2943 = vmatprep.subr.bf16.mxu0 0
      %2944 = vmatpush1.bf16.xpose.msra.mxu0 %v2939
      %2945 = vmatprep.subr.bf16.mxu0 0
      %2946 = vmatpush1.bf16.xpose.msra.mxu0 %v2940
      %2947 = vmatprep.subr.bf16.mxu0 0
      %2948 = vmatpush1.bf16.xpose.msra.mxu0 0
      %2949 = vmatprep.subr.bf16.mxu0 0
      %2950 = vmatpush1.bf16.xpose.msra.mxu0 0
      %2951 = vmatprep.subr.bf16.mxu0 0
      %2952 = vmatpush1.bf16.xpose.msra.mxu0 0
      %2953 = vmatprep.subr.bf16.mxu0 0
      %2954 = vmatpush1.bf16.xpose.msra.mxu0 0
      %2955 = vmatprep.subr.bf16.mxu0 0
      %2956 = vmatpush1.bf16.xpose.msra.mxu0 0
      %2957 = vmatprep.subr.bf16.mxu0 0
      %2958 = vmatpush1.bf16.xpose.msra.mxu0 0
      %2959 = vmatprep.subr.bf16.mxu0 0
      %2960 = vmatpush1.bf16.xpose.msra.mxu0 0
      %2961 = vmatprep.subr.bf16.mxu0 0
      %2962 = vmatpush1.bf16.xpose.msra.mxu0 0
      %2963 = vmatprep.subr.bf16.mxu0 0
      %2964 = vmatpush1.bf16.xpose.msra.mxu0 0
      %2965 = vmatprep.subr.bf16.mxu0 0
      %2966 = vmatpush1.bf16.xpose.msra.mxu0 0
      %2967 = vmatprep.subr.bf16.mxu0 0
      %2968 = vmatpush1.bf16.xpose.msra.mxu0 0
      %2969 = vmatprep.subr.bf16.mxu0 0
      %2970 = vmatpush1.bf16.xpose.msra.mxu0 0
      %2971 = vmatprep.subr.bf16.mxu0 0
      %2972 = vmatpush1.bf16.xpose.msra.mxu0 0
      %2973 = vmatprep.subr.bf16.mxu0 0
      %2974 = vmatpush1.bf16.xpose.msra.mxu0 0
      %2975 = vmatprep.mubr.bf16.mxu0 0
      %2976 = vmatmul.mubr.bf16.gmra.mrb[0].mxu0 %v2937
      %v2977 = vpop.f32.mrb[0].mxu0
      %v2978 = vadd.f32 0.0, %v2977
      %v2979 = vpop.f32.mrb[0].mxu0
      %v2980 = vpop.f32.mrb[0].mxu0
      %v2981 = vadd.f32 0.0, %v2980
      %v2982 = vpop.f32.mrb[0].mxu0
      %2983 = vmatprep.mubr.bf16.mxu0 0
      %2984 = vmatmul.mubr.bf16.gmra.mrb[0].mxu0 %v2938
      %v2985 = vpop.f32.mrb[0].mxu0
      %v2986 = vadd.f32 0.0, %v2985
      %v2987 = vpop.f32.mrb[0].mxu0
      %v2988 = vpop.f32.mrb[0].mxu0
      %v2989 = vpop.f32.mrb[0].mxu0
      %2990 = vdwg.mxu0
      %v2991 = vmul.f32 %v2978, 0.125
      %v2992 = vmul.f32 %v2981, 0.125
      %v2993 = vmul.f32 %v2986, 0.125
      %v2994 = vadd.f32 %v2991, %v780
      %v2995 = vadd.f32 %v2992, %v780
      %v2996 = vadd.f32 %v2993, %v780
      %v2997 = vsel %vm1370, %v2994, -inf
      %2998 = vmax.xlane.f32.xlu0 %v2997
      %v2999 = vpop.xlane.xlu0 %2998
      %v3000 = vsel %vm1370, %v2995, -inf
      %3001 = vmax.xlane.f32.xlu0 %v3000
      %v3002 = vpop.xlane.xlu0 %3001
      %v3003 = vsel %vm1370, %v2996, -inf
      %3004 = vmax.xlane.f32.xlu0 %v3003
      %v3005 = vpop.xlane.xlu0 %3004
      %v3006 = vsub.f32 %v2994, %v2999
      %v3007 = vsub.f32 %v2995, %v3002
      %v3008 = vsub.f32 %v2996, %v3005
      %v3009 = vmul.f32 %v3006, 1.442695
      %v3010 = vpow.pop %v3009
      %v3011 = vmul.f32 %v3007, 1.442695
      %v3012 = vpow.pop %v3011
      %v3013 = vmul.f32 %v3008, 1.442695
      %v3014 = vpow.pop %v3013
      %v3015 = vsel %vm1370, %v3010, 0.0
      %3016 = vadd.xlane.f32.xlu0 %v3015
      %v3017 = vpop.xlane.xlu0 %3016
      %v3018 = vsel %vm1370, %v3012, 0.0
      %3019 = vadd.xlane.f32.xlu0 %v3018
      %v3020 = vpop.xlane.xlu0 %3019
      %v3021 = vsel %vm1370, %v3014, 0.0
      %3022 = vadd.xlane.f32.xlu0 %v3021
      %v3023 = vpop.xlane.xlu0 %3022
      %v3024 = vrcp.pop %v3017
      %v3025 = vrcp.pop %v3020
      %v3026 = vrcp.pop %v3023
      %v3027 = vmul.f32 %v3010, %v3024
      %v3028 = vmul.f32 %v3012, %v3025
      %v3029 = vmul.f32 %v3014, %v3026
      %v3030 = vpack.c.bf16 %v3028, %v3027
      %v3031 = vpack.c.bf16 %v3029, %v3029
      %v3033 = vsel %vm1370, %v3030, 0
      %v3036 = vsel %vm1370, %v3031, 0
      %v3039 = vsel %vm1412, %v2942, 0
      %3041 = vmatprep.subr.bf16.mxu0 0
      %3042 = vmatpush1.bf16.msra.mxu0 %v2941
      %3043 = vmatprep.subr.bf16.mxu0 0
      %3044 = vmatpush1.bf16.msra.mxu0 %v3039
      %3045 = vmatprep.subr.bf16.mxu0 0
      %3046 = vmatpush1.bf16.msra.mxu0 0
      %3047 = vmatprep.subr.bf16.mxu0 0
      %3048 = vmatpush1.bf16.msra.mxu0 0
      %3049 = vmatprep.subr.bf16.mxu0 0
      %3050 = vmatpush1.bf16.msra.mxu0 0
      %3051 = vmatprep.subr.bf16.mxu0 0
      %3052 = vmatpush1.bf16.msra.mxu0 0
      %3053 = vmatprep.subr.bf16.mxu0 0
      %3054 = vmatpush1.bf16.msra.mxu0 0
      %3055 = vmatprep.subr.bf16.mxu0 0
      %3056 = vmatpush1.bf16.msra.mxu0 0
      %3057 = vmatprep.subr.bf16.mxu0 0
      %3058 = vmatpush1.bf16.msra.mxu0 0
      %3059 = vmatprep.subr.bf16.mxu0 0
      %3060 = vmatpush1.bf16.msra.mxu0 0
      %3061 = vmatprep.subr.bf16.mxu0 0
      %3062 = vmatpush1.bf16.msra.mxu0 0
      %3063 = vmatprep.subr.bf16.mxu0 0
      %3064 = vmatpush1.bf16.msra.mxu0 0
      %3065 = vmatprep.subr.bf16.mxu0 0
      %3066 = vmatpush1.bf16.msra.mxu0 0
      %3067 = vmatprep.subr.bf16.mxu0 0
      %3068 = vmatpush1.bf16.msra.mxu0 0
      %3069 = vmatprep.subr.bf16.mxu0 0
      %3070 = vmatpush1.bf16.msra.mxu0 0
      %3071 = vmatprep.subr.bf16.mxu0 0
      %3072 = vmatpush1.bf16.msra.mxu0 0
      %3073 = vmatprep.mubr.bf16.mxu0 0
      %3074 = vmatmul.mubr.bf16.gmra.mrb[0].mxu0 %v3033
      %v3075 = vpop.f32.mrb[0].mxu0
      %v3076 = vadd.f32 0.0, %v3075
      %v3077 = vpop.f32.mrb[0].mxu0
      %v3078 = vpop.f32.mrb[0].mxu0
      %v3079 = vadd.f32 0.0, %v3078
      %v3080 = vpop.f32.mrb[0].mxu0
      %3081 = vmatprep.mubr.bf16.mxu0 0
      %3082 = vmatmul.mubr.bf16.gmra.mrb[0].mxu0 %v3036
      %v3083 = vpop.f32.mrb[0].mxu0
      %v3084 = vadd.f32 0.0, %v3083
      %v3085 = vpop.f32.mrb[0].mxu0
      %v3086 = vpop.f32.mrb[0].mxu0
      %v3087 = vpop.f32.mrb[0].mxu0
      %3088 = vdwg.mxu0
      %v3089 = vpack.c.bf16 %v3079, %v3076
      %v3090 = vpack.c.bf16 %v3084, %v3084
      %s3091 = scalar_lea.vmem %s7, 192
      %v3092 = vld [vmem:[%s3091] sm:$0xf]
      %v3093 = vld [vmem:[%s3091 + $0x4] sm:$0xf]
      %v3094 = vld [vmem:[%s3091 + $0x8] sm:$0xf]
      %v3095 = vld [vmem:[%s3091 + $0xc] sm:$0xf]
      %v3096 = vld [vmem:[%s3091 + $0x10] sm:$0xf]
      %v3097 = vld [vmem:[%s3091 + $0x14] sm:$0xf]
      %v3098 = vld [vmem:[%s3091 + $0x18] sm:$0xf]
      %v3099 = vld [vmem:[%s3091 + $0x1c] sm:$0xf]
      %v3100 = vld [vmem:[%s3091 + $0x20] sm:$0xf]
      %v3101 = vld [vmem:[%s3091 + $0x24] sm:$0xf]
      %v3102 = vld [vmem:[%s3091 + $0x28] sm:$0xf]
      %v3103 = vld [vmem:[%s3091 + $0x2c] sm:$0xf]
      %v3104 = vld [vmem:[%s3091 + $0x30] sm:$0xf]
      %v3105 = vld [vmem:[%s3091 + $0x34] sm:$0xf]
      %v3106 = vld [vmem:[%s3091 + $0x38] sm:$0xf]
      %v3107 = vld [vmem:[%s3091 + $0x3c] sm:$0xf]
      %v3124 = vunpack.c.l.b16 %v3092
      %v3125 = vunpack.c.l.b16 %v3093
      %v3126 = vunpack.c.l.b16 %v3094
      %v3127 = vunpack.c.l.b16 %v3095
      %v3128 = vunpack.c.l.b16 %v3096
      %v3129 = vunpack.c.l.b16 %v3097
      %v3130 = vunpack.c.l.b16 %v3098
      %v3131 = vunpack.c.l.b16 %v3099
      %v3132 = vunpack.c.l.b16 %v3100
      %v3133 = vunpack.c.l.b16 %v3101
      %v3134 = vunpack.c.l.b16 %v3102
      %v3135 = vunpack.c.l.b16 %v3103
      %v3136 = vunpack.c.l.b16 %v3104
      %v3137 = vunpack.c.l.b16 %v3105
      %v3138 = vunpack.c.l.b16 %v3106
      %v3139 = vunpack.c.l.b16 %v3107
      %v3140 = vpack.c.b16 %v3125, %v3124
      %v3141 = vpack.c.b16 %v3127, %v3126
      %v3142 = vpack.c.b16 %v3129, %v3128
      %v3143 = vpack.c.b16 %v3131, %v3130
      %v3144 = vpack.c.b16 %v3133, %v3132
      %v3145 = vpack.c.b16 %v3135, %v3134
      %v3146 = vpack.c.b16 %v3137, %v3136
      %v3147 = vpack.c.b16 %v3139, %v3138
      %3156 = vmatprep.subr.bf16.mxu0 0
      %3157 = vmatpush1.bf16.msra.mxu0 %v3140
      %3158 = vmatprep.subr.bf16.mxu0 0
      %3159 = vmatpush1.bf16.msra.mxu0 %v3141
      %3160 = vmatprep.subr.bf16.mxu0 0
      %3161 = vmatpush1.bf16.msra.mxu0 %v3142
      %3162 = vmatprep.subr.bf16.mxu0 0
      %3163 = vmatpush1.bf16.msra.mxu0 %v3143
      %3164 = vmatprep.subr.bf16.mxu0 0
      %3165 = vmatpush1.bf16.msra.mxu0 %v3144
      %3166 = vmatprep.subr.bf16.mxu0 0
      %3167 = vmatpush1.bf16.msra.mxu0 %v3145
      %3168 = vmatprep.subr.bf16.mxu0 0
      %3169 = vmatpush1.bf16.msra.mxu0 %v3146
      %3170 = vmatprep.subr.bf16.mxu0 0
      %3171 = vmatpush1.bf16.msra.mxu0 %v3147
      %3172 = vmatprep.subr.bf16.mxu0 0
      %3173 = vmatpush1.bf16.msra.mxu0 0
      %3174 = vmatprep.subr.bf16.mxu0 0
      %3175 = vmatpush1.bf16.msra.mxu0 0
      %3176 = vmatprep.subr.bf16.mxu0 0
      %3177 = vmatpush1.bf16.msra.mxu0 0
      %3178 = vmatprep.subr.bf16.mxu0 0
      %3179 = vmatpush1.bf16.msra.mxu0 0
      %3180 = vmatprep.subr.bf16.mxu0 0
      %3181 = vmatpush1.bf16.msra.mxu0 0
      %3182 = vmatprep.subr.bf16.mxu0 0
      %3183 = vmatpush1.bf16.msra.mxu0 0
      %3184 = vmatprep.subr.bf16.mxu0 0
      %3185 = vmatpush1.bf16.msra.mxu0 0
      %3186 = vmatprep.subr.bf16.mxu0 0
      %3187 = vmatpush1.bf16.msra.mxu0 0
      %3188 = vmatprep.mubr.bf16.mxu0 0
      %3189 = vmatmul.mubr.bf16.gmra.mrb[0].mxu0 %v3089
      %v3190 = vpop.f32.mrb[0].mxu0
      %v3191 = vadd.f32 0.0, %v3190
      %v3192 = vpop.f32.mrb[0].mxu0
      %v3193 = vpop.f32.mrb[0].mxu0
      %v3194 = vadd.f32 0.0, %v3193
      %v3195 = vpop.f32.mrb[0].mxu0
      %3196 = vmatprep.mubr.bf16.mxu0 0
      %3197 = vmatmul.mubr.bf16.gmra.mrb[0].mxu0 %v3090
      %v3198 = vpop.f32.mrb[0].mxu0
      %v3199 = vadd.f32 0.0, %v3198
      %v3200 = vpop.f32.mrb[0].mxu0
      %v3201 = vpop.f32.mrb[0].mxu0
      %v3202 = vpop.f32.mrb[0].mxu0
      %3203 = vdwg.mxu0
      %v3220 = vunpack.c.l.b16 %v2921
      %v3221 = vunpack.c.l.b16 %v2922
      %v3222 = vunpack.c.l.b16 %v2923
      %v3223 = vunpack.c.l.b16 %v2924
      %v3224 = vunpack.c.l.b16 %v2925
      %v3225 = vunpack.c.l.b16 %v2926
      %v3226 = vunpack.c.l.b16 %v2927
      %v3227 = vunpack.c.l.b16 %v2928
      %v3228 = vunpack.c.l.b16 %v2929
      %v3229 = vunpack.c.l.b16 %v2930
      %v3230 = vunpack.c.l.b16 %v2931
      %v3231 = vunpack.c.l.b16 %v2932
      %v3232 = vunpack.c.l.b16 %v2933
      %v3233 = vunpack.c.l.b16 %v2934
      %v3234 = vunpack.c.l.b16 %v2935
      %v3235 = vunpack.c.l.b16 %v2936
      %v3236 = vpack.c.b16 %v3221, %v3220
      %v3237 = vpack.c.b16 %v3223, %v3222
      %v3238 = vpack.c.b16 %v3225, %v3224
      %v3239 = vpack.c.b16 %v3227, %v3226
      %v3240 = vpack.c.b16 %v3229, %v3228
      %v3241 = vpack.c.b16 %v3231, %v3230
      %v3242 = vpack.c.b16 %v3233, %v3232
      %v3243 = vpack.c.b16 %v3235, %v3234
      %3252 = vmatprep.subr.bf16.mxu0 0
      %3253 = vmatpush1.bf16.msra.mxu0 %v3236
      %3254 = vmatprep.subr.bf16.mxu0 0
      %3255 = vmatpush1.bf16.msra.mxu0 %v3237
      %3256 = vmatprep.subr.bf16.mxu0 0
      %3257 = vmatpush1.bf16.msra.mxu0 %v3238
      %3258 = vmatprep.subr.bf16.mxu0 0
      %3259 = vmatpush1.bf16.msra.mxu0 %v3239
      %3260 = vmatprep.subr.bf16.mxu0 0
      %3261 = vmatpush1.bf16.msra.mxu0 %v3240
      %3262 = vmatprep.subr.bf16.mxu0 0
      %3263 = vmatpush1.bf16.msra.mxu0 %v3241
      %3264 = vmatprep.subr.bf16.mxu0 0
      %3265 = vmatpush1.bf16.msra.mxu0 %v3242
      %3266 = vmatprep.subr.bf16.mxu0 0
      %3267 = vmatpush1.bf16.msra.mxu0 %v3243
      %3268 = vmatprep.subr.bf16.mxu0 0
      %3269 = vmatpush1.bf16.msra.mxu0 0
      %3270 = vmatprep.subr.bf16.mxu0 0
      %3271 = vmatpush1.bf16.msra.mxu0 0
      %3272 = vmatprep.subr.bf16.mxu0 0
      %3273 = vmatpush1.bf16.msra.mxu0 0
      %3274 = vmatprep.subr.bf16.mxu0 0
      %3275 = vmatpush1.bf16.msra.mxu0 0
      %3276 = vmatprep.subr.bf16.mxu0 0
      %3277 = vmatpush1.bf16.msra.mxu0 0
      %3278 = vmatprep.subr.bf16.mxu0 0
      %3279 = vmatpush1.bf16.msra.mxu0 0
      %3280 = vmatprep.subr.bf16.mxu0 0
      %3281 = vmatpush1.bf16.msra.mxu0 0
      %3282 = vmatprep.subr.bf16.mxu0 0
      %3283 = vmatpush1.bf16.msra.mxu0 0
      %3284 = vmatprep.mubr.bf16.mxu0 0
      %3285 = vmatmul.mubr.bf16.gmra.mrb[0].mxu0 %v2918
      %v3286 = vpop.f32.mrb[0].mxu0
      %v3287 = vadd.f32 %v3191, %v3286
      %v3288 = vpop.f32.mrb[0].mxu0
      %v3289 = vpop.f32.mrb[0].mxu0
      %v3290 = vadd.f32 %v3194, %v3289
      %v3291 = vpop.f32.mrb[0].mxu0
      %3292 = vmatprep.mubr.bf16.mxu0 0
      %3293 = vmatmul.mubr.bf16.gmra.mrb[0].mxu0 %v2919
      %v3294 = vpop.f32.mrb[0].mxu0
      %v3295 = vadd.f32 %v3199, %v3294
      %v3296 = vpop.f32.mrb[0].mxu0
      %v3297 = vpop.f32.mrb[0].mxu0
      %v3298 = vpop.f32.mrb[0].mxu0
      %3299 = vdwg.mxu0
      %v3300 = vadd.f32 %v2231, %v3287
      %v3301 = vadd.f32 %v2232, %v3290
      %v3302 = vadd.f32 %v2233, %v3295
      %s3303 = scalar_lea.vmem %s8, 1
      %v3304 = vld [vmem:[%s3303] sm:$0x1]
      %v3306 = vlaneseq
      %v3307 = vshrl.u32 %v3306, 7
      %v3308 = vsub.s32 0, %v3307
      %v3309 = vrot.slane %v3304, %v3308
      %v3311 = vadd.f32 %v3300, %v3309
      %v3312 = vadd.f32 %v3301, %v3309
      %v3313 = vadd.f32 %v3302, %v3309
      %s3314 = scalar_lea.vmem %s9, 1
      %v3315 = vld [vmem:[%s3314] sm:$0x1]
      %s3316 = scalar_lea.vmem %s10, 1
      %v3317 = vld [vmem:[%s3316] sm:$0x1]
      %3318 = vadd.xlane.f32.xlu0 %v3311
      %v3319 = vpop.xlane.xlu0 %3318
      %3320 = vadd.xlane.f32.xlu0 %v3312
      %v3321 = vpop.xlane.xlu0 %3320
      %3322 = vadd.xlane.f32.xlu0 %v3313
      %v3323 = vpop.xlane.xlu0 %3322
      %v3324 = vmul.f32 %v3319, %v789
      %v3325 = vmul.f32 %v3321, %v789
      %v3326 = vmul.f32 %v3323, %v789
      %v3327 = vsub.f32 %v3311, %v3324
      %v3328 = vsub.f32 %v3312, %v3325
      %v3329 = vsub.f32 %v3313, %v3326
      %v3330 = vmul.f32 %v3327, %v3327
      %v3331 = vmul.f32 %v3328, %v3328
      %v3332 = vmul.f32 %v3329, %v3329
      %3333 = vadd.xlane.f32.xlu0 %v3330
      %v3334 = vpop.xlane.xlu0 %3333
      %3335 = vadd.xlane.f32.xlu0 %v3331
      %v3336 = vpop.xlane.xlu0 %3335
      %3337 = vadd.xlane.f32.xlu0 %v3332
      %v3338 = vpop.xlane.xlu0 %3337
      %v3339 = vmul.f32 %v3334, %v789
      %v3340 = vmul.f32 %v3336, %v789
      %v3341 = vmul.f32 %v3338, %v789
      %v3342 = vadd.f32 %v3339, 1e-05
      %v3343 = vadd.f32 %v3340, 1e-05
      %v3344 = vadd.f32 %v3341, 1e-05
      %v3345 = vrsqrt.pop %v3342
      %v3346 = vrsqrt.pop %v3343
      %v3347 = vrsqrt.pop %v3344
      %v3348 = vmul.f32 %v3327, %v3345
      %v3349 = vmul.f32 %v3328, %v3346
      %v3350 = vmul.f32 %v3329, %v3347
      %v3352 = vlaneseq
      %v3353 = vshrl.u32 %v3352, 7
      %v3354 = vsub.s32 0, %v3353
      %v3355 = vrot.slane %v3315, %v3354
      %v3357 = vmul.f32 %v3348, %v3355
      %v3358 = vmul.f32 %v3349, %v3355
      %v3359 = vmul.f32 %v3350, %v3355
      %v3361 = vlaneseq
      %v3362 = vshrl.u32 %v3361, 7
      %v3363 = vsub.s32 0, %v3362
      %v3364 = vrot.slane %v3317, %v3363
      %v3366 = vadd.f32 %v3357, %v3364
      %v3367 = vadd.f32 %v3358, %v3364
      %v3368 = vadd.f32 %v3359, %v3364
      %v3369 = vpack.c.bf16 %v3367, %v3366
      %v3370 = vpack.c.bf16 %v3368, %v3368
      %s3371 = scalar_lea.vmem %s11, 64
      %v3372 = vld [vmem:[%s3371] sm:$0xf]
      %v3373 = vld [vmem:[%s3371 + $0x4] sm:$0xf]
      %v3374 = vld [vmem:[%s3371 + $0x8] sm:$0xf]
      %v3375 = vld [vmem:[%s3371 + $0xc] sm:$0xf]
      %v3376 = vld [vmem:[%s3371 + $0x10] sm:$0xf]
      %v3377 = vld [vmem:[%s3371 + $0x14] sm:$0xf]
      %v3378 = vld [vmem:[%s3371 + $0x18] sm:$0xf]
      %v3379 = vld [vmem:[%s3371 + $0x1c] sm:$0xf]
      %v3380 = vld [vmem:[%s3371 + $0x20] sm:$0xf]
      %v3381 = vld [vmem:[%s3371 + $0x24] sm:$0xf]
      %v3382 = vld [vmem:[%s3371 + $0x28] sm:$0xf]
      %v3383 = vld [vmem:[%s3371 + $0x2c] sm:$0xf]
      %v3384 = vld [vmem:[%s3371 + $0x30] sm:$0xf]
      %v3385 = vld [vmem:[%s3371 + $0x34] sm:$0xf]
      %v3386 = vld [vmem:[%s3371 + $0x38] sm:$0xf]
      %v3387 = vld [vmem:[%s3371 + $0x3c] sm:$0xf]
      %s3388 = scalar_lea.vmem %s12, 1
      %v3389 = vld [vmem:[%s3388] sm:$0x1]
      %v3391 = vlaneseq
      %v3392 = vshrl.u32 %v3391, 7
      %v3393 = vsub.s32 0, %v3392
      %v3394 = vrot.slane %v3389, %v3393
      %v3412 = vunpack.c.l.b16 %v3372
      %v3413 = vunpack.c.l.b16 %v3373
      %v3414 = vunpack.c.l.b16 %v3374
      %v3415 = vunpack.c.l.b16 %v3375
      %v3416 = vunpack.c.l.b16 %v3376
      %v3417 = vunpack.c.l.b16 %v3377
      %v3418 = vunpack.c.l.b16 %v3378
      %v3419 = vunpack.c.l.b16 %v3379
      %v3420 = vunpack.c.l.b16 %v3380
      %v3421 = vunpack.c.l.b16 %v3381
      %v3422 = vunpack.c.l.b16 %v3382
      %v3423 = vunpack.c.l.b16 %v3383
      %v3424 = vunpack.c.l.b16 %v3384
      %v3425 = vunpack.c.l.b16 %v3385
      %v3426 = vunpack.c.l.b16 %v3386
      %v3427 = vunpack.c.l.b16 %v3387
      %v3428 = vpack.c.b16 %v3413, %v3412
      %v3429 = vpack.c.b16 %v3415, %v3414
      %v3430 = vpack.c.b16 %v3417, %v3416
      %v3431 = vpack.c.b16 %v3419, %v3418
      %v3432 = vpack.c.b16 %v3421, %v3420
      %v3433 = vpack.c.b16 %v3423, %v3422
      %v3434 = vpack.c.b16 %v3425, %v3424
      %v3435 = vpack.c.b16 %v3427, %v3426
      %3444 = vmatprep.subr.bf16.mxu0 0
      %3445 = vmatpush1.bf16.msra.mxu0 %v3428
      %3446 = vmatprep.subr.bf16.mxu0 0
      %3447 = vmatpush1.bf16.msra.mxu0 %v3429
      %3448 = vmatprep.subr.bf16.mxu0 0
      %3449 = vmatpush1.bf16.msra.mxu0 %v3430
      %3450 = vmatprep.subr.bf16.mxu0 0
      %3451 = vmatpush1.bf16.msra.mxu0 %v3431
      %3452 = vmatprep.subr.bf16.mxu0 0
      %3453 = vmatpush1.bf16.msra.mxu0 %v3432
      %3454 = vmatprep.subr.bf16.mxu0 0
      %3455 = vmatpush1.bf16.msra.mxu0 %v3433
      %3456 = vmatprep.subr.bf16.mxu0 0
      %3457 = vmatpush1.bf16.msra.mxu0 %v3434
      %3458 = vmatprep.subr.bf16.mxu0 0
      %3459 = vmatpush1.bf16.msra.mxu0 %v3435
      %3460 = vmatprep.subr.bf16.mxu0 0
      %3461 = vmatpush1.bf16.msra.mxu0 0
      %3462 = vmatprep.subr.bf16.mxu0 0
      %3463 = vmatpush1.bf16.msra.mxu0 0
      %3464 = vmatprep.subr.bf16.mxu0 0
      %3465 = vmatpush1.bf16.msra.mxu0 0
      %3466 = vmatprep.subr.bf16.mxu0 0
      %3467 = vmatpush1.bf16.msra.mxu0 0
      %3468 = vmatprep.subr.bf16.mxu0 0
      %3469 = vmatpush1.bf16.msra.mxu0 0
      %3470 = vmatprep.subr.bf16.mxu0 0
      %3471 = vmatpush1.bf16.msra.mxu0 0
      %3472 = vmatprep.subr.bf16.mxu0 0
      %3473 = vmatpush1.bf16.msra.mxu0 0
      %3474 = vmatprep.subr.bf16.mxu0 0
      %3475 = vmatpush1.bf16.msra.mxu0 0
      %3476 = vmatprep.mubr.bf16.mxu0 0
      %3477 = vmatmul.mubr.bf16.gmra.mrb[0].mxu0 %v3369
      %v3478 = vpop.f32.mrb[0].mxu0
      %v3479 = vadd.f32 %v3394, %v3478
      %v3480 = vpop.f32.mrb[0].mxu0
      %v3481 = vpop.f32.mrb[0].mxu0
      %v3482 = vadd.f32 %v3394, %v3481
      %v3483 = vpop.f32.mrb[0].mxu0
      %3484 = vmatprep.mubr.bf16.mxu0 0
      %3485 = vmatmul.mubr.bf16.gmra.mrb[0].mxu0 %v3370
      %v3486 = vpop.f32.mrb[0].mxu0
      %v3487 = vadd.f32 %v3394, %v3486
      %v3488 = vpop.f32.mrb[0].mxu0
      %v3489 = vpop.f32.mrb[0].mxu0
      %v3490 = vpop.f32.mrb[0].mxu0
      %3491 = vdwg.mxu0
      %v3492 = vmul.f32 %v3479, 0.5
      %v3493 = vmul.f32 %v3482, 0.5
      %v3494 = vmul.f32 %v3487, 0.5
      %v3495 = vmul.f32 %v3479, 0.70710677
      %v3496 = vmul.f32 %v3482, 0.70710677
      %v3497 = vmul.f32 %v3487, 0.70710677
      %v3498 = vand.u32 2147483647, %v3495
      %v3499 = vand.u32 2147483647, %v3496
      %v3500 = vand.u32 2147483647, %v3497
      %v3501 = vmul.f32 %v3498, 0.3275911
      %v3502 = vmul.f32 %v3499, 0.3275911
      %v3503 = vmul.f32 %v3500, 0.3275911
      %v3504 = vadd.f32 %v3501, 1.0
      %v3505 = vadd.f32 %v3502, 1.0
      %v3506 = vadd.f32 %v3503, 1.0
      %v3507 = vrcp.pop %v3504
      %v3508 = vrcp.pop %v3505
      %v3509 = vrcp.pop %v3506
      %v3510 = vmul.f32 %v3507, 1.0614054
      %v3511 = vmul.f32 %v3508, 1.0614054
      %v3512 = vmul.f32 %v3509, 1.0614054
      %v3513 = vadd.f32 %v3510, -1.4531521
      %v3514 = vadd.f32 %v3511, -1.4531521
      %v3515 = vadd.f32 %v3512, -1.4531521
      %v3516 = vmul.f32 %v3513, %v3507
      %v3517 = vmul.f32 %v3514, %v3508
      %v3518 = vmul.f32 %v3515, %v3509
      %v3519 = vadd.f32 %v3516, 1.4214138
      %v3520 = vadd.f32 %v3517, 1.4214138
      %v3521 = vadd.f32 %v3518, 1.4214138
      %v3522 = vmul.f32 %v3519, %v3507
      %v3523 = vmul.f32 %v3520, %v3508
      %v3524 = vmul.f32 %v3521, %v3509
      %v3525 = vadd.f32 %v3522, -0.28449672
      %v3526 = vadd.f32 %v3523, -0.28449672
      %v3527 = vadd.f32 %v3524, -0.28449672
      %v3528 = vmul.f32 %v3525, %v3507
      %v3529 = vmul.f32 %v3526, %v3508
      %v3530 = vmul.f32 %v3527, %v3509
      %v3531 = vadd.f32 %v3528, 0.2548296
      %v3532 = vadd.f32 %v3529, 0.2548296
      %v3533 = vadd.f32 %v3530, 0.2548296
      %v3534 = vmul.f32 %v3531, %v3507
      %v3535 = vmul.f32 %v3532, %v3508
      %v3536 = vmul.f32 %v3533, %v3509
      %v3537 = vsub.f32 0.0, %v3498
      %v3538 = vsub.f32 0.0, %v3499
      %v3539 = vsub.f32 0.0, %v3500
      %v3540 = vmul.f32 %v3537, %v3498
      %v3541 = vmul.f32 %v3538, %v3499
      %v3542 = vmul.f32 %v3539, %v3500
      %v3543 = vmul.f32 %v3540, 1.442695
      %v3544 = vpow.pop %v3543
      %v3545 = vmul.f32 %v3541, 1.442695
      %v3546 = vpow.pop %v3545
      %v3547 = vmul.f32 %v3542, 1.442695
      %v3548 = vpow.pop %v3547
      %v3549 = vmul.f32 %v3534, %v3544
      %v3550 = vmul.f32 %v3535, %v3546
      %v3551 = vmul.f32 %v3536, %v3548
      %v3552 = vsub.f32 1.0, %v3549
      %v3553 = vsub.f32 1.0, %v3550
      %v3554 = vsub.f32 1.0, %v3551
      %vm3555 = vcmp.ge.f32.partialorder %v3495, 0.0
      %vm3556 = vcmp.ge.f32.partialorder %v3496, 0.0
      %vm3557 = vcmp.ge.f32.partialorder %v3497, 0.0
      %v3558 = vsub.f32 0.0, %v3552
      %v3559 = vsub.f32 0.0, %v3553
      %v3560 = vsub.f32 0.0, %v3554
      %v3561 = vsel %vm3555, %v3552, %v3558
      %v3562 = vsel %vm3556, %v3553, %v3559
      %v3563 = vsel %vm3557, %v3554, %v3560
      %v3564 = vadd.f32 %v3561, 1.0
      %v3565 = vadd.f32 %v3562, 1.0
      %v3566 = vadd.f32 %v3563, 1.0
      %v3567 = vmul.f32 %v3492, %v3564
      %v3568 = vmul.f32 %v3493, %v3565
      %v3569 = vmul.f32 %v3494, %v3566
      %v3570 = vpack.c.bf16 %v3568, %v3567
      %v3571 = vpack.c.bf16 %v3569, %v3569
      %s3572 = scalar_lea.vmem %s13, 64
      %v3573 = vld [vmem:[%s3572] sm:$0xf]
      %v3574 = vld [vmem:[%s3572 + $0x4] sm:$0xf]
      %v3575 = vld [vmem:[%s3572 + $0x8] sm:$0xf]
      %v3576 = vld [vmem:[%s3572 + $0xc] sm:$0xf]
      %v3577 = vld [vmem:[%s3572 + $0x10] sm:$0xf]
      %v3578 = vld [vmem:[%s3572 + $0x14] sm:$0xf]
      %v3579 = vld [vmem:[%s3572 + $0x18] sm:$0xf]
      %v3580 = vld [vmem:[%s3572 + $0x1c] sm:$0xf]
      %v3581 = vld [vmem:[%s3572 + $0x20] sm:$0xf]
      %v3582 = vld [vmem:[%s3572 + $0x24] sm:$0xf]
      %v3583 = vld [vmem:[%s3572 + $0x28] sm:$0xf]
      %v3584 = vld [vmem:[%s3572 + $0x2c] sm:$0xf]
      %v3585 = vld [vmem:[%s3572 + $0x30] sm:$0xf]
      %v3586 = vld [vmem:[%s3572 + $0x34] sm:$0xf]
      %v3587 = vld [vmem:[%s3572 + $0x38] sm:$0xf]
      %v3588 = vld [vmem:[%s3572 + $0x3c] sm:$0xf]
      %s3589 = scalar_lea.vmem %s14, 1
      %v3590 = vld [vmem:[%s3589] sm:$0x1]
      %v3592 = vlaneseq
      %v3593 = vshrl.u32 %v3592, 7
      %v3594 = vsub.s32 0, %v3593
      %v3595 = vrot.slane %v3590, %v3594
      %v3613 = vunpack.c.l.b16 %v3573
      %v3614 = vunpack.c.l.b16 %v3574
      %v3615 = vunpack.c.l.b16 %v3575
      %v3616 = vunpack.c.l.b16 %v3576
      %v3617 = vunpack.c.l.b16 %v3577
      %v3618 = vunpack.c.l.b16 %v3578
      %v3619 = vunpack.c.l.b16 %v3579
      %v3620 = vunpack.c.l.b16 %v3580
      %v3621 = vunpack.c.l.b16 %v3581
      %v3622 = vunpack.c.l.b16 %v3582
      %v3623 = vunpack.c.l.b16 %v3583
      %v3624 = vunpack.c.l.b16 %v3584
      %v3625 = vunpack.c.l.b16 %v3585
      %v3626 = vunpack.c.l.b16 %v3586
      %v3627 = vunpack.c.l.b16 %v3587
      %v3628 = vunpack.c.l.b16 %v3588
      %v3629 = vpack.c.b16 %v3614, %v3613
      %v3630 = vpack.c.b16 %v3616, %v3615
      %v3631 = vpack.c.b16 %v3618, %v3617
      %v3632 = vpack.c.b16 %v3620, %v3619
      %v3633 = vpack.c.b16 %v3622, %v3621
      %v3634 = vpack.c.b16 %v3624, %v3623
      %v3635 = vpack.c.b16 %v3626, %v3625
      %v3636 = vpack.c.b16 %v3628, %v3627
      %3645 = vmatprep.subr.bf16.mxu0 0
      %3646 = vmatpush1.bf16.msra.mxu0 %v3629
      %3647 = vmatprep.subr.bf16.mxu0 0
      %3648 = vmatpush1.bf16.msra.mxu0 %v3630
      %3649 = vmatprep.subr.bf16.mxu0 0
      %3650 = vmatpush1.bf16.msra.mxu0 %v3631
      %3651 = vmatprep.subr.bf16.mxu0 0
      %3652 = vmatpush1.bf16.msra.mxu0 %v3632
      %3653 = vmatprep.subr.bf16.mxu0 0
      %3654 = vmatpush1.bf16.msra.mxu0 %v3633
      %3655 = vmatprep.subr.bf16.mxu0 0
      %3656 = vmatpush1.bf16.msra.mxu0 %v3634
      %3657 = vmatprep.subr.bf16.mxu0 0
      %3658 = vmatpush1.bf16.msra.mxu0 %v3635
      %3659 = vmatprep.subr.bf16.mxu0 0
      %3660 = vmatpush1.bf16.msra.mxu0 %v3636
      %3661 = vmatprep.subr.bf16.mxu0 0
      %3662 = vmatpush1.bf16.msra.mxu0 0
      %3663 = vmatprep.subr.bf16.mxu0 0
      %3664 = vmatpush1.bf16.msra.mxu0 0
      %3665 = vmatprep.subr.bf16.mxu0 0
      %3666 = vmatpush1.bf16.msra.mxu0 0
      %3667 = vmatprep.subr.bf16.mxu0 0
      %3668 = vmatpush1.bf16.msra.mxu0 0
      %3669 = vmatprep.subr.bf16.mxu0 0
      %3670 = vmatpush1.bf16.msra.mxu0 0
      %3671 = vmatprep.subr.bf16.mxu0 0
      %3672 = vmatpush1.bf16.msra.mxu0 0
      %3673 = vmatprep.subr.bf16.mxu0 0
      %3674 = vmatpush1.bf16.msra.mxu0 0
      %3675 = vmatprep.subr.bf16.mxu0 0
      %3676 = vmatpush1.bf16.msra.mxu0 0
      %3677 = vmatprep.mubr.bf16.mxu0 0
      %3678 = vmatmul.mubr.bf16.gmra.mrb[0].mxu0 %v3570
      %v3679 = vpop.f32.mrb[0].mxu0
      %v3680 = vadd.f32 %v3595, %v3679
      %v3681 = vpop.f32.mrb[0].mxu0
      %v3682 = vpop.f32.mrb[0].mxu0
      %v3683 = vpop.f32.mrb[0].mxu0
      %3684 = vmatprep.mubr.bf16.mxu0 0
      %3685 = vmatmul.mubr.bf16.gmra.mrb[0].mxu0 %v3571
      %v3686 = vpop.f32.mrb[0].mxu0
      %v3687 = vpop.f32.mrb[0].mxu0
      %v3688 = vpop.f32.mrb[0].mxu0
      %v3689 = vpop.f32.mrb[0].mxu0
      %3690 = vdwg.mxu0
      %v3691 = vadd.f32 %v3311, %v3680
      %v3692 = vld [vmem:[%s15] sm:$0x1]
      %v3693 = vld [vmem:[%s16] sm:$0x1]
      %3694 = vadd.xlane.f32.xlu0 %v3691
      %v3695 = vpop.xlane.xlu0 %3694
      %v3696 = vmul.f32 %v3695, %v789
      %v3697 = vsub.f32 %v3691, %v3696
      %v3698 = vmul.f32 %v3697, %v3697
      %3699 = vadd.xlane.f32.xlu0 %v3698
      %v3700 = vpop.xlane.xlu0 %3699
      %v3701 = vmul.f32 %v3700, %v789
      %v3702 = vadd.f32 %v3701, 1e-05
      %v3703 = vrsqrt.pop %v3702
      %v3704 = vmul.f32 %v3697, %v3703
      %v3706 = vlaneseq
      %v3707 = vshrl.u32 %v3706, 7
      %v3708 = vsub.s32 0, %v3707
      %v3709 = vrot.slane %v3692, %v3708
      %v3711 = vmul.f32 %v3704, %v3709
      %v3713 = vlaneseq
      %v3714 = vshrl.u32 %v3713, 7
      %v3715 = vsub.s32 0, %v3714
      %v3716 = vrot.slane %v3693, %v3715
      %v3718 = vadd.f32 %v3711, %v3716
      %v3719 = vpack.c.bf16 %v3718, %v3718
      %v3720 = vld [vmem:[%s17] sm:$0xf]
      %v3721 = vld [vmem:[%s17 + $0x4] sm:$0xf]
      %v3722 = vld [vmem:[%s17 + $0x8] sm:$0xf]
      %v3723 = vld [vmem:[%s17 + $0xc] sm:$0xf]
      %v3724 = vld [vmem:[%s17 + $0x10] sm:$0xf]
      %v3725 = vld [vmem:[%s17 + $0x14] sm:$0xf]
      %v3726 = vld [vmem:[%s17 + $0x18] sm:$0xf]
      %v3727 = vld [vmem:[%s17 + $0x1c] sm:$0xf]
      %v3728 = vld [vmem:[%s17 + $0x20] sm:$0xf]
      %v3729 = vld [vmem:[%s17 + $0x24] sm:$0xf]
      %v3730 = vld [vmem:[%s17 + $0x28] sm:$0xf]
      %v3731 = vld [vmem:[%s17 + $0x2c] sm:$0xf]
      %v3732 = vld [vmem:[%s17 + $0x30] sm:$0xf]
      %v3733 = vld [vmem:[%s17 + $0x34] sm:$0xf]
      %v3734 = vld [vmem:[%s17 + $0x38] sm:$0xf]
      %v3735 = vld [vmem:[%s17 + $0x3c] sm:$0xf]
      %v3736 = vld [vmem:[%s18] sm:$0x1]
      %v3738 = vlaneseq
      %v3739 = vshrl.u32 %v3738, 7
      %v3740 = vsub.s32 0, %v3739
      %v3741 = vrot.slane %v3736, %v3740
      %v3759 = vunpack.c.l.b16 %v3720
      %v3760 = vunpack.c.l.b16 %v3721
      %v3761 = vunpack.c.l.b16 %v3722
      %v3762 = vunpack.c.l.b16 %v3723
      %v3763 = vunpack.c.l.b16 %v3724
      %v3764 = vunpack.c.l.b16 %v3725
      %v3765 = vunpack.c.l.b16 %v3726
      %v3766 = vunpack.c.l.b16 %v3727
      %v3767 = vunpack.c.l.b16 %v3728
      %v3768 = vunpack.c.l.b16 %v3729
      %v3769 = vunpack.c.l.b16 %v3730
      %v3770 = vunpack.c.l.b16 %v3731
      %v3771 = vunpack.c.l.b16 %v3732
      %v3772 = vunpack.c.l.b16 %v3733
      %v3773 = vunpack.c.l.b16 %v3734
      %v3774 = vunpack.c.l.b16 %v3735
      %v3775 = vpack.c.b16 %v3760, %v3759
      %v3776 = vpack.c.b16 %v3762, %v3761
      %v3777 = vpack.c.b16 %v3764, %v3763
      %v3778 = vpack.c.b16 %v3766, %v3765
      %v3779 = vpack.c.b16 %v3768, %v3767
      %v3780 = vpack.c.b16 %v3770, %v3769
      %v3781 = vpack.c.b16 %v3772, %v3771
      %v3782 = vpack.c.b16 %v3774, %v3773
      %3791 = vmatprep.subr.bf16.mxu0 0
      %3792 = vmatpush1.bf16.msra.mxu0 %v3775
      %3793 = vmatprep.subr.bf16.mxu0 0
      %3794 = vmatpush1.bf16.msra.mxu0 %v3776
      %3795 = vmatprep.subr.bf16.mxu0 0
      %3796 = vmatpush1.bf16.msra.mxu0 %v3777
      %3797 = vmatprep.subr.bf16.mxu0 0
      %3798 = vmatpush1.bf16.msra.mxu0 %v3778
      %3799 = vmatprep.subr.bf16.mxu0 0
      %3800 = vmatpush1.bf16.msra.mxu0 %v3779
      %3801 = vmatprep.subr.bf16.mxu0 0
      %3802 = vmatpush1.bf16.msra.mxu0 %v3780
      %3803 = vmatprep.subr.bf16.mxu0 0
      %3804 = vmatpush1.bf16.msra.mxu0 %v3781
      %3805 = vmatprep.subr.bf16.mxu0 0
      %3806 = vmatpush1.bf16.msra.mxu0 %v3782
      %3807 = vmatprep.subr.bf16.mxu0 0
      %3808 = vmatpush1.bf16.msra.mxu0 0
      %3809 = vmatprep.subr.bf16.mxu0 0
      %3810 = vmatpush1.bf16.msra.mxu0 0
      %3811 = vmatprep.subr.bf16.mxu0 0
      %3812 = vmatpush1.bf16.msra.mxu0 0
      %3813 = vmatprep.subr.bf16.mxu0 0
      %3814 = vmatpush1.bf16.msra.mxu0 0
      %3815 = vmatprep.subr.bf16.mxu0 0
      %3816 = vmatpush1.bf16.msra.mxu0 0
      %3817 = vmatprep.subr.bf16.mxu0 0
      %3818 = vmatpush1.bf16.msra.mxu0 0
      %3819 = vmatprep.subr.bf16.mxu0 0
      %3820 = vmatpush1.bf16.msra.mxu0 0
      %3821 = vmatprep.subr.bf16.mxu0 0
      %3822 = vmatpush1.bf16.msra.mxu0 0
      %3823 = vmatprep.mubr.bf16.mxu0 0
      %3824 = vmatmul.mubr.bf16.gmra.mrb[0].mxu0 %v3719
      %v3825 = vpop.f32.mrb[0].mxu0
      %v3826 = vadd.f32 %v3741, %v3825
      %v3827 = vpop.f32.mrb[0].mxu0
      %v3828 = vpop.f32.mrb[0].mxu0
      %v3829 = vpop.f32.mrb[0].mxu0
      %3830 = vdwg.mxu0
      %3831 = vst [vmem:[%s600] sm:$0xff] %v3826
      %p3832 = scmp.lt.s32.totalorder %s30, 1
      %s3833 = scalar_select %p3832, %s30, 1
      %s3834 = smul.addr %s3833, 8
      %s3835 = scalar_lea.vmem %s19, %s3834
      // Predicated region
      $region97: #{vit_forward.1} parent=95 // pred_check
        %p3836 = pneg %p452
      $region98: #{vit_forward.1} parent=95 // pred_check_branch
        %3838 = sbr.rel (%p3836) target = $region100
      $region99: #{vit_forward.1} parent=95 // pred_region
        _
      $region100: #{vit_forward.1} parent=95 // pred_fallthru
        _
    $region96: #{vit_forward.1} parent=5 // pred_fallthru
      _
    %p3839 = scmp.le.s32.totalorder 2, %s25
    // Predicated region
    $region101: #{vit_forward.1} parent=5 // pred_check
      %p3840 = pneg %p3839
    $region102: #{vit_forward.1} parent=5 // pred_check_branch
      %3842 = sbr.rel (%p3840) target = $region104
    $region103: #{vit_forward.1} parent=5 // pred_region
      %s3843 = ssub.s32 %s25, 2
      // Predicated region
      $region105: #{vit_forward.1} parent=103 // pred_check
        %p3844 = pneg %p458
      $region106: #{vit_forward.1} parent=103 // pred_check_branch
        %3846 = sbr.rel (%p3844) target = $region108
      $region107: #{vit_forward.1} parent=103 // pred_region
        %p3847 = scmp.lt.s32.totalorder %s31, 1
        %s3848 = scalar_select %p3847, %s31, 1
        %s3849 = smul.addr %s3848, 8
        %s3850 = scalar_lea.vmem %s19, %s3849
      $region108: #{vit_forward.1} parent=103 // pred_fallthru
        _
    $region104: #{vit_forward.1} parent=5 // pred_fallthru
      _
  $region6: #{vit_forward.1} parent=0 // loop_footer
    %s29 = sadd.s32 1, %s25
  $region7: #{vit_forward.1} parent=0 // loop_footer_branch
    %24 = sbr.rel target = $region3
  $region8: #{vit_forward.1} parent=0 // loop_exit
    _

</llo_original>
